<compile_context>
chip_gen: v6e
topology: v6e:2x2x1
jax: 0.10.0
libtpu: 0.0.40
codegen_flags: <defaults>
</compile_context>

<pallas_src>
import functools

import jax
import jax.numpy as jnp
import numpy as np
from jax.experimental import pallas as pl
from jax.experimental.pallas import tpu as pltpu


def _round_up(x, m):
    return ((x + m - 1) // m) * m


# ----------------------------------------------------------------------------
# Fused decoder kernels.
# ----------------------------------------------------------------------------
def _decoder_kernel_folded(x_ref, w_ref, b_ref, m_ref, bh_ref, out_ref):
    """Small/medium batch: nonLinear folded into the branch weights.
         z   = tanh(x @ W_eff + b_eff)    (bb, (Ca+Cl)*H)  f32
         out = z @ M_head + b_head        (bb, 128)        lane-dense store
    """
    f32 = jnp.float32
    z = jnp.tanh(jnp.dot(x_ref[...], w_ref[...], preferred_element_type=f32)
                 + b_ref[...])
    out_ref[...] = (jnp.dot(z.astype(m_ref.dtype), m_ref[...],
                            preferred_element_type=f32) + bh_ref[...])


def _decoder_kernel_twostage(x_ref, wnl_ref, bnl_ref, t_ref, b1_ref,
                             m_ref, bh_ref, out_ref):
    """Large batch (MXU-flop-bound): keep the nonLinear stage separate
    (~35% fewer MXU flops than the folded form); both branches fused per stage
    via concatenated / block-diagonal weights built at prepare time."""
    f32 = jnp.float32
    nl = (jnp.dot(x_ref[...], wnl_ref[...], preferred_element_type=f32)
          + bnl_ref[...])                                       # (bb, 400)
    z = jnp.tanh(jnp.dot(nl.astype(t_ref.dtype), t_ref[...],
                         preferred_element_type=f32) + b1_ref[...])
    out_ref[...] = (jnp.dot(z.astype(m_ref.dtype), m_ref[...],
                            preferred_element_type=f32) + bh_ref[...])


# ----------------------------------------------------------------------------
# One-time parameter preparation (PyTorch layout -> kernel layout).
# ----------------------------------------------------------------------------
def prepare_params(raw, accu_class_num, law_class_num):
    f32 = jnp.float32
    bf16 = jnp.bfloat16
    hp = jax.lax.Precision.HIGHEST
    Ca, Cl = accu_class_num, law_class_num

    wnl = raw["nonlinear_w"].astype(f32)          # (600, Din)  torch (out, in)
    bnl = raw["nonlinear_b"].astype(f32)          # (600,)

    # view(B,1,200,3).permute(3,...): accu uses y[:,0::3], law y[:,1::3];
    # the 2::3 third is dead in forward, so it is trimmed here.
    wa = jnp.transpose(wnl[0::3])                 # (Din, 200)
    wl = jnp.transpose(wnl[1::3])                 # (Din, 200)
    ba = bnl[0::3].reshape(1, 200)
    bl = bnl[1::3].reshape(1, 200)

    H = raw["accu_law_nl_w"].shape[0]             # 50
    O = raw["linear_w"].shape[0]                  # 2

    def fold_branch(class_w, w1):
        # T[d, c*H + h] = class_w[c, d] * w1[h, d]
        t = jnp.einsum("cd,hd->dch", class_w.astype(f32), w1.astype(f32))
        C, D = class_w.shape
        return t.reshape(D, C * H)

    ta = fold_branch(raw["accu_weight"], raw["accu_law_nl_w"])      # (200, Ca*H)
    tl = fold_branch(raw["law_weight"], raw["accu_for_law_w"])      # (200, Cl*H)
    b1a = jnp.tile(raw["accu_law_nl_b"].astype(f32), Ca).reshape(1, Ca * H)

    # --- folded (2-matmul) variant: nonLinear absorbed into branch weights ---
    wa_eff = jnp.dot(wa, ta, precision=hp)                          # (Din, Ca*H)
    wl_eff = jnp.dot(wl, tl, precision=hp)                          # (Din, Cl*H)
    w_eff = jnp.concatenate([wa_eff, wl_eff], axis=1)               # (Din, (Ca+Cl)*H)
    ba_eff = jnp.dot(ba, ta, precision=hp) + b1a                    # (1, Ca*H)
    bl_eff = jnp.dot(bl, tl, precision=hp)                          # (1, Cl*H) no bias
    b_eff = jnp.concatenate([ba_eff, bl_eff], axis=1)

    # --- two-stage (3-matmul) variant for large batches -----------------------
    w_nl = jnp.concatenate([wa, wl], axis=1)                        # (Din, 400)
    b_nl = jnp.concatenate([ba, bl], axis=1)                        # (1, 400)
    D = ta.shape[0]                                                 # 200
    t_bd = jnp.zeros((2 * D, (Ca + Cl) * H), f32)
    t_bd = t_bd.at[:D, :Ca * H].set(ta).at[D:, Ca * H:].set(tl)
    b1 = jnp.concatenate([b1a, jnp.zeros((1, Cl * H), f32)], axis=1)

    # --- merged block-diagonal 50->2 head, padded to a lane-dense 128 slab ---
    C = Ca + Cl
    w2 = raw["linear_w"].astype(f32)                                # (O, H)
    b2 = raw["linear_b"].astype(f32)                                # (O,)
    m = jnp.einsum("cz,oh->chzo", jnp.eye(C, dtype=f32), w2).reshape(C * H, C * O)
    out_w = _round_up(C * O, 128)
    m_head = jnp.pad(m, ((0, 0), (0, out_w - C * O)))               # (C*H, out_w)
    bh = jnp.pad(jnp.tile(b2, C), (0, out_w - C * O)).reshape(1, out_w)

    return dict(
        w_eff=w_eff.astype(bf16), b_eff=b_eff,
        w_nl=w_nl.astype(bf16), b_nl=b_nl,
        t_bd=t_bd.astype(bf16), b1=b1,
        m_head=m_head.astype(bf16), bh=bh,
    )


# ----------------------------------------------------------------------------
# Forward wrapper: single fused pallas_call, batch axis marked "parallel".
# ----------------------------------------------------------------------------
@functools.partial(jax.jit,
                   static_argnames=("accu_class_num", "law_class_num",
                                    "out_per_class"))
def decoder_forward(x, params, *, accu_class_num, law_class_num,
                    out_per_class=2):
    B, Din = x.shape
    Ca, Cl, O = accu_class_num, law_class_num, out_per_class
    out_w = params["m_head"].shape[1]                      # padded (>=128)

    # Batch-block policy: pad to the (8,*) sublane tile; >=2 blocks when
    # B >= 16 so both v7x TensorCores get work; cap at 128 rows (keeps the MXU
    # fed, bounds pad waste for non-divisible B, trivially fits v7x VMEM).
    B_pad8 = _round_up(max(B, 8), 8)
    if B_pad8 < 16:
        bb = B_pad8
    else:
        bb = min(128, _round_up(pl.cdiv(B_pad8, 2), 8))
    B_pad = _round_up(B_pad8, bb)
    nb = B_pad // bb

    xp = x.astype(jnp.bfloat16)
    if B_pad != B:
        xp = jnp.pad(xp, ((0, B_pad - B), (0, 0)))

    # Folded (2-matmul) form in the latency regime; two-stage for big batches.
    if B_pad <= 512:
        kernel = _decoder_kernel_folded
        weights = (params["w_eff"], params["b_eff"],
                   params["m_head"], params["bh"])
    else:
        kernel = _decoder_kernel_twostage
        weights = (params["w_nl"], params["b_nl"],
                   params["t_bd"], params["b1"],
                   params["m_head"], params["bh"])

    in_specs = [pl.BlockSpec((bb, Din), lambda i: (i, 0))]
    in_specs += [pl.BlockSpec(w.shape, lambda i: (0, 0)) for w in weights]

    out = pl.pallas_call(
        kernel,
        out_shape=jax.ShapeDtypeStruct((B_pad, out_w), jnp.float32),
        grid=(nb,),
        in_specs=in_specs,
        out_specs=pl.BlockSpec((bb, out_w), lambda i: (i, 0)),
        compiler_params=pltpu.CompilerParams(
            dimension_semantics=("parallel",),
        ),
    )(xp, *weights)

    accu = out[:B, :Ca * O].reshape(B, Ca, O)
    law = out[:B, Ca * O:(Ca + Cl) * O].reshape(B, Cl, O)
    return accu, law


# ----------------------------------------------------------------------------
# Pure-JAX reference (follows the original PyTorch math, no folding).
# ----------------------------------------------------------------------------
def decoder_ref(x, raw):
    hp = jax.lax.Precision.HIGHEST
    y = jnp.dot(x, raw["nonlinear_w"].T, precision=hp) + raw["nonlinear_b"]
    B = x.shape[0]
    y3 = y.reshape(B, 200, 3)
    accu_x, law_x = y3[:, :, 0], y3[:, :, 1]

    def br(xs, cw, w1, b1, w2, b2):
        h = xs[:, None, :] * cw[None, :, :]
        z = jnp.einsum("bcd,hd->bch", h, w1, precision=hp)
        if b1 is not None:
            z = z + b1
        z = jnp.tanh(z)
        return jnp.einsum("bch,oh->bco", z, w2, precision=hp) + b2

    accu = br(accu_x, raw["accu_weight"], raw["accu_law_nl_w"],
              raw["accu_law_nl_b"], raw["linear_w"], raw["linear_b"])
    law = br(law_x, raw["law_weight"], raw["accu_for_law_w"], None,
             raw["linear_w"], raw["linear_b"])
    return accu, law


if __name__ == "__main__":
    # Small synthetic config
    lstm_hiddens = 16
    in_features = lstm_hiddens * 2 + 600     # 632
    accu_class_num = 16
    law_class_num = 8
    batch = 2

    key = jax.random.PRNGKey(0)
    ks = jax.random.split(key, 10)

    def init(k, shape, scale=0.02):
        return (scale * jax.random.normal(k, shape)).astype(jnp.float32)

    raw = {
        "nonlinear_w": init(ks[0], (600, in_features)),   # (out, in) torch layout
        "nonlinear_b": init(ks[1], (600,)),
        "accu_law_nl_w": init(ks[2], (50, 200)),
        "accu_law_nl_b": init(ks[3], (50,)),
        "accu_weight": init(ks[4], (accu_class_num, 200)),
        "law_weight": init(ks[5], (law_class_num, 200)),
        "accu_for_law_w": init(ks[6], (50, 200)),          # bias=False
        "linear_w": init(ks[7], (2, 50)),
        "linear_b": init(ks[8], (2,)),
    }
    x = jax.random.normal(ks[9], (batch, in_features), dtype=jnp.float32)

    # One-time parameter fold (trim, transpose, class-weight fold, head merge).
    params = prepare_params(raw, accu_class_num, law_class_num)

    accu, law = decoder_forward(x, params,
                                accu_class_num=accu_class_num,
                                law_class_num=law_class_num,
                                out_per_class=2)
    accu = jax.block_until_ready(accu)
    law = jax.block_until_ready(law)

    accu_ref, law_ref = decoder_ref(x, raw)
    assert accu.shape == (batch, accu_class_num, 2)
    assert law.shape == (batch, law_class_num, 2)
    # bf16 MXU inputs with f32 accumulation vs Precision.HIGHEST reference.
    np.testing.assert_allclose(np.asarray(accu), np.asarray(accu_ref),
                               rtol=2e-2, atol=2e-3)
    np.testing.assert_allclose(np.asarray(law), np.asarray(law_ref),
                               rtol=2e-2, atol=2e-3)
    print("KERNEL_OK")
</pallas_src>

<mosaic_0001>
module attributes {stable_mosaic.version = 11 : i64} {
  func.func @_decoder_kernel_folded(%arg0: i32, %arg1: memref<8x632xbf16, #tpu.memory_space<vmem>>, %arg2: memref<632x1200xbf16, #tpu.memory_space<vmem>>, %arg3: memref<1x1200xf32, #tpu.memory_space<vmem>>, %arg4: memref<1200x128xbf16, #tpu.memory_space<vmem>>, %arg5: memref<1x128xf32, #tpu.memory_space<vmem>>, %arg6: memref<8x128xf32, #tpu.memory_space<vmem>>) attributes {dimension_semantics = [#tpu.dimension_semantics<parallel>], iteration_bounds = array<i64: 1>, scalar_prefetch = 0 : i64, scratch_operands = 0 : i64, tpu.core_type = #tpu.core_type<tc>, window_params = [{transform_indices = @transform_0, window_bounds = array<i64: 8, 632>}, {pipeline_mode = #tpu.pipeline_mode<synchronous>, transform_indices = @transform_1, window_bounds = array<i64: 632, 1200>}, {pipeline_mode = #tpu.pipeline_mode<synchronous>, transform_indices = @transform_2, window_bounds = array<i64: 1, 1200>}, {pipeline_mode = #tpu.pipeline_mode<synchronous>, transform_indices = @transform_3, window_bounds = array<i64: 1200, 128>}, {pipeline_mode = #tpu.pipeline_mode<synchronous>, transform_indices = @transform_4, window_bounds = array<i64: 1, 128>}, {transform_indices = @transform_5, window_bounds = array<i64: 8, 128>}]} {
    %c0 = arith.constant 0 : index
    %c0_0 = arith.constant 0 : index
    %0 = vector.load %arg1[%c0, %c0_0] : memref<8x632xbf16, #tpu.memory_space<vmem>>, vector<8x632xbf16>
    %c0_1 = arith.constant 0 : index
    %c0_2 = arith.constant 0 : index
    %1 = vector.load %arg2[%c0_1, %c0_2] : memref<632x1200xbf16, #tpu.memory_space<vmem>>, vector<632x1200xbf16>
    %cst = arith.constant dense<0.000000e+00> : vector<8x1200xf32>
    %2 = tpu.matmul %0, %1, %cst {dimension_numbers = #tpu.dot_dimension_numbers<[1], [0], [0], [1], [0, 0, 1, 1], [], []>} : vector<8x632xbf16>, vector<632x1200xbf16>, vector<8x1200xf32> -> vector<8x1200xf32>
    %c0_3 = arith.constant 0 : index
    %c0_4 = arith.constant 0 : index
    %3 = vector.load %arg3[%c0_3, %c0_4] : memref<1x1200xf32, #tpu.memory_space<vmem>>, vector<1x1200xf32>
    %4 = vector.broadcast %3 : vector<1x1200xf32> to vector<8x1200xf32>
    %5 = arith.addf %2, %4 : vector<8x1200xf32>
    %6 = math.tanh %5 : vector<8x1200xf32>
    %7 = arith.truncf %6 : vector<8x1200xf32> to vector<8x1200xbf16>
    %c0_5 = arith.constant 0 : index
    %c0_6 = arith.constant 0 : index
    %8 = vector.load %arg4[%c0_5, %c0_6] : memref<1200x128xbf16, #tpu.memory_space<vmem>>, vector<1200x128xbf16>
    %cst_7 = arith.constant dense<0.000000e+00> : vector<8x128xf32>
    %9 = tpu.matmul %7, %8, %cst_7 {dimension_numbers = #tpu.dot_dimension_numbers<[1], [0], [0], [1], [0, 0, 1, 1], [], []>} : vector<8x1200xbf16>, vector<1200x128xbf16>, vector<8x128xf32> -> vector<8x128xf32>
    %c0_8 = arith.constant 0 : index
    %c0_9 = arith.constant 0 : index
    %10 = vector.load %arg5[%c0_8, %c0_9] : memref<1x128xf32, #tpu.memory_space<vmem>>, vector<1x128xf32>
    %11 = vector.broadcast %10 : vector<1x128xf32> to vector<8x128xf32>
    %12 = arith.addf %9, %11 : vector<8x128xf32>
    %c0_10 = arith.constant 0 : index
    %c0_11 = arith.constant 0 : index
    %13 = vector.load %arg6[%c0_10, %c0_11] : memref<8x128xf32, #tpu.memory_space<vmem>>, vector<8x128xf32>
    tpu.vector_store %arg6[%c0_10, %c0_11], %12 {strides = array<i32>} : memref<8x128xf32, #tpu.memory_space<vmem>>, vector<8x128xf32>,
    return
  }
  func.func @transform_0(%arg0: i32) -> (i32, i32) {
    %c0_i32 = arith.constant 0 : i32
    %c0_i32_0 = arith.constant 0 : i32
    return %arg0, %c0_i32 : i32, i32
  }
  func.func @transform_1(%arg0: i32) -> (i32, i32) {
    %c0_i32 = arith.constant 0 : i32
    %c0_i32_0 = arith.constant 0 : i32
    %c0_i32_1 = arith.constant 0 : i32
    return %c0_i32, %c0_i32_0 : i32, i32
  }
  func.func @transform_2(%arg0: i32) -> (i32, i32) {
    %c0_i32 = arith.constant 0 : i32
    %c0_i32_0 = arith.constant 0 : i32
    %c0_i32_1 = arith.constant 0 : i32
    return %c0_i32, %c0_i32_0 : i32, i32
  }
  func.func @transform_3(%arg0: i32) -> (i32, i32) {
    %c0_i32 = arith.constant 0 : i32
    %c0_i32_0 = arith.constant 0 : i32
    %c0_i32_1 = arith.constant 0 : i32
    return %c0_i32, %c0_i32_0 : i32, i32
  }
  func.func @transform_4(%arg0: i32) -> (i32, i32) {
    %c0_i32 = arith.constant 0 : i32
    %c0_i32_0 = arith.constant 0 : i32
    %c0_i32_1 = arith.constant 0 : i32
    return %c0_i32, %c0_i32_0 : i32, i32
  }
  func.func @transform_5(%arg0: i32) -> (i32, i32) {
    %c0_i32 = arith.constant 0 : i32
    %c0_i32_0 = arith.constant 0 : i32
    return %arg0, %c0_i32 : i32, i32
  }
}

</mosaic_0001>

<llo_original>
// kernel: decoder_forward.1
$region0: #{decoder_forward.1}
  #allocation0 [shape = 'u32[]', space=smem, size = 0x4, offset = 0x4, fixed_abs, tag = 'smem constant byte address 0x4 - core index']
  #allocation1 [shape = 'u32[144,128]{1,0:T(1,128)}', space=vmem, size = 0x12000, scoped, tag = 'internal scratch']
  %s0 = inlined_call_operand.vmem [shape: bf16[8,632], index: 0, kind: input, shape index: {}]
  %s1 = inlined_call_operand.vmem [shape: bf16[632,1200], index: 1, kind: input, shape index: {}]
  %s2 = inlined_call_operand.vmem [shape: f32[1,1200], index: 2, kind: input, shape index: {}]
  %s3 = inlined_call_operand.vmem [shape: bf16[1200,128], index: 3, kind: input, shape index: {}]
  %s4 = inlined_call_operand.vmem [shape: f32[1,128], index: 4, kind: input, shape index: {}]
  %s5 = inlined_call_operand.vmem [shape: f32[8,128], index: 5, kind: output, shape index: {}]
  %s6 = sld [smem:[#allocation0]]
  $region30: #{decoder_forward.1} parent=0
    _
  %s8 = ssub.s32 1, %s6
  %s9 = scalar_select 0, %s8, %s6
  // Predicated region
  $region2: #{decoder_forward.1} parent=0 // pred_check
    _
  $region3: #{decoder_forward.1} parent=0 // pred_check_branch
    %11 = sbr.rel (0) target = $region5
  $region4: #{decoder_forward.1} parent=0 // pred_region
    _
  $region5: #{decoder_forward.1} parent=0 // pred_fallthru
    _
  // Predicated region
  $region6: #{decoder_forward.1} parent=0 // pred_check
    _
  $region7: #{decoder_forward.1} parent=0 // pred_check_branch
    %13 = sbr.rel (0) target = $region9
  $region8: #{decoder_forward.1} parent=0 // pred_region
    _
  $region9: #{decoder_forward.1} parent=0 // pred_fallthru
    _
  // Predicated region
  $region10: #{decoder_forward.1} parent=0 // pred_check
    _
  $region11: #{decoder_forward.1} parent=0 // pred_check_branch
    %15 = sbr.rel (0) target = $region13
  $region12: #{decoder_forward.1} parent=0 // pred_region
    _
  $region13: #{decoder_forward.1} parent=0 // pred_fallthru
    _
  // Predicated region
  $region14: #{decoder_forward.1} parent=0 // pred_check
    _
  $region15: #{decoder_forward.1} parent=0 // pred_check_branch
    %17 = sbr.rel (0) target = $region17
  $region16: #{decoder_forward.1} parent=0 // pred_region
    _
  $region17: #{decoder_forward.1} parent=0 // pred_fallthru
    _
  // Predicated region
  $region18: #{decoder_forward.1} parent=0 // pred_check
    _
  $region19: #{decoder_forward.1} parent=0 // pred_check_branch
    %19 = sbr.rel (0) target = $region21
  $region20: #{decoder_forward.1} parent=0 // pred_region
    _
  $region21: #{decoder_forward.1} parent=0 // pred_fallthru
    _
  %v21 = vld [vmem:[%s0] sm:$0xff]
  %v22 = vld [vmem:[%s0 + $0x8] sm:$0xff]
  %v23 = vld [vmem:[%s0 + $0x10] sm:$0xf]
  %v24 = vld [vmem:[%s1] sm:$0xff]
  %v25 = vld [vmem:[%s1 + $0x8] sm:$0xff]
  %v26 = vld [vmem:[%s1 + $0x10] sm:$0xff]
  %v27 = vld [vmem:[%s1 + $0x18] sm:$0xff]
  %v28 = vld [vmem:[%s1 + $0x20] sm:$0xff]
  %v29 = vld [vmem:[%s1 + $0x28] sm:$0xff]
  %v30 = vld [vmem:[%s1 + $0x30] sm:$0xff]
  %v31 = vld [vmem:[%s1 + $0x38] sm:$0xff]
  %v32 = vld [vmem:[%s1 + $0x40] sm:$0xff]
  %v33 = vld [vmem:[%s1 + $0x48] sm:$0xff]
  %v34 = vld [vmem:[%s1 + $0x50] sm:$0xff]
  %v35 = vld [vmem:[%s1 + $0x58] sm:$0xff]
  %v36 = vld [vmem:[%s1 + $0x60] sm:$0xff]
  %v37 = vld [vmem:[%s1 + $0x68] sm:$0xff]
  %v38 = vld [vmem:[%s1 + $0x70] sm:$0xff]
  %v39 = vld [vmem:[%s1 + $0x78] sm:$0xff]
  %v40 = vld [vmem:[%s1 + $0x80] sm:$0xff]
  %v41 = vld [vmem:[%s1 + $0x88] sm:$0xff]
  %v42 = vld [vmem:[%s1 + $0x90] sm:$0xff]
  %v43 = vld [vmem:[%s1 + $0x98] sm:$0xff]
  %v44 = vld [vmem:[%s1 + $0xa0] sm:$0xff]
  %v45 = vld [vmem:[%s1 + $0xa8] sm:$0xff]
  %v46 = vld [vmem:[%s1 + $0xb0] sm:$0xff]
  %v47 = vld [vmem:[%s1 + $0xb8] sm:$0xff]
  %v48 = vld [vmem:[%s1 + $0xc0] sm:$0xff]
  %v49 = vld [vmem:[%s1 + $0xc8] sm:$0xff]
  %v50 = vld [vmem:[%s1 + $0xd0] sm:$0xff]
  %v51 = vld [vmem:[%s1 + $0xd8] sm:$0xff]
  %v52 = vld [vmem:[%s1 + $0xe0] sm:$0xff]
  %v53 = vld [vmem:[%s1 + $0xe8] sm:$0xff]
  %v54 = vld [vmem:[%s1 + $0xf0] sm:$0xff]
  %v55 = vld [vmem:[%s1 + $0xf8] sm:$0xff]
  %v56 = vld [vmem:[%s1 + $0x100] sm:$0xff]
  %v57 = vld [vmem:[%s1 + $0x108] sm:$0xff]
  %v58 = vld [vmem:[%s1 + $0x110] sm:$0xff]
  %v59 = vld [vmem:[%s1 + $0x118] sm:$0xff]
  %v60 = vld [vmem:[%s1 + $0x120] sm:$0xff]
  %v61 = vld [vmem:[%s1 + $0x128] sm:$0xff]
  %v62 = vld [vmem:[%s1 + $0x130] sm:$0xff]
  %v63 = vld [vmem:[%s1 + $0x138] sm:$0xff]
  %v64 = vld [vmem:[%s1 + $0x140] sm:$0xff]
  %v65 = vld [vmem:[%s1 + $0x148] sm:$0xff]
  %v66 = vld [vmem:[%s1 + $0x150] sm:$0xff]
  %v67 = vld [vmem:[%s1 + $0x158] sm:$0xff]
  %v68 = vld [vmem:[%s1 + $0x160] sm:$0xff]
  %v69 = vld [vmem:[%s1 + $0x168] sm:$0xff]
  %v70 = vld [vmem:[%s1 + $0x170] sm:$0xff]
  %v71 = vld [vmem:[%s1 + $0x178] sm:$0xff]
  %v72 = vld [vmem:[%s1 + $0x180] sm:$0xff]
  %v73 = vld [vmem:[%s1 + $0x188] sm:$0xff]
  %v74 = vld [vmem:[%s1 + $0x190] sm:$0xff]
  %v75 = vld [vmem:[%s1 + $0x198] sm:$0xff]
  %v76 = vld [vmem:[%s1 + $0x1a0] sm:$0xff]
  %v77 = vld [vmem:[%s1 + $0x1a8] sm:$0xff]
  %v78 = vld [vmem:[%s1 + $0x1b0] sm:$0xff]
  %v79 = vld [vmem:[%s1 + $0x1b8] sm:$0xff]
  %v80 = vld [vmem:[%s1 + $0x1c0] sm:$0xff]
  %v81 = vld [vmem:[%s1 + $0x1c8] sm:$0xff]
  %v82 = vld [vmem:[%s1 + $0x1d0] sm:$0xff]
  %v83 = vld [vmem:[%s1 + $0x1d8] sm:$0xff]
  %v84 = vld [vmem:[%s1 + $0x1e0] sm:$0xff]
  %v85 = vld [vmem:[%s1 + $0x1e8] sm:$0xff]
  %v86 = vld [vmem:[%s1 + $0x1f0] sm:$0xff]
  %v87 = vld [vmem:[%s1 + $0x1f8] sm:$0xff]
  %v88 = vld [vmem:[%s1 + $0x200] sm:$0xff]
  %v89 = vld [vmem:[%s1 + $0x208] sm:$0xff]
  %v90 = vld [vmem:[%s1 + $0x210] sm:$0xff]
  %v91 = vld [vmem:[%s1 + $0x218] sm:$0xff]
  %v92 = vld [vmem:[%s1 + $0x220] sm:$0xff]
  %v93 = vld [vmem:[%s1 + $0x228] sm:$0xff]
  %v94 = vld [vmem:[%s1 + $0x230] sm:$0xff]
  %v95 = vld [vmem:[%s1 + $0x238] sm:$0xff]
  %v96 = vld [vmem:[%s1 + $0x240] sm:$0xff]
  %v97 = vld [vmem:[%s1 + $0x248] sm:$0xff]
  %v98 = vld [vmem:[%s1 + $0x250] sm:$0xff]
  %v99 = vld [vmem:[%s1 + $0x258] sm:$0xff]
  %v100 = vld [vmem:[%s1 + $0x260] sm:$0xff]
  %v101 = vld [vmem:[%s1 + $0x268] sm:$0xff]
  %v102 = vld [vmem:[%s1 + $0x270] sm:$0xff]
  %v103 = vld [vmem:[%s1 + $0x278] sm:$0xff]
  %v104 = vld [vmem:[%s1 + $0x280] sm:$0xff]
  %v105 = vld [vmem:[%s1 + $0x288] sm:$0xff]
  %v106 = vld [vmem:[%s1 + $0x290] sm:$0xff]
  %v107 = vld [vmem:[%s1 + $0x298] sm:$0xff]
  %v108 = vld [vmem:[%s1 + $0x2a0] sm:$0xff]
  %v109 = vld [vmem:[%s1 + $0x2a8] sm:$0xff]
  %v110 = vld [vmem:[%s1 + $0x2b0] sm:$0xff]
  %v111 = vld [vmem:[%s1 + $0x2b8] sm:$0xff]
  %v112 = vld [vmem:[%s1 + $0x2c0] sm:$0xff]
  %v113 = vld [vmem:[%s1 + $0x2c8] sm:$0xff]
  %v114 = vld [vmem:[%s1 + $0x2d0] sm:$0xff]
  %v115 = vld [vmem:[%s1 + $0x2d8] sm:$0xff]
  %v116 = vld [vmem:[%s1 + $0x2e0] sm:$0xff]
  %v117 = vld [vmem:[%s1 + $0x2e8] sm:$0xff]
  %v118 = vld [vmem:[%s1 + $0x2f0] sm:$0xff]
  %v119 = vld [vmem:[%s1 + $0x2f8] sm:$0xff]
  %v120 = vld [vmem:[%s1 + $0x300] sm:$0xff]
  %v121 = vld [vmem:[%s1 + $0x308] sm:$0xff]
  %v122 = vld [vmem:[%s1 + $0x310] sm:$0xff]
  %v123 = vld [vmem:[%s1 + $0x318] sm:$0xff]
  %v124 = vld [vmem:[%s1 + $0x320] sm:$0xff]
  %v125 = vld [vmem:[%s1 + $0x328] sm:$0xff]
  %v126 = vld [vmem:[%s1 + $0x330] sm:$0xff]
  %v127 = vld [vmem:[%s1 + $0x338] sm:$0xff]
  %v128 = vld [vmem:[%s1 + $0x340] sm:$0xff]
  %v129 = vld [vmem:[%s1 + $0x348] sm:$0xff]
  %v130 = vld [vmem:[%s1 + $0x350] sm:$0xff]
  %v131 = vld [vmem:[%s1 + $0x358] sm:$0xff]
  %v132 = vld [vmem:[%s1 + $0x360] sm:$0xff]
  %v133 = vld [vmem:[%s1 + $0x368] sm:$0xff]
  %v134 = vld [vmem:[%s1 + $0x370] sm:$0xff]
  %v135 = vld [vmem:[%s1 + $0x378] sm:$0xff]
  %v136 = vld [vmem:[%s1 + $0x380] sm:$0xff]
  %v137 = vld [vmem:[%s1 + $0x388] sm:$0xff]
  %v138 = vld [vmem:[%s1 + $0x390] sm:$0xff]
  %v139 = vld [vmem:[%s1 + $0x398] sm:$0xff]
  %v140 = vld [vmem:[%s1 + $0x3a0] sm:$0xff]
  %v141 = vld [vmem:[%s1 + $0x3a8] sm:$0xff]
  %v142 = vld [vmem:[%s1 + $0x3b0] sm:$0xff]
  %v143 = vld [vmem:[%s1 + $0x3b8] sm:$0xff]
  %v144 = vld [vmem:[%s1 + $0x3c0] sm:$0xff]
  %v145 = vld [vmem:[%s1 + $0x3c8] sm:$0xff]
  %v146 = vld [vmem:[%s1 + $0x3d0] sm:$0xff]
  %v147 = vld [vmem:[%s1 + $0x3d8] sm:$0xff]
  %v148 = vld [vmem:[%s1 + $0x3e0] sm:$0xff]
  %v149 = vld [vmem:[%s1 + $0x3e8] sm:$0xff]
  %v150 = vld [vmem:[%s1 + $0x3f0] sm:$0xff]
  %v151 = vld [vmem:[%s1 + $0x3f8] sm:$0xff]
  %v152 = vld [vmem:[%s1 + $0x400] sm:$0xff]
  %v153 = vld [vmem:[%s1 + $0x408] sm:$0xff]
  %v154 = vld [vmem:[%s1 + $0x410] sm:$0xff]
  %v155 = vld [vmem:[%s1 + $0x418] sm:$0xff]
  %v156 = vld [vmem:[%s1 + $0x420] sm:$0xff]
  %v157 = vld [vmem:[%s1 + $0x428] sm:$0xff]
  %v158 = vld [vmem:[%s1 + $0x430] sm:$0xff]
  %v159 = vld [vmem:[%s1 + $0x438] sm:$0xff]
  %v160 = vld [vmem:[%s1 + $0x440] sm:$0xff]
  %v161 = vld [vmem:[%s1 + $0x448] sm:$0xff]
  %v162 = vld [vmem:[%s1 + $0x450] sm:$0xff]
  %v163 = vld [vmem:[%s1 + $0x458] sm:$0xff]
  %v164 = vld [vmem:[%s1 + $0x460] sm:$0xff]
  %v165 = vld [vmem:[%s1 + $0x468] sm:$0xff]
  %v166 = vld [vmem:[%s1 + $0x470] sm:$0xff]
  %v167 = vld [vmem:[%s1 + $0x478] sm:$0xff]
  %v168 = vld [vmem:[%s1 + $0x480] sm:$0xff]
  %v169 = vld [vmem:[%s1 + $0x488] sm:$0xff]
  %v170 = vld [vmem:[%s1 + $0x490] sm:$0xff]
  %v171 = vld [vmem:[%s1 + $0x498] sm:$0xff]
  %v172 = vld [vmem:[%s1 + $0x4a0] sm:$0xff]
  %v173 = vld [vmem:[%s1 + $0x4a8] sm:$0xff]
  %v174 = vld [vmem:[%s1 + $0x4b0] sm:$0xff]
  %v175 = vld [vmem:[%s1 + $0x4b8] sm:$0xff]
  %v176 = vld [vmem:[%s1 + $0x4c0] sm:$0xff]
  %v177 = vld [vmem:[%s1 + $0x4c8] sm:$0xff]
  %v178 = vld [vmem:[%s1 + $0x4d0] sm:$0xff]
  %v179 = vld [vmem:[%s1 + $0x4d8] sm:$0xff]
  %v180 = vld [vmem:[%s1 + $0x4e0] sm:$0xff]
  %v181 = vld [vmem:[%s1 + $0x4e8] sm:$0xff]
  %v182 = vld [vmem:[%s1 + $0x4f0] sm:$0xff]
  %v183 = vld [vmem:[%s1 + $0x4f8] sm:$0xff]
  %v184 = vld [vmem:[%s1 + $0x500] sm:$0xff]
  %v185 = vld [vmem:[%s1 + $0x508] sm:$0xff]
  %v186 = vld [vmem:[%s1 + $0x510] sm:$0xff]
  %v187 = vld [vmem:[%s1 + $0x518] sm:$0xff]
  %v188 = vld [vmem:[%s1 + $0x520] sm:$0xff]
  %v189 = vld [vmem:[%s1 + $0x528] sm:$0xff]
  %v190 = vld [vmem:[%s1 + $0x530] sm:$0xff]
  %v191 = vld [vmem:[%s1 + $0x538] sm:$0xff]
  %v192 = vld [vmem:[%s1 + $0x540] sm:$0xff]
  %v193 = vld [vmem:[%s1 + $0x548] sm:$0xff]
  %v194 = vld [vmem:[%s1 + $0x550] sm:$0xff]
  %v195 = vld [vmem:[%s1 + $0x558] sm:$0xff]
  %v196 = vld [vmem:[%s1 + $0x560] sm:$0xff]
  %v197 = vld [vmem:[%s1 + $0x568] sm:$0xff]
  %v198 = vld [vmem:[%s1 + $0x570] sm:$0xff]
  %v199 = vld [vmem:[%s1 + $0x578] sm:$0xff]
  %v200 = vld [vmem:[%s1 + $0x580] sm:$0xff]
  %v201 = vld [vmem:[%s1 + $0x588] sm:$0xff]
  %v202 = vld [vmem:[%s1 + $0x590] sm:$0xff]
  %v203 = vld [vmem:[%s1 + $0x598] sm:$0xff]
  %v204 = vld [vmem:[%s1 + $0x5a0] sm:$0xff]
  %v205 = vld [vmem:[%s1 + $0x5a8] sm:$0xff]
  %v206 = vld [vmem:[%s1 + $0x5b0] sm:$0xff]
  %v207 = vld [vmem:[%s1 + $0x5b8] sm:$0xff]
  %v208 = vld [vmem:[%s1 + $0x5c0] sm:$0xff]
  %v209 = vld [vmem:[%s1 + $0x5c8] sm:$0xff]
  %v210 = vld [vmem:[%s1 + $0x5d0] sm:$0xff]
  %v211 = vld [vmem:[%s1 + $0x5d8] sm:$0xff]
  %v212 = vld [vmem:[%s1 + $0x5e0] sm:$0xff]
  %v213 = vld [vmem:[%s1 + $0x5e8] sm:$0xff]
  %v214 = vld [vmem:[%s1 + $0x5f0] sm:$0xff]
  %v215 = vld [vmem:[%s1 + $0x5f8] sm:$0xff]
  %v216 = vld [vmem:[%s1 + $0x600] sm:$0xff]
  %v217 = vld [vmem:[%s1 + $0x608] sm:$0xff]
  %v218 = vld [vmem:[%s1 + $0x610] sm:$0xff]
  %v219 = vld [vmem:[%s1 + $0x618] sm:$0xff]
  %v220 = vld [vmem:[%s1 + $0x620] sm:$0xff]
  %v221 = vld [vmem:[%s1 + $0x628] sm:$0xff]
  %v222 = vld [vmem:[%s1 + $0x630] sm:$0xff]
  %v223 = vld [vmem:[%s1 + $0x638] sm:$0xff]
  %v224 = vld [vmem:[%s1 + $0x640] sm:$0xff]
  %v225 = vld [vmem:[%s1 + $0x648] sm:$0xff]
  %v226 = vld [vmem:[%s1 + $0x650] sm:$0xff]
  %v227 = vld [vmem:[%s1 + $0x658] sm:$0xff]
  %v228 = vld [vmem:[%s1 + $0x660] sm:$0xff]
  %v229 = vld [vmem:[%s1 + $0x668] sm:$0xff]
  %v230 = vld [vmem:[%s1 + $0x670] sm:$0xff]
  %v231 = vld [vmem:[%s1 + $0x678] sm:$0xff]
  %v232 = vld [vmem:[%s1 + $0x680] sm:$0xff]
  %v233 = vld [vmem:[%s1 + $0x688] sm:$0xff]
  %v234 = vld [vmem:[%s1 + $0x690] sm:$0xff]
  %v235 = vld [vmem:[%s1 + $0x698] sm:$0xff]
  %v236 = vld [vmem:[%s1 + $0x6a0] sm:$0xff]
  %v237 = vld [vmem:[%s1 + $0x6a8] sm:$0xff]
  %v238 = vld [vmem:[%s1 + $0x6b0] sm:$0xff]
  %v239 = vld [vmem:[%s1 + $0x6b8] sm:$0xff]
  %v240 = vld [vmem:[%s1 + $0x6c0] sm:$0xff]
  %v241 = vld [vmem:[%s1 + $0x6c8] sm:$0xff]
  %v242 = vld [vmem:[%s1 + $0x6d0] sm:$0xff]
  %v243 = vld [vmem:[%s1 + $0x6d8] sm:$0xff]
  %v244 = vld [vmem:[%s1 + $0x6e0] sm:$0xff]
  %v245 = vld [vmem:[%s1 + $0x6e8] sm:$0xff]
  %v246 = vld [vmem:[%s1 + $0x6f0] sm:$0xff]
  %v247 = vld [vmem:[%s1 + $0x6f8] sm:$0xff]
  %v248 = vld [vmem:[%s1 + $0x700] sm:$0xff]
  %v249 = vld [vmem:[%s1 + $0x708] sm:$0xff]
  %v250 = vld [vmem:[%s1 + $0x710] sm:$0xff]
  %v251 = vld [vmem:[%s1 + $0x718] sm:$0xff]
  %v252 = vld [vmem:[%s1 + $0x720] sm:$0xff]
  %v253 = vld [vmem:[%s1 + $0x728] sm:$0xff]
  %v254 = vld [vmem:[%s1 + $0x730] sm:$0xff]
  %v255 = vld [vmem:[%s1 + $0x738] sm:$0xff]
  %v256 = vld [vmem:[%s1 + $0x740] sm:$0xff]
  %v257 = vld [vmem:[%s1 + $0x748] sm:$0xff]
  %v258 = vld [vmem:[%s1 + $0x750] sm:$0xff]
  %v259 = vld [vmem:[%s1 + $0x758] sm:$0xff]
  %v260 = vld [vmem:[%s1 + $0x760] sm:$0xff]
  %v261 = vld [vmem:[%s1 + $0x768] sm:$0xff]
  %v262 = vld [vmem:[%s1 + $0x770] sm:$0xff]
  %v263 = vld [vmem:[%s1 + $0x778] sm:$0xff]
  %v264 = vld [vmem:[%s1 + $0x780] sm:$0xff]
  %v265 = vld [vmem:[%s1 + $0x788] sm:$0xff]
  %v266 = vld [vmem:[%s1 + $0x790] sm:$0xff]
  %v267 = vld [vmem:[%s1 + $0x798] sm:$0xff]
  %v268 = vld [vmem:[%s1 + $0x7a0] sm:$0xff]
  %v269 = vld [vmem:[%s1 + $0x7a8] sm:$0xff]
  %v270 = vld [vmem:[%s1 + $0x7b0] sm:$0xff]
  %v271 = vld [vmem:[%s1 + $0x7b8] sm:$0xff]
  %v272 = vld [vmem:[%s1 + $0x7c0] sm:$0xff]
  %v273 = vld [vmem:[%s1 + $0x7c8] sm:$0xff]
  %v274 = vld [vmem:[%s1 + $0x7d0] sm:$0xff]
  %v275 = vld [vmem:[%s1 + $0x7d8] sm:$0xff]
  %v276 = vld [vmem:[%s1 + $0x7e0] sm:$0xff]
  %v277 = vld [vmem:[%s1 + $0x7e8] sm:$0xff]
  %v278 = vld [vmem:[%s1 + $0x7f0] sm:$0xff]
  %v279 = vld [vmem:[%s1 + $0x7f8] sm:$0xff]
  %v280 = vld [vmem:[%s1 + $0x800] sm:$0xff]
  %v281 = vld [vmem:[%s1 + $0x808] sm:$0xff]
  %v282 = vld [vmem:[%s1 + $0x810] sm:$0xff]
  %v283 = vld [vmem:[%s1 + $0x818] sm:$0xff]
  %v284 = vld [vmem:[%s1 + $0x820] sm:$0xff]
  %v285 = vld [vmem:[%s1 + $0x828] sm:$0xff]
  %v286 = vld [vmem:[%s1 + $0x830] sm:$0xff]
  %v287 = vld [vmem:[%s1 + $0x838] sm:$0xff]
  %v288 = vld [vmem:[%s1 + $0x840] sm:$0xff]
  %v289 = vld [vmem:[%s1 + $0x848] sm:$0xff]
  %v290 = vld [vmem:[%s1 + $0x850] sm:$0xff]
  %v291 = vld [vmem:[%s1 + $0x858] sm:$0xff]
  %v292 = vld [vmem:[%s1 + $0x860] sm:$0xff]
  %v293 = vld [vmem:[%s1 + $0x868] sm:$0xff]
  %v294 = vld [vmem:[%s1 + $0x870] sm:$0xff]
  %v295 = vld [vmem:[%s1 + $0x878] sm:$0xff]
  %v296 = vld [vmem:[%s1 + $0x880] sm:$0xff]
  %v297 = vld [vmem:[%s1 + $0x888] sm:$0xff]
  %v298 = vld [vmem:[%s1 + $0x890] sm:$0xff]
  %v299 = vld [vmem:[%s1 + $0x898] sm:$0xff]
  %v300 = vld [vmem:[%s1 + $0x8a0] sm:$0xff]
  %v301 = vld [vmem:[%s1 + $0x8a8] sm:$0xff]
  %v302 = vld [vmem:[%s1 + $0x8b0] sm:$0xff]
  %v303 = vld [vmem:[%s1 + $0x8b8] sm:$0xff]
  %v304 = vld [vmem:[%s1 + $0x8c0] sm:$0xff]
  %v305 = vld [vmem:[%s1 + $0x8c8] sm:$0xff]
  %v306 = vld [vmem:[%s1 + $0x8d0] sm:$0xff]
  %v307 = vld [vmem:[%s1 + $0x8d8] sm:$0xff]
  %v308 = vld [vmem:[%s1 + $0x8e0] sm:$0xff]
  %v309 = vld [vmem:[%s1 + $0x8e8] sm:$0xff]
  %v310 = vld [vmem:[%s1 + $0x8f0] sm:$0xff]
  %v311 = vld [vmem:[%s1 + $0x8f8] sm:$0xff]
  %v312 = vld [vmem:[%s1 + $0x900] sm:$0xff]
  %v313 = vld [vmem:[%s1 + $0x908] sm:$0xff]
  %v314 = vld [vmem:[%s1 + $0x910] sm:$0xff]
  %v315 = vld [vmem:[%s1 + $0x918] sm:$0xff]
  %v316 = vld [vmem:[%s1 + $0x920] sm:$0xff]
  %v317 = vld [vmem:[%s1 + $0x928] sm:$0xff]
  %v318 = vld [vmem:[%s1 + $0x930] sm:$0xff]
  %v319 = vld [vmem:[%s1 + $0x938] sm:$0xff]
  %v320 = vld [vmem:[%s1 + $0x940] sm:$0xff]
  %v321 = vld [vmem:[%s1 + $0x948] sm:$0xff]
  %v322 = vld [vmem:[%s1 + $0x950] sm:$0xff]
  %v323 = vld [vmem:[%s1 + $0x958] sm:$0xff]
  %v324 = vld [vmem:[%s1 + $0x960] sm:$0xff]
  %v325 = vld [vmem:[%s1 + $0x968] sm:$0xff]
  %v326 = vld [vmem:[%s1 + $0x970] sm:$0xff]
  %v327 = vld [vmem:[%s1 + $0x978] sm:$0xff]
  %v328 = vld [vmem:[%s1 + $0x980] sm:$0xff]
  %v329 = vld [vmem:[%s1 + $0x988] sm:$0xff]
  %v330 = vld [vmem:[%s1 + $0x990] sm:$0xff]
  %v331 = vld [vmem:[%s1 + $0x998] sm:$0xff]
  %v332 = vld [vmem:[%s1 + $0x9a0] sm:$0xff]
  %v333 = vld [vmem:[%s1 + $0x9a8] sm:$0xff]
  %v334 = vld [vmem:[%s1 + $0x9b0] sm:$0xff]
  %v335 = vld [vmem:[%s1 + $0x9b8] sm:$0xff]
  %v336 = vld [vmem:[%s1 + $0x9c0] sm:$0xff]
  %v337 = vld [vmem:[%s1 + $0x9c8] sm:$0xff]
  %v338 = vld [vmem:[%s1 + $0x9d0] sm:$0xff]
  %v339 = vld [vmem:[%s1 + $0x9d8] sm:$0xff]
  %v340 = vld [vmem:[%s1 + $0x9e0] sm:$0xff]
  %v341 = vld [vmem:[%s1 + $0x9e8] sm:$0xff]
  %v342 = vld [vmem:[%s1 + $0x9f0] sm:$0xff]
  %v343 = vld [vmem:[%s1 + $0x9f8] sm:$0xff]
  %v344 = vld [vmem:[%s1 + $0xa00] sm:$0xff]
  %v345 = vld [vmem:[%s1 + $0xa08] sm:$0xff]
  %v346 = vld [vmem:[%s1 + $0xa10] sm:$0xff]
  %v347 = vld [vmem:[%s1 + $0xa18] sm:$0xff]
  %v348 = vld [vmem:[%s1 + $0xa20] sm:$0xff]
  %v349 = vld [vmem:[%s1 + $0xa28] sm:$0xff]
  %v350 = vld [vmem:[%s1 + $0xa30] sm:$0xff]
  %v351 = vld [vmem:[%s1 + $0xa38] sm:$0xff]
  %v352 = vld [vmem:[%s1 + $0xa40] sm:$0xff]
  %v353 = vld [vmem:[%s1 + $0xa48] sm:$0xff]
  %v354 = vld [vmem:[%s1 + $0xa50] sm:$0xff]
  %v355 = vld [vmem:[%s1 + $0xa58] sm:$0xff]
  %v356 = vld [vmem:[%s1 + $0xa60] sm:$0xff]
  %v357 = vld [vmem:[%s1 + $0xa68] sm:$0xff]
  %v358 = vld [vmem:[%s1 + $0xa70] sm:$0xff]
  %v359 = vld [vmem:[%s1 + $0xa78] sm:$0xff]
  %v360 = vld [vmem:[%s1 + $0xa80] sm:$0xff]
  %v361 = vld [vmem:[%s1 + $0xa88] sm:$0xff]
  %v362 = vld [vmem:[%s1 + $0xa90] sm:$0xff]
  %v363 = vld [vmem:[%s1 + $0xa98] sm:$0xff]
  %v364 = vld [vmem:[%s1 + $0xaa0] sm:$0xff]
  %v365 = vld [vmem:[%s1 + $0xaa8] sm:$0xff]
  %v366 = vld [vmem:[%s1 + $0xab0] sm:$0xff]
  %v367 = vld [vmem:[%s1 + $0xab8] sm:$0xff]
  %v368 = vld [vmem:[%s1 + $0xac0] sm:$0xff]
  %v369 = vld [vmem:[%s1 + $0xac8] sm:$0xff]
  %v370 = vld [vmem:[%s1 + $0xad0] sm:$0xff]
  %v371 = vld [vmem:[%s1 + $0xad8] sm:$0xff]
  %v372 = vld [vmem:[%s1 + $0xae0] sm:$0xff]
  %v373 = vld [vmem:[%s1 + $0xae8] sm:$0xff]
  %v374 = vld [vmem:[%s1 + $0xaf0] sm:$0xff]
  %v375 = vld [vmem:[%s1 + $0xaf8] sm:$0xff]
  %v376 = vld [vmem:[%s1 + $0xb00] sm:$0xff]
  %v377 = vld [vmem:[%s1 + $0xb08] sm:$0xff]
  %v378 = vld [vmem:[%s1 + $0xb10] sm:$0xff]
  %v379 = vld [vmem:[%s1 + $0xb18] sm:$0xff]
  %v380 = vld [vmem:[%s1 + $0xb20] sm:$0xff]
  %v381 = vld [vmem:[%s1 + $0xb28] sm:$0xff]
  %v382 = vld [vmem:[%s1 + $0xb30] sm:$0xff]
  %v383 = vld [vmem:[%s1 + $0xb38] sm:$0xff]
  %v384 = vld [vmem:[%s1 + $0xb40] sm:$0xff]
  %v385 = vld [vmem:[%s1 + $0xb48] sm:$0xff]
  %v386 = vld [vmem:[%s1 + $0xb50] sm:$0xff]
  %v387 = vld [vmem:[%s1 + $0xb58] sm:$0xff]
  %v388 = vld [vmem:[%s1 + $0xb60] sm:$0xff]
  %v389 = vld [vmem:[%s1 + $0xb68] sm:$0xff]
  %v390 = vld [vmem:[%s1 + $0xb70] sm:$0xff]
  %v391 = vld [vmem:[%s1 + $0xb78] sm:$0xff]
  %v392 = vld [vmem:[%s1 + $0xb80] sm:$0xff]
  %v393 = vld [vmem:[%s1 + $0xb88] sm:$0xff]
  %v394 = vld [vmem:[%s1 + $0xb90] sm:$0xff]
  %v395 = vld [vmem:[%s1 + $0xb98] sm:$0xff]
  %v396 = vld [vmem:[%s1 + $0xba0] sm:$0xff]
  %v397 = vld [vmem:[%s1 + $0xba8] sm:$0xff]
  %v398 = vld [vmem:[%s1 + $0xbb0] sm:$0xff]
  %v399 = vld [vmem:[%s1 + $0xbb8] sm:$0xff]
  %v400 = vld [vmem:[%s1 + $0xbc0] sm:$0xff]
  %v401 = vld [vmem:[%s1 + $0xbc8] sm:$0xff]
  %v402 = vld [vmem:[%s1 + $0xbd0] sm:$0xff]
  %v403 = vld [vmem:[%s1 + $0xbd8] sm:$0xff]
  %v404 = vld [vmem:[%s1 + $0xbe0] sm:$0xff]
  %v405 = vld [vmem:[%s1 + $0xbe8] sm:$0xff]
  %v406 = vld [vmem:[%s1 + $0xbf0] sm:$0xff]
  %v407 = vld [vmem:[%s1 + $0xbf8] sm:$0xff]
  %v408 = vld [vmem:[%s1 + $0xc00] sm:$0xff]
  %v409 = vld [vmem:[%s1 + $0xc08] sm:$0xff]
  %v410 = vld [vmem:[%s1 + $0xc10] sm:$0xff]
  %v411 = vld [vmem:[%s1 + $0xc18] sm:$0xff]
  %v412 = vld [vmem:[%s1 + $0xc20] sm:$0xff]
  %v413 = vld [vmem:[%s1 + $0xc28] sm:$0xff]
  %v414 = vld [vmem:[%s1 + $0xc30] sm:$0xff]
  %v415 = vld [vmem:[%s1 + $0xc38] sm:$0xff]
  %v416 = vld [vmem:[%s1 + $0xc40] sm:$0xff]
  %v417 = vld [vmem:[%s1 + $0xc48] sm:$0xff]
  %v418 = vld [vmem:[%s1 + $0xc50] sm:$0xff]
  %v419 = vld [vmem:[%s2] sm:$0xff]
  %v420 = vld [vmem:[%s2 + $0x8] sm:$0x3]
  %v423 = vlaneseq
  %v424 = vshrl.u32 %v423, 7
  %v425 = vsub.s32 0, %v424
  %v426 = vrot.slane %v419, %v425
  %v427 = vlaneseq
  %v428 = vshrl.u32 %v427, 7
  %v429 = vsub.s32 1, %v428
  %v430 = vrot.slane %v419, %v429
  %v431 = vlaneseq
  %v432 = vshrl.u32 %v431, 7
  %v433 = vsub.s32 2, %v432
  %v434 = vrot.slane %v419, %v433
  %v435 = vlaneseq
  %v436 = vshrl.u32 %v435, 7
  %v437 = vsub.s32 3, %v436
  %v438 = vrot.slane %v419, %v437
  %v439 = vlaneseq
  %v440 = vshrl.u32 %v439, 7
  %v441 = vsub.s32 4, %v440
  %v442 = vrot.slane %v419, %v441
  %v443 = vlaneseq
  %v444 = vshrl.u32 %v443, 7
  %v445 = vsub.s32 5, %v444
  %v446 = vrot.slane %v419, %v445
  %v447 = vlaneseq
  %v448 = vshrl.u32 %v447, 7
  %v449 = vsub.s32 6, %v448
  %v450 = vrot.slane %v419, %v449
  %v451 = vlaneseq
  %v452 = vshrl.u32 %v451, 7
  %v453 = vsub.s32 7, %v452
  %v454 = vrot.slane %v419, %v453
  %v455 = vlaneseq
  %v456 = vshrl.u32 %v455, 7
  %v457 = vsub.s32 0, %v456
  %v458 = vrot.slane %v420, %v457
  %v459 = vlaneseq
  %v460 = vshrl.u32 %v459, 7
  %v461 = vsub.s32 1, %v460
  %v462 = vrot.slane %v420, %v461
  %v476 = vunpack.c.l.b16 %v21
  %v477 = vunpack.c.h.b16 %v21
  %v478 = vunpack.c.l.b16 %v22
  %v479 = vunpack.c.h.b16 %v22
  %v480 = vunpack.c.l.b16 %v23
  %v481 = vpack.c.b16 %v476, %v476
  %v482 = vpack.c.b16 %v477, %v477
  %v483 = vpack.c.b16 %v478, %v478
  %v484 = vpack.c.b16 %v479, %v479
  %v485 = vpack.c.b16 %v480, %v480
  %v885 = vunpack.c.l.b16 %v24
  %v886 = vunpack.c.h.b16 %v24
  %v887 = vunpack.c.l.b16 %v25
  %v888 = vunpack.c.h.b16 %v25
  %v889 = vunpack.c.l.b16 %v26
  %v890 = vunpack.c.h.b16 %v26
  %v891 = vunpack.c.l.b16 %v27
  %v892 = vunpack.c.h.b16 %v27
  %v893 = vunpack.c.l.b16 %v28
  %v894 = vunpack.c.h.b16 %v28
  %v895 = vunpack.c.l.b16 %v29
  %v896 = vunpack.c.h.b16 %v29
  %v897 = vunpack.c.l.b16 %v30
  %v898 = vunpack.c.h.b16 %v30
  %v899 = vunpack.c.l.b16 %v31
  %v900 = vunpack.c.h.b16 %v31
  %v901 = vunpack.c.l.b16 %v32
  %v902 = vunpack.c.h.b16 %v32
  %v903 = vunpack.c.l.b16 %v33
  %v904 = vunpack.c.h.b16 %v33
  %v905 = vunpack.c.l.b16 %v34
  %v906 = vunpack.c.h.b16 %v34
  %v907 = vunpack.c.l.b16 %v35
  %v908 = vunpack.c.h.b16 %v35
  %v909 = vunpack.c.l.b16 %v36
  %v910 = vunpack.c.h.b16 %v36
  %v911 = vunpack.c.l.b16 %v37
  %v912 = vunpack.c.h.b16 %v37
  %v913 = vunpack.c.l.b16 %v38
  %v914 = vunpack.c.h.b16 %v38
  %v915 = vunpack.c.l.b16 %v39
  %v916 = vunpack.c.h.b16 %v39
  %v917 = vunpack.c.l.b16 %v40
  %v918 = vunpack.c.h.b16 %v40
  %v919 = vunpack.c.l.b16 %v41
  %v920 = vunpack.c.h.b16 %v41
  %v921 = vunpack.c.l.b16 %v42
  %v922 = vunpack.c.h.b16 %v42
  %v923 = vunpack.c.l.b16 %v43
  %v924 = vunpack.c.h.b16 %v43
  %v925 = vunpack.c.l.b16 %v44
  %v926 = vunpack.c.h.b16 %v44
  %v927 = vunpack.c.l.b16 %v45
  %v928 = vunpack.c.h.b16 %v45
  %v929 = vunpack.c.l.b16 %v46
  %v930 = vunpack.c.h.b16 %v46
  %v931 = vunpack.c.l.b16 %v47
  %v932 = vunpack.c.h.b16 %v47
  %v933 = vunpack.c.l.b16 %v48
  %v934 = vunpack.c.h.b16 %v48
  %v935 = vunpack.c.l.b16 %v49
  %v936 = vunpack.c.h.b16 %v49
  %v937 = vunpack.c.l.b16 %v50
  %v938 = vunpack.c.h.b16 %v50
  %v939 = vunpack.c.l.b16 %v51
  %v940 = vunpack.c.h.b16 %v51
  %v941 = vunpack.c.l.b16 %v52
  %v942 = vunpack.c.h.b16 %v52
  %v943 = vunpack.c.l.b16 %v53
  %v944 = vunpack.c.h.b16 %v53
  %v945 = vunpack.c.l.b16 %v54
  %v946 = vunpack.c.h.b16 %v54
  %v947 = vunpack.c.l.b16 %v55
  %v948 = vunpack.c.h.b16 %v55
  %v949 = vunpack.c.l.b16 %v56
  %v950 = vunpack.c.h.b16 %v56
  %v951 = vunpack.c.l.b16 %v57
  %v952 = vunpack.c.h.b16 %v57
  %v953 = vunpack.c.l.b16 %v58
  %v954 = vunpack.c.h.b16 %v58
  %v955 = vunpack.c.l.b16 %v59
  %v956 = vunpack.c.h.b16 %v59
  %v957 = vunpack.c.l.b16 %v60
  %v958 = vunpack.c.h.b16 %v60
  %v959 = vunpack.c.l.b16 %v61
  %v960 = vunpack.c.h.b16 %v61
  %v961 = vunpack.c.l.b16 %v62
  %v962 = vunpack.c.h.b16 %v62
  %v963 = vunpack.c.l.b16 %v63
  %v964 = vunpack.c.h.b16 %v63
  %v965 = vunpack.c.l.b16 %v64
  %v966 = vunpack.c.h.b16 %v64
  %v967 = vunpack.c.l.b16 %v65
  %v968 = vunpack.c.h.b16 %v65
  %v969 = vunpack.c.l.b16 %v66
  %v970 = vunpack.c.h.b16 %v66
  %v971 = vunpack.c.l.b16 %v67
  %v972 = vunpack.c.h.b16 %v67
  %v973 = vunpack.c.l.b16 %v68
  %v974 = vunpack.c.h.b16 %v68
  %v975 = vunpack.c.l.b16 %v69
  %v976 = vunpack.c.h.b16 %v69
  %v977 = vunpack.c.l.b16 %v70
  %v978 = vunpack.c.h.b16 %v70
  %v979 = vunpack.c.l.b16 %v71
  %v980 = vunpack.c.h.b16 %v71
  %v981 = vunpack.c.l.b16 %v72
  %v982 = vunpack.c.h.b16 %v72
  %v983 = vunpack.c.l.b16 %v73
  %v984 = vunpack.c.h.b16 %v73
  %v985 = vunpack.c.l.b16 %v74
  %v986 = vunpack.c.h.b16 %v74
  %v987 = vunpack.c.l.b16 %v75
  %v988 = vunpack.c.h.b16 %v75
  %v989 = vunpack.c.l.b16 %v76
  %v990 = vunpack.c.h.b16 %v76
  %v991 = vunpack.c.l.b16 %v77
  %v992 = vunpack.c.h.b16 %v77
  %v993 = vunpack.c.l.b16 %v78
  %v994 = vunpack.c.h.b16 %v78
  %v995 = vunpack.c.l.b16 %v79
  %v996 = vunpack.c.h.b16 %v79
  %v997 = vunpack.c.l.b16 %v80
  %v998 = vunpack.c.h.b16 %v80
  %v999 = vunpack.c.l.b16 %v81
  %v1000 = vunpack.c.h.b16 %v81
  %v1001 = vunpack.c.l.b16 %v82
  %v1002 = vunpack.c.h.b16 %v82
  %v1003 = vunpack.c.l.b16 %v83
  %v1004 = vunpack.c.h.b16 %v83
  %v1005 = vunpack.c.l.b16 %v84
  %v1006 = vunpack.c.h.b16 %v84
  %v1007 = vunpack.c.l.b16 %v85
  %v1008 = vunpack.c.h.b16 %v85
  %v1009 = vunpack.c.l.b16 %v86
  %v1010 = vunpack.c.h.b16 %v86
  %v1011 = vunpack.c.l.b16 %v87
  %v1012 = vunpack.c.h.b16 %v87
  %v1013 = vunpack.c.l.b16 %v88
  %v1014 = vunpack.c.h.b16 %v88
  %v1015 = vunpack.c.l.b16 %v89
  %v1016 = vunpack.c.h.b16 %v89
  %v1017 = vunpack.c.l.b16 %v90
  %v1018 = vunpack.c.h.b16 %v90
  %v1019 = vunpack.c.l.b16 %v91
  %v1020 = vunpack.c.h.b16 %v91
  %v1021 = vunpack.c.l.b16 %v92
  %v1022 = vunpack.c.h.b16 %v92
  %v1023 = vunpack.c.l.b16 %v93
  %v1024 = vunpack.c.h.b16 %v93
  %v1025 = vunpack.c.l.b16 %v94
  %v1026 = vunpack.c.h.b16 %v94
  %v1027 = vunpack.c.l.b16 %v95
  %v1028 = vunpack.c.h.b16 %v95
  %v1029 = vunpack.c.l.b16 %v96
  %v1030 = vunpack.c.h.b16 %v96
  %v1031 = vunpack.c.l.b16 %v97
  %v1032 = vunpack.c.h.b16 %v97
  %v1033 = vunpack.c.l.b16 %v98
  %v1034 = vunpack.c.h.b16 %v98
  %v1035 = vunpack.c.l.b16 %v99
  %v1036 = vunpack.c.h.b16 %v99
  %v1037 = vunpack.c.l.b16 %v100
  %v1038 = vunpack.c.h.b16 %v100
  %v1039 = vunpack.c.l.b16 %v101
  %v1040 = vunpack.c.h.b16 %v101
  %v1041 = vunpack.c.l.b16 %v102
  %v1042 = vunpack.c.h.b16 %v102
  %v1043 = vunpack.c.l.b16 %v103
  %v1044 = vunpack.c.h.b16 %v103
  %v1045 = vunpack.c.l.b16 %v104
  %v1046 = vunpack.c.h.b16 %v104
  %v1047 = vunpack.c.l.b16 %v105
  %v1048 = vunpack.c.h.b16 %v105
  %v1049 = vunpack.c.l.b16 %v106
  %v1050 = vunpack.c.h.b16 %v106
  %v1051 = vunpack.c.l.b16 %v107
  %v1052 = vunpack.c.h.b16 %v107
  %v1053 = vunpack.c.l.b16 %v108
  %v1054 = vunpack.c.h.b16 %v108
  %v1055 = vunpack.c.l.b16 %v109
  %v1056 = vunpack.c.h.b16 %v109
  %v1057 = vunpack.c.l.b16 %v110
  %v1058 = vunpack.c.h.b16 %v110
  %v1059 = vunpack.c.l.b16 %v111
  %v1060 = vunpack.c.h.b16 %v111
  %v1061 = vunpack.c.l.b16 %v112
  %v1062 = vunpack.c.h.b16 %v112
  %v1063 = vunpack.c.l.b16 %v113
  %v1064 = vunpack.c.h.b16 %v113
  %v1065 = vunpack.c.l.b16 %v114
  %v1066 = vunpack.c.h.b16 %v114
  %v1067 = vunpack.c.l.b16 %v115
  %v1068 = vunpack.c.h.b16 %v115
  %v1069 = vunpack.c.l.b16 %v116
  %v1070 = vunpack.c.h.b16 %v116
  %v1071 = vunpack.c.l.b16 %v117
  %v1072 = vunpack.c.h.b16 %v117
  %v1073 = vunpack.c.l.b16 %v118
  %v1074 = vunpack.c.h.b16 %v118
  %v1075 = vunpack.c.l.b16 %v119
  %v1076 = vunpack.c.h.b16 %v119
  %v1077 = vunpack.c.l.b16 %v120
  %v1078 = vunpack.c.h.b16 %v120
  %v1079 = vunpack.c.l.b16 %v121
  %v1080 = vunpack.c.h.b16 %v121
  %v1081 = vunpack.c.l.b16 %v122
  %v1082 = vunpack.c.h.b16 %v122
  %v1083 = vunpack.c.l.b16 %v123
  %v1084 = vunpack.c.h.b16 %v123
  %v1085 = vunpack.c.l.b16 %v124
  %v1086 = vunpack.c.h.b16 %v124
  %v1087 = vunpack.c.l.b16 %v125
  %v1088 = vunpack.c.h.b16 %v125
  %v1089 = vunpack.c.l.b16 %v126
  %v1090 = vunpack.c.h.b16 %v126
  %v1091 = vunpack.c.l.b16 %v127
  %v1092 = vunpack.c.h.b16 %v127
  %v1093 = vunpack.c.l.b16 %v128
  %v1094 = vunpack.c.h.b16 %v128
  %v1095 = vunpack.c.l.b16 %v129
  %v1096 = vunpack.c.h.b16 %v129
  %v1097 = vunpack.c.l.b16 %v130
  %v1098 = vunpack.c.h.b16 %v130
  %v1099 = vunpack.c.l.b16 %v131
  %v1100 = vunpack.c.h.b16 %v131
  %v1101 = vunpack.c.l.b16 %v132
  %v1102 = vunpack.c.h.b16 %v132
  %v1103 = vunpack.c.l.b16 %v133
  %v1104 = vunpack.c.h.b16 %v133
  %v1105 = vunpack.c.l.b16 %v134
  %v1106 = vunpack.c.h.b16 %v134
  %v1107 = vunpack.c.l.b16 %v135
  %v1108 = vunpack.c.h.b16 %v135
  %v1109 = vunpack.c.l.b16 %v136
  %v1110 = vunpack.c.h.b16 %v136
  %v1111 = vunpack.c.l.b16 %v137
  %v1112 = vunpack.c.h.b16 %v137
  %v1113 = vunpack.c.l.b16 %v138
  %v1114 = vunpack.c.h.b16 %v138
  %v1115 = vunpack.c.l.b16 %v139
  %v1116 = vunpack.c.h.b16 %v139
  %v1117 = vunpack.c.l.b16 %v140
  %v1118 = vunpack.c.h.b16 %v140
  %v1119 = vunpack.c.l.b16 %v141
  %v1120 = vunpack.c.h.b16 %v141
  %v1121 = vunpack.c.l.b16 %v142
  %v1122 = vunpack.c.h.b16 %v142
  %v1123 = vunpack.c.l.b16 %v143
  %v1124 = vunpack.c.h.b16 %v143
  %v1125 = vunpack.c.l.b16 %v144
  %v1126 = vunpack.c.h.b16 %v144
  %v1127 = vunpack.c.l.b16 %v145
  %v1128 = vunpack.c.h.b16 %v145
  %v1129 = vunpack.c.l.b16 %v146
  %v1130 = vunpack.c.h.b16 %v146
  %v1131 = vunpack.c.l.b16 %v147
  %v1132 = vunpack.c.h.b16 %v147
  %v1133 = vunpack.c.l.b16 %v148
  %v1134 = vunpack.c.h.b16 %v148
  %v1135 = vunpack.c.l.b16 %v149
  %v1136 = vunpack.c.h.b16 %v149
  %v1137 = vunpack.c.l.b16 %v150
  %v1138 = vunpack.c.h.b16 %v150
  %v1139 = vunpack.c.l.b16 %v151
  %v1140 = vunpack.c.h.b16 %v151
  %v1141 = vunpack.c.l.b16 %v152
  %v1142 = vunpack.c.h.b16 %v152
  %v1143 = vunpack.c.l.b16 %v153
  %v1144 = vunpack.c.h.b16 %v153
  %v1145 = vunpack.c.l.b16 %v154
  %v1146 = vunpack.c.h.b16 %v154
  %v1147 = vunpack.c.l.b16 %v155
  %v1148 = vunpack.c.h.b16 %v155
  %v1149 = vunpack.c.l.b16 %v156
  %v1150 = vunpack.c.h.b16 %v156
  %v1151 = vunpack.c.l.b16 %v157
  %v1152 = vunpack.c.h.b16 %v157
  %v1153 = vunpack.c.l.b16 %v158
  %v1154 = vunpack.c.h.b16 %v158
  %v1155 = vunpack.c.l.b16 %v159
  %v1156 = vunpack.c.h.b16 %v159
  %v1157 = vunpack.c.l.b16 %v160
  %v1158 = vunpack.c.h.b16 %v160
  %v1159 = vunpack.c.l.b16 %v161
  %v1160 = vunpack.c.h.b16 %v161
  %v1161 = vunpack.c.l.b16 %v162
  %v1162 = vunpack.c.h.b16 %v162
  %v1163 = vunpack.c.l.b16 %v163
  %v1164 = vunpack.c.h.b16 %v163
  %v1165 = vunpack.c.l.b16 %v164
  %v1166 = vunpack.c.h.b16 %v164
  %v1167 = vunpack.c.l.b16 %v165
  %v1168 = vunpack.c.h.b16 %v165
  %v1169 = vunpack.c.l.b16 %v166
  %v1170 = vunpack.c.h.b16 %v166
  %v1171 = vunpack.c.l.b16 %v167
  %v1172 = vunpack.c.h.b16 %v167
  %v1173 = vunpack.c.l.b16 %v168
  %v1174 = vunpack.c.h.b16 %v168
  %v1175 = vunpack.c.l.b16 %v169
  %v1176 = vunpack.c.h.b16 %v169
  %v1177 = vunpack.c.l.b16 %v170
  %v1178 = vunpack.c.h.b16 %v170
  %v1179 = vunpack.c.l.b16 %v171
  %v1180 = vunpack.c.h.b16 %v171
  %v1181 = vunpack.c.l.b16 %v172
  %v1182 = vunpack.c.h.b16 %v172
  %v1183 = vunpack.c.l.b16 %v173
  %v1184 = vunpack.c.h.b16 %v173
  %v1185 = vunpack.c.l.b16 %v174
  %v1186 = vunpack.c.h.b16 %v174
  %v1187 = vunpack.c.l.b16 %v175
  %v1188 = vunpack.c.h.b16 %v175
  %v1189 = vunpack.c.l.b16 %v176
  %v1190 = vunpack.c.h.b16 %v176
  %v1191 = vunpack.c.l.b16 %v177
  %v1192 = vunpack.c.h.b16 %v177
  %v1193 = vunpack.c.l.b16 %v178
  %v1194 = vunpack.c.h.b16 %v178
  %v1195 = vunpack.c.l.b16 %v179
  %v1196 = vunpack.c.h.b16 %v179
  %v1197 = vunpack.c.l.b16 %v180
  %v1198 = vunpack.c.h.b16 %v180
  %v1199 = vunpack.c.l.b16 %v181
  %v1200 = vunpack.c.h.b16 %v181
  %v1201 = vunpack.c.l.b16 %v182
  %v1202 = vunpack.c.h.b16 %v182
  %v1203 = vunpack.c.l.b16 %v183
  %v1204 = vunpack.c.h.b16 %v183
  %v1205 = vunpack.c.l.b16 %v184
  %v1206 = vunpack.c.h.b16 %v184
  %v1207 = vunpack.c.l.b16 %v185
  %v1208 = vunpack.c.h.b16 %v185
  %v1209 = vunpack.c.l.b16 %v186
  %v1210 = vunpack.c.h.b16 %v186
  %v1211 = vunpack.c.l.b16 %v187
  %v1212 = vunpack.c.h.b16 %v187
  %v1213 = vunpack.c.l.b16 %v188
  %v1214 = vunpack.c.h.b16 %v188
  %v1215 = vunpack.c.l.b16 %v189
  %v1216 = vunpack.c.h.b16 %v189
  %v1217 = vunpack.c.l.b16 %v190
  %v1218 = vunpack.c.h.b16 %v190
  %v1219 = vunpack.c.l.b16 %v191
  %v1220 = vunpack.c.h.b16 %v191
  %v1221 = vunpack.c.l.b16 %v192
  %v1222 = vunpack.c.h.b16 %v192
  %v1223 = vunpack.c.l.b16 %v193
  %v1224 = vunpack.c.h.b16 %v193
  %v1225 = vunpack.c.l.b16 %v194
  %v1226 = vunpack.c.h.b16 %v194
  %v1227 = vunpack.c.l.b16 %v195
  %v1228 = vunpack.c.h.b16 %v195
  %v1229 = vunpack.c.l.b16 %v196
  %v1230 = vunpack.c.h.b16 %v196
  %v1231 = vunpack.c.l.b16 %v197
  %v1232 = vunpack.c.h.b16 %v197
  %v1233 = vunpack.c.l.b16 %v198
  %v1234 = vunpack.c.h.b16 %v198
  %v1235 = vunpack.c.l.b16 %v199
  %v1236 = vunpack.c.h.b16 %v199
  %v1237 = vunpack.c.l.b16 %v200
  %v1238 = vunpack.c.h.b16 %v200
  %v1239 = vunpack.c.l.b16 %v201
  %v1240 = vunpack.c.h.b16 %v201
  %v1241 = vunpack.c.l.b16 %v202
  %v1242 = vunpack.c.h.b16 %v202
  %v1243 = vunpack.c.l.b16 %v203
  %v1244 = vunpack.c.h.b16 %v203
  %v1245 = vunpack.c.l.b16 %v204
  %v1246 = vunpack.c.h.b16 %v204
  %v1247 = vunpack.c.l.b16 %v205
  %v1248 = vunpack.c.h.b16 %v205
  %v1249 = vunpack.c.l.b16 %v206
  %v1250 = vunpack.c.h.b16 %v206
  %v1251 = vunpack.c.l.b16 %v207
  %v1252 = vunpack.c.h.b16 %v207
  %v1253 = vunpack.c.l.b16 %v208
  %v1254 = vunpack.c.h.b16 %v208
  %v1255 = vunpack.c.l.b16 %v209
  %v1256 = vunpack.c.h.b16 %v209
  %v1257 = vunpack.c.l.b16 %v210
  %v1258 = vunpack.c.h.b16 %v210
  %v1259 = vunpack.c.l.b16 %v211
  %v1260 = vunpack.c.h.b16 %v211
  %v1261 = vunpack.c.l.b16 %v212
  %v1262 = vunpack.c.h.b16 %v212
  %v1263 = vunpack.c.l.b16 %v213
  %v1264 = vunpack.c.h.b16 %v213
  %v1265 = vunpack.c.l.b16 %v214
  %v1266 = vunpack.c.h.b16 %v214
  %v1267 = vunpack.c.l.b16 %v215
  %v1268 = vunpack.c.h.b16 %v215
  %v1269 = vunpack.c.l.b16 %v216
  %v1270 = vunpack.c.h.b16 %v216
  %v1271 = vunpack.c.l.b16 %v217
  %v1272 = vunpack.c.h.b16 %v217
  %v1273 = vunpack.c.l.b16 %v218
  %v1274 = vunpack.c.h.b16 %v218
  %v1275 = vunpack.c.l.b16 %v219
  %v1276 = vunpack.c.h.b16 %v219
  %v1277 = vunpack.c.l.b16 %v220
  %v1278 = vunpack.c.h.b16 %v220
  %v1279 = vunpack.c.l.b16 %v221
  %v1280 = vunpack.c.h.b16 %v221
  %v1281 = vunpack.c.l.b16 %v222
  %v1282 = vunpack.c.h.b16 %v222
  %v1283 = vunpack.c.l.b16 %v223
  %v1284 = vunpack.c.h.b16 %v223
  %v1285 = vunpack.c.l.b16 %v224
  %v1286 = vunpack.c.h.b16 %v224
  %v1287 = vunpack.c.l.b16 %v225
  %v1288 = vunpack.c.h.b16 %v225
  %v1289 = vunpack.c.l.b16 %v226
  %v1290 = vunpack.c.h.b16 %v226
  %v1291 = vunpack.c.l.b16 %v227
  %v1292 = vunpack.c.h.b16 %v227
  %v1293 = vunpack.c.l.b16 %v228
  %v1294 = vunpack.c.h.b16 %v228
  %v1295 = vunpack.c.l.b16 %v229
  %v1296 = vunpack.c.h.b16 %v229
  %v1297 = vunpack.c.l.b16 %v230
  %v1298 = vunpack.c.h.b16 %v230
  %v1299 = vunpack.c.l.b16 %v231
  %v1300 = vunpack.c.h.b16 %v231
  %v1301 = vunpack.c.l.b16 %v232
  %v1302 = vunpack.c.h.b16 %v232
  %v1303 = vunpack.c.l.b16 %v233
  %v1304 = vunpack.c.h.b16 %v233
  %v1305 = vunpack.c.l.b16 %v234
  %v1306 = vunpack.c.h.b16 %v234
  %v1307 = vunpack.c.l.b16 %v235
  %v1308 = vunpack.c.h.b16 %v235
  %v1309 = vunpack.c.l.b16 %v236
  %v1310 = vunpack.c.h.b16 %v236
  %v1311 = vunpack.c.l.b16 %v237
  %v1312 = vunpack.c.h.b16 %v237
  %v1313 = vunpack.c.l.b16 %v238
  %v1314 = vunpack.c.h.b16 %v238
  %v1315 = vunpack.c.l.b16 %v239
  %v1316 = vunpack.c.h.b16 %v239
  %v1317 = vunpack.c.l.b16 %v240
  %v1318 = vunpack.c.h.b16 %v240
  %v1319 = vunpack.c.l.b16 %v241
  %v1320 = vunpack.c.h.b16 %v241
  %v1321 = vunpack.c.l.b16 %v242
  %v1322 = vunpack.c.h.b16 %v242
  %v1323 = vunpack.c.l.b16 %v243
  %v1324 = vunpack.c.h.b16 %v243
  %v1325 = vunpack.c.l.b16 %v244
  %v1326 = vunpack.c.h.b16 %v244
  %v1327 = vunpack.c.l.b16 %v245
  %v1328 = vunpack.c.h.b16 %v245
  %v1329 = vunpack.c.l.b16 %v246
  %v1330 = vunpack.c.h.b16 %v246
  %v1331 = vunpack.c.l.b16 %v247
  %v1332 = vunpack.c.h.b16 %v247
  %v1333 = vunpack.c.l.b16 %v248
  %v1334 = vunpack.c.h.b16 %v248
  %v1335 = vunpack.c.l.b16 %v249
  %v1336 = vunpack.c.h.b16 %v249
  %v1337 = vunpack.c.l.b16 %v250
  %v1338 = vunpack.c.h.b16 %v250
  %v1339 = vunpack.c.l.b16 %v251
  %v1340 = vunpack.c.h.b16 %v251
  %v1341 = vunpack.c.l.b16 %v252
  %v1342 = vunpack.c.h.b16 %v252
  %v1343 = vunpack.c.l.b16 %v253
  %v1344 = vunpack.c.h.b16 %v253
  %v1345 = vunpack.c.l.b16 %v254
  %v1346 = vunpack.c.h.b16 %v254
  %v1347 = vunpack.c.l.b16 %v255
  %v1348 = vunpack.c.h.b16 %v255
  %v1349 = vunpack.c.l.b16 %v256
  %v1350 = vunpack.c.h.b16 %v256
  %v1351 = vunpack.c.l.b16 %v257
  %v1352 = vunpack.c.h.b16 %v257
  %v1353 = vunpack.c.l.b16 %v258
  %v1354 = vunpack.c.h.b16 %v258
  %v1355 = vunpack.c.l.b16 %v259
  %v1356 = vunpack.c.h.b16 %v259
  %v1357 = vunpack.c.l.b16 %v260
  %v1358 = vunpack.c.h.b16 %v260
  %v1359 = vunpack.c.l.b16 %v261
  %v1360 = vunpack.c.h.b16 %v261
  %v1361 = vunpack.c.l.b16 %v262
  %v1362 = vunpack.c.h.b16 %v262
  %v1363 = vunpack.c.l.b16 %v263
  %v1364 = vunpack.c.h.b16 %v263
  %v1365 = vunpack.c.l.b16 %v264
  %v1366 = vunpack.c.h.b16 %v264
  %v1367 = vunpack.c.l.b16 %v265
  %v1368 = vunpack.c.h.b16 %v265
  %v1369 = vunpack.c.l.b16 %v266
  %v1370 = vunpack.c.h.b16 %v266
  %v1371 = vunpack.c.l.b16 %v267
  %v1372 = vunpack.c.h.b16 %v267
  %v1373 = vunpack.c.l.b16 %v268
  %v1374 = vunpack.c.h.b16 %v268
  %v1375 = vunpack.c.l.b16 %v269
  %v1376 = vunpack.c.h.b16 %v269
  %v1377 = vunpack.c.l.b16 %v270
  %v1378 = vunpack.c.h.b16 %v270
  %v1379 = vunpack.c.l.b16 %v271
  %v1380 = vunpack.c.h.b16 %v271
  %v1381 = vunpack.c.l.b16 %v272
  %v1382 = vunpack.c.h.b16 %v272
  %v1383 = vunpack.c.l.b16 %v273
  %v1384 = vunpack.c.h.b16 %v273
  %v1385 = vunpack.c.l.b16 %v274
  %v1386 = vunpack.c.h.b16 %v274
  %v1387 = vunpack.c.l.b16 %v275
  %v1388 = vunpack.c.h.b16 %v275
  %v1389 = vunpack.c.l.b16 %v276
  %v1390 = vunpack.c.h.b16 %v276
  %v1391 = vunpack.c.l.b16 %v277
  %v1392 = vunpack.c.h.b16 %v277
  %v1393 = vunpack.c.l.b16 %v278
  %v1394 = vunpack.c.h.b16 %v278
  %v1395 = vunpack.c.l.b16 %v279
  %v1396 = vunpack.c.h.b16 %v279
  %v1397 = vunpack.c.l.b16 %v280
  %v1398 = vunpack.c.h.b16 %v280
  %v1399 = vunpack.c.l.b16 %v281
  %v1400 = vunpack.c.h.b16 %v281
  %v1401 = vunpack.c.l.b16 %v282
  %v1402 = vunpack.c.h.b16 %v282
  %v1403 = vunpack.c.l.b16 %v283
  %v1404 = vunpack.c.h.b16 %v283
  %v1405 = vunpack.c.l.b16 %v284
  %v1406 = vunpack.c.h.b16 %v284
  %v1407 = vunpack.c.l.b16 %v285
  %v1408 = vunpack.c.h.b16 %v285
  %v1409 = vunpack.c.l.b16 %v286
  %v1410 = vunpack.c.h.b16 %v286
  %v1411 = vunpack.c.l.b16 %v287
  %v1412 = vunpack.c.h.b16 %v287
  %v1413 = vunpack.c.l.b16 %v288
  %v1414 = vunpack.c.h.b16 %v288
  %v1415 = vunpack.c.l.b16 %v289
  %v1416 = vunpack.c.h.b16 %v289
  %v1417 = vunpack.c.l.b16 %v290
  %v1418 = vunpack.c.h.b16 %v290
  %v1419 = vunpack.c.l.b16 %v291
  %v1420 = vunpack.c.h.b16 %v291
  %v1421 = vunpack.c.l.b16 %v292
  %v1422 = vunpack.c.h.b16 %v292
  %v1423 = vunpack.c.l.b16 %v293
  %v1424 = vunpack.c.h.b16 %v293
  %v1425 = vunpack.c.l.b16 %v294
  %v1426 = vunpack.c.h.b16 %v294
  %v1427 = vunpack.c.l.b16 %v295
  %v1428 = vunpack.c.h.b16 %v295
  %v1429 = vunpack.c.l.b16 %v296
  %v1430 = vunpack.c.h.b16 %v296
  %v1431 = vunpack.c.l.b16 %v297
  %v1432 = vunpack.c.h.b16 %v297
  %v1433 = vunpack.c.l.b16 %v298
  %v1434 = vunpack.c.h.b16 %v298
  %v1435 = vunpack.c.l.b16 %v299
  %v1436 = vunpack.c.h.b16 %v299
  %v1437 = vunpack.c.l.b16 %v300
  %v1438 = vunpack.c.h.b16 %v300
  %v1439 = vunpack.c.l.b16 %v301
  %v1440 = vunpack.c.h.b16 %v301
  %v1441 = vunpack.c.l.b16 %v302
  %v1442 = vunpack.c.h.b16 %v302
  %v1443 = vunpack.c.l.b16 %v303
  %v1444 = vunpack.c.h.b16 %v303
  %v1445 = vunpack.c.l.b16 %v304
  %v1446 = vunpack.c.h.b16 %v304
  %v1447 = vunpack.c.l.b16 %v305
  %v1448 = vunpack.c.h.b16 %v305
  %v1449 = vunpack.c.l.b16 %v306
  %v1450 = vunpack.c.h.b16 %v306
  %v1451 = vunpack.c.l.b16 %v307
  %v1452 = vunpack.c.h.b16 %v307
  %v1453 = vunpack.c.l.b16 %v308
  %v1454 = vunpack.c.h.b16 %v308
  %v1455 = vunpack.c.l.b16 %v309
  %v1456 = vunpack.c.h.b16 %v309
  %v1457 = vunpack.c.l.b16 %v310
  %v1458 = vunpack.c.h.b16 %v310
  %v1459 = vunpack.c.l.b16 %v311
  %v1460 = vunpack.c.h.b16 %v311
  %v1461 = vunpack.c.l.b16 %v312
  %v1462 = vunpack.c.h.b16 %v312
  %v1463 = vunpack.c.l.b16 %v313
  %v1464 = vunpack.c.h.b16 %v313
  %v1465 = vunpack.c.l.b16 %v314
  %v1466 = vunpack.c.h.b16 %v314
  %v1467 = vunpack.c.l.b16 %v315
  %v1468 = vunpack.c.h.b16 %v315
  %v1469 = vunpack.c.l.b16 %v316
  %v1470 = vunpack.c.h.b16 %v316
  %v1471 = vunpack.c.l.b16 %v317
  %v1472 = vunpack.c.h.b16 %v317
  %v1473 = vunpack.c.l.b16 %v318
  %v1474 = vunpack.c.h.b16 %v318
  %v1475 = vunpack.c.l.b16 %v319
  %v1476 = vunpack.c.h.b16 %v319
  %v1477 = vunpack.c.l.b16 %v320
  %v1478 = vunpack.c.h.b16 %v320
  %v1479 = vunpack.c.l.b16 %v321
  %v1480 = vunpack.c.h.b16 %v321
  %v1481 = vunpack.c.l.b16 %v322
  %v1482 = vunpack.c.h.b16 %v322
  %v1483 = vunpack.c.l.b16 %v323
  %v1484 = vunpack.c.h.b16 %v323
  %v1485 = vunpack.c.l.b16 %v324
  %v1486 = vunpack.c.h.b16 %v324
  %v1487 = vunpack.c.l.b16 %v325
  %v1488 = vunpack.c.h.b16 %v325
  %v1489 = vunpack.c.l.b16 %v326
  %v1490 = vunpack.c.h.b16 %v326
  %v1491 = vunpack.c.l.b16 %v327
  %v1492 = vunpack.c.h.b16 %v327
  %v1493 = vunpack.c.l.b16 %v328
  %v1494 = vunpack.c.h.b16 %v328
  %v1495 = vunpack.c.l.b16 %v329
  %v1496 = vunpack.c.h.b16 %v329
  %v1497 = vunpack.c.l.b16 %v330
  %v1498 = vunpack.c.h.b16 %v330
  %v1499 = vunpack.c.l.b16 %v331
  %v1500 = vunpack.c.h.b16 %v331
  %v1501 = vunpack.c.l.b16 %v332
  %v1502 = vunpack.c.h.b16 %v332
  %v1503 = vunpack.c.l.b16 %v333
  %v1504 = vunpack.c.h.b16 %v333
  %v1505 = vunpack.c.l.b16 %v334
  %v1506 = vunpack.c.h.b16 %v334
  %v1507 = vunpack.c.l.b16 %v335
  %v1508 = vunpack.c.h.b16 %v335
  %v1509 = vunpack.c.l.b16 %v336
  %v1510 = vunpack.c.h.b16 %v336
  %v1511 = vunpack.c.l.b16 %v337
  %v1512 = vunpack.c.h.b16 %v337
  %v1513 = vunpack.c.l.b16 %v338
  %v1514 = vunpack.c.h.b16 %v338
  %v1515 = vunpack.c.l.b16 %v339
  %v1516 = vunpack.c.h.b16 %v339
  %v1517 = vunpack.c.l.b16 %v340
  %v1518 = vunpack.c.h.b16 %v340
  %v1519 = vunpack.c.l.b16 %v341
  %v1520 = vunpack.c.h.b16 %v341
  %v1521 = vunpack.c.l.b16 %v342
  %v1522 = vunpack.c.h.b16 %v342
  %v1523 = vunpack.c.l.b16 %v343
  %v1524 = vunpack.c.h.b16 %v343
  %v1525 = vunpack.c.l.b16 %v344
  %v1526 = vunpack.c.h.b16 %v344
  %v1527 = vunpack.c.l.b16 %v345
  %v1528 = vunpack.c.h.b16 %v345
  %v1529 = vunpack.c.l.b16 %v346
  %v1530 = vunpack.c.h.b16 %v346
  %v1531 = vunpack.c.l.b16 %v347
  %v1532 = vunpack.c.h.b16 %v347
  %v1533 = vunpack.c.l.b16 %v348
  %v1534 = vunpack.c.h.b16 %v348
  %v1535 = vunpack.c.l.b16 %v349
  %v1536 = vunpack.c.h.b16 %v349
  %v1537 = vunpack.c.l.b16 %v350
  %v1538 = vunpack.c.h.b16 %v350
  %v1539 = vunpack.c.l.b16 %v351
  %v1540 = vunpack.c.h.b16 %v351
  %v1541 = vunpack.c.l.b16 %v352
  %v1542 = vunpack.c.h.b16 %v352
  %v1543 = vunpack.c.l.b16 %v353
  %v1544 = vunpack.c.h.b16 %v353
  %v1545 = vunpack.c.l.b16 %v354
  %v1546 = vunpack.c.h.b16 %v354
  %v1547 = vunpack.c.l.b16 %v355
  %v1548 = vunpack.c.h.b16 %v355
  %v1549 = vunpack.c.l.b16 %v356
  %v1550 = vunpack.c.h.b16 %v356
  %v1551 = vunpack.c.l.b16 %v357
  %v1552 = vunpack.c.h.b16 %v357
  %v1553 = vunpack.c.l.b16 %v358
  %v1554 = vunpack.c.h.b16 %v358
  %v1555 = vunpack.c.l.b16 %v359
  %v1556 = vunpack.c.h.b16 %v359
  %v1557 = vunpack.c.l.b16 %v360
  %v1558 = vunpack.c.h.b16 %v360
  %v1559 = vunpack.c.l.b16 %v361
  %v1560 = vunpack.c.h.b16 %v361
  %v1561 = vunpack.c.l.b16 %v362
  %v1562 = vunpack.c.h.b16 %v362
  %v1563 = vunpack.c.l.b16 %v363
  %v1564 = vunpack.c.h.b16 %v363
  %v1565 = vunpack.c.l.b16 %v364
  %v1566 = vunpack.c.h.b16 %v364
  %v1567 = vunpack.c.l.b16 %v365
  %v1568 = vunpack.c.h.b16 %v365
  %v1569 = vunpack.c.l.b16 %v366
  %v1570 = vunpack.c.h.b16 %v366
  %v1571 = vunpack.c.l.b16 %v367
  %v1572 = vunpack.c.h.b16 %v367
  %v1573 = vunpack.c.l.b16 %v368
  %v1574 = vunpack.c.h.b16 %v368
  %v1575 = vunpack.c.l.b16 %v369
  %v1576 = vunpack.c.h.b16 %v369
  %v1577 = vunpack.c.l.b16 %v370
  %v1578 = vunpack.c.h.b16 %v370
  %v1579 = vunpack.c.l.b16 %v371
  %v1580 = vunpack.c.h.b16 %v371
  %v1581 = vunpack.c.l.b16 %v372
  %v1582 = vunpack.c.h.b16 %v372
  %v1583 = vunpack.c.l.b16 %v373
  %v1584 = vunpack.c.h.b16 %v373
  %v1585 = vunpack.c.l.b16 %v374
  %v1586 = vunpack.c.h.b16 %v374
  %v1587 = vunpack.c.l.b16 %v375
  %v1588 = vunpack.c.h.b16 %v375
  %v1589 = vunpack.c.l.b16 %v376
  %v1590 = vunpack.c.h.b16 %v376
  %v1591 = vunpack.c.l.b16 %v377
  %v1592 = vunpack.c.h.b16 %v377
  %v1593 = vunpack.c.l.b16 %v378
  %v1594 = vunpack.c.h.b16 %v378
  %v1595 = vunpack.c.l.b16 %v379
  %v1596 = vunpack.c.h.b16 %v379
  %v1597 = vunpack.c.l.b16 %v380
  %v1598 = vunpack.c.h.b16 %v380
  %v1599 = vunpack.c.l.b16 %v381
  %v1600 = vunpack.c.h.b16 %v381
  %v1601 = vunpack.c.l.b16 %v382
  %v1602 = vunpack.c.h.b16 %v382
  %v1603 = vunpack.c.l.b16 %v383
  %v1604 = vunpack.c.h.b16 %v383
  %v1605 = vunpack.c.l.b16 %v384
  %v1606 = vunpack.c.h.b16 %v384
  %v1607 = vunpack.c.l.b16 %v385
  %v1608 = vunpack.c.h.b16 %v385
  %v1609 = vunpack.c.l.b16 %v386
  %v1610 = vunpack.c.h.b16 %v386
  %v1611 = vunpack.c.l.b16 %v387
  %v1612 = vunpack.c.h.b16 %v387
  %v1613 = vunpack.c.l.b16 %v388
  %v1614 = vunpack.c.h.b16 %v388
  %v1615 = vunpack.c.l.b16 %v389
  %v1616 = vunpack.c.h.b16 %v389
  %v1617 = vunpack.c.l.b16 %v390
  %v1618 = vunpack.c.h.b16 %v390
  %v1619 = vunpack.c.l.b16 %v391
  %v1620 = vunpack.c.h.b16 %v391
  %v1621 = vunpack.c.l.b16 %v392
  %v1622 = vunpack.c.h.b16 %v392
  %v1623 = vunpack.c.l.b16 %v393
  %v1624 = vunpack.c.h.b16 %v393
  %v1625 = vunpack.c.l.b16 %v394
  %v1626 = vunpack.c.h.b16 %v394
  %v1627 = vunpack.c.l.b16 %v395
  %v1628 = vunpack.c.h.b16 %v395
  %v1629 = vunpack.c.l.b16 %v396
  %v1630 = vunpack.c.h.b16 %v396
  %v1631 = vunpack.c.l.b16 %v397
  %v1632 = vunpack.c.h.b16 %v397
  %v1633 = vunpack.c.l.b16 %v398
  %v1634 = vunpack.c.h.b16 %v398
  %v1635 = vunpack.c.l.b16 %v399
  %v1636 = vunpack.c.h.b16 %v399
  %v1637 = vunpack.c.l.b16 %v400
  %v1638 = vunpack.c.h.b16 %v400
  %v1639 = vunpack.c.l.b16 %v401
  %v1640 = vunpack.c.h.b16 %v401
  %v1641 = vunpack.c.l.b16 %v402
  %v1642 = vunpack.c.h.b16 %v402
  %v1643 = vunpack.c.l.b16 %v403
  %v1644 = vunpack.c.h.b16 %v403
  %v1645 = vunpack.c.l.b16 %v404
  %v1646 = vunpack.c.h.b16 %v404
  %v1647 = vunpack.c.l.b16 %v405
  %v1648 = vunpack.c.h.b16 %v405
  %v1649 = vunpack.c.l.b16 %v406
  %v1650 = vunpack.c.h.b16 %v406
  %v1651 = vunpack.c.l.b16 %v407
  %v1652 = vunpack.c.h.b16 %v407
  %v1653 = vunpack.c.l.b16 %v408
  %v1654 = vunpack.c.h.b16 %v408
  %v1655 = vunpack.c.l.b16 %v409
  %v1656 = vunpack.c.h.b16 %v409
  %v1657 = vunpack.c.l.b16 %v410
  %v1658 = vunpack.c.h.b16 %v410
  %v1659 = vunpack.c.l.b16 %v411
  %v1660 = vunpack.c.h.b16 %v411
  %v1661 = vunpack.c.l.b16 %v412
  %v1662 = vunpack.c.h.b16 %v412
  %v1663 = vunpack.c.l.b16 %v413
  %v1664 = vunpack.c.h.b16 %v413
  %v1665 = vunpack.c.l.b16 %v414
  %v1666 = vunpack.c.h.b16 %v414
  %v1667 = vunpack.c.l.b16 %v415
  %v1668 = vunpack.c.h.b16 %v415
  %v1669 = vunpack.c.l.b16 %v416
  %v1670 = vunpack.c.h.b16 %v416
  %v1671 = vunpack.c.l.b16 %v417
  %v1672 = vunpack.c.h.b16 %v417
  %v1673 = vunpack.c.l.b16 %v418
  %v1674 = vunpack.c.h.b16 %v418
  %v1675 = vpack.c.b16 %v895, %v885
  %v1676 = vpack.c.b16 %v896, %v886
  %v1677 = vpack.c.b16 %v897, %v887
  %v1678 = vpack.c.b16 %v898, %v888
  %v1679 = vpack.c.b16 %v899, %v889
  %v1680 = vpack.c.b16 %v900, %v890
  %v1681 = vpack.c.b16 %v901, %v891
  %v1682 = vpack.c.b16 %v902, %v892
  %v1683 = vpack.c.b16 %v903, %v893
  %v1684 = vpack.c.b16 %v904, %v894
  %v1685 = vpack.c.b16 %v915, %v905
  %v1686 = vpack.c.b16 %v916, %v906
  %v1687 = vpack.c.b16 %v917, %v907
  %v1688 = vpack.c.b16 %v918, %v908
  %v1689 = vpack.c.b16 %v919, %v909
  %v1690 = vpack.c.b16 %v920, %v910
  %v1691 = vpack.c.b16 %v921, %v911
  %v1692 = vpack.c.b16 %v922, %v912
  %v1693 = vpack.c.b16 %v923, %v913
  %v1694 = vpack.c.b16 %v924, %v914
  %v1695 = vpack.c.b16 %v935, %v925
  %v1696 = vpack.c.b16 %v936, %v926
  %v1697 = vpack.c.b16 %v937, %v927
  %v1698 = vpack.c.b16 %v938, %v928
  %v1699 = vpack.c.b16 %v939, %v929
  %v1700 = vpack.c.b16 %v940, %v930
  %v1701 = vpack.c.b16 %v941, %v931
  %v1702 = vpack.c.b16 %v942, %v932
  %v1703 = vpack.c.b16 %v943, %v933
  %v1704 = vpack.c.b16 %v944, %v934
  %v1705 = vpack.c.b16 %v955, %v945
  %v1706 = vpack.c.b16 %v956, %v946
  %v1707 = vpack.c.b16 %v957, %v947
  %v1708 = vpack.c.b16 %v958, %v948
  %v1709 = vpack.c.b16 %v959, %v949
  %v1710 = vpack.c.b16 %v960, %v950
  %v1711 = vpack.c.b16 %v961, %v951
  %v1712 = vpack.c.b16 %v962, %v952
  %v1713 = vpack.c.b16 %v963, %v953
  %v1714 = vpack.c.b16 %v964, %v954
  %v1715 = vpack.c.b16 %v975, %v965
  %v1716 = vpack.c.b16 %v976, %v966
  %v1717 = vpack.c.b16 %v977, %v967
  %v1718 = vpack.c.b16 %v978, %v968
  %v1719 = vpack.c.b16 %v979, %v969
  %v1720 = vpack.c.b16 %v980, %v970
  %v1721 = vpack.c.b16 %v981, %v971
  %v1722 = vpack.c.b16 %v982, %v972
  %v1723 = vpack.c.b16 %v983, %v973
  %v1724 = vpack.c.b16 %v984, %v974
  %v1725 = vpack.c.b16 %v995, %v985
  %v1726 = vpack.c.b16 %v996, %v986
  %v1727 = vpack.c.b16 %v997, %v987
  %v1728 = vpack.c.b16 %v998, %v988
  %v1729 = vpack.c.b16 %v999, %v989
  %v1730 = vpack.c.b16 %v1000, %v990
  %v1731 = vpack.c.b16 %v1001, %v991
  %v1732 = vpack.c.b16 %v1002, %v992
  %v1733 = vpack.c.b16 %v1003, %v993
  %v1734 = vpack.c.b16 %v1004, %v994
  %v1735 = vpack.c.b16 %v1015, %v1005
  %v1736 = vpack.c.b16 %v1016, %v1006
  %v1737 = vpack.c.b16 %v1017, %v1007
  %v1738 = vpack.c.b16 %v1018, %v1008
  %v1739 = vpack.c.b16 %v1019, %v1009
  %v1740 = vpack.c.b16 %v1020, %v1010
  %v1741 = vpack.c.b16 %v1021, %v1011
  %v1742 = vpack.c.b16 %v1022, %v1012
  %v1743 = vpack.c.b16 %v1023, %v1013
  %v1744 = vpack.c.b16 %v1024, %v1014
  %v1745 = vpack.c.b16 %v1035, %v1025
  %v1746 = vpack.c.b16 %v1036, %v1026
  %v1747 = vpack.c.b16 %v1037, %v1027
  %v1748 = vpack.c.b16 %v1038, %v1028
  %v1749 = vpack.c.b16 %v1039, %v1029
  %v1750 = vpack.c.b16 %v1040, %v1030
  %v1751 = vpack.c.b16 %v1041, %v1031
  %v1752 = vpack.c.b16 %v1042, %v1032
  %v1753 = vpack.c.b16 %v1043, %v1033
  %v1754 = vpack.c.b16 %v1044, %v1034
  %v1755 = vpack.c.b16 %v1055, %v1045
  %v1756 = vpack.c.b16 %v1056, %v1046
  %v1757 = vpack.c.b16 %v1057, %v1047
  %v1758 = vpack.c.b16 %v1058, %v1048
  %v1759 = vpack.c.b16 %v1059, %v1049
  %v1760 = vpack.c.b16 %v1060, %v1050
  %v1761 = vpack.c.b16 %v1061, %v1051
  %v1762 = vpack.c.b16 %v1062, %v1052
  %v1763 = vpack.c.b16 %v1063, %v1053
  %v1764 = vpack.c.b16 %v1064, %v1054
  %v1765 = vpack.c.b16 %v1075, %v1065
  %v1766 = vpack.c.b16 %v1076, %v1066
  %v1767 = vpack.c.b16 %v1077, %v1067
  %v1768 = vpack.c.b16 %v1078, %v1068
  %v1769 = vpack.c.b16 %v1079, %v1069
  %v1770 = vpack.c.b16 %v1080, %v1070
  %v1771 = vpack.c.b16 %v1081, %v1071
  %v1772 = vpack.c.b16 %v1082, %v1072
  %v1773 = vpack.c.b16 %v1083, %v1073
  %v1774 = vpack.c.b16 %v1084, %v1074
  %v1775 = vpack.c.b16 %v1095, %v1085
  %v1776 = vpack.c.b16 %v1096, %v1086
  %v1777 = vpack.c.b16 %v1097, %v1087
  %v1778 = vpack.c.b16 %v1098, %v1088
  %v1779 = vpack.c.b16 %v1099, %v1089
  %v1780 = vpack.c.b16 %v1100, %v1090
  %v1781 = vpack.c.b16 %v1101, %v1091
  %v1782 = vpack.c.b16 %v1102, %v1092
  %v1783 = vpack.c.b16 %v1103, %v1093
  %v1784 = vpack.c.b16 %v1104, %v1094
  %v1785 = vpack.c.b16 %v1115, %v1105
  %v1786 = vpack.c.b16 %v1116, %v1106
  %v1787 = vpack.c.b16 %v1117, %v1107
  %v1788 = vpack.c.b16 %v1118, %v1108
  %v1789 = vpack.c.b16 %v1119, %v1109
  %v1790 = vpack.c.b16 %v1120, %v1110
  %v1791 = vpack.c.b16 %v1121, %v1111
  %v1792 = vpack.c.b16 %v1122, %v1112
  %v1793 = vpack.c.b16 %v1123, %v1113
  %v1794 = vpack.c.b16 %v1124, %v1114
  %v1795 = vpack.c.b16 %v1135, %v1125
  %v1796 = vpack.c.b16 %v1136, %v1126
  %v1797 = vpack.c.b16 %v1137, %v1127
  %v1798 = vpack.c.b16 %v1138, %v1128
  %v1799 = vpack.c.b16 %v1139, %v1129
  %v1800 = vpack.c.b16 %v1140, %v1130
  %v1801 = vpack.c.b16 %v1141, %v1131
  %v1802 = vpack.c.b16 %v1142, %v1132
  %v1803 = vpack.c.b16 %v1143, %v1133
  %v1804 = vpack.c.b16 %v1144, %v1134
  %v1805 = vpack.c.b16 %v1155, %v1145
  %v1806 = vpack.c.b16 %v1156, %v1146
  %v1807 = vpack.c.b16 %v1157, %v1147
  %v1808 = vpack.c.b16 %v1158, %v1148
  %v1809 = vpack.c.b16 %v1159, %v1149
  %v1810 = vpack.c.b16 %v1160, %v1150
  %v1811 = vpack.c.b16 %v1161, %v1151
  %v1812 = vpack.c.b16 %v1162, %v1152
  %v1813 = vpack.c.b16 %v1163, %v1153
  %v1814 = vpack.c.b16 %v1164, %v1154
  %v1815 = vpack.c.b16 %v1175, %v1165
  %v1816 = vpack.c.b16 %v1176, %v1166
  %v1817 = vpack.c.b16 %v1177, %v1167
  %v1818 = vpack.c.b16 %v1178, %v1168
  %v1819 = vpack.c.b16 %v1179, %v1169
  %v1820 = vpack.c.b16 %v1180, %v1170
  %v1821 = vpack.c.b16 %v1181, %v1171
  %v1822 = vpack.c.b16 %v1182, %v1172
  %v1823 = vpack.c.b16 %v1183, %v1173
  %v1824 = vpack.c.b16 %v1184, %v1174
  %v1825 = vpack.c.b16 %v1195, %v1185
  %v1826 = vpack.c.b16 %v1196, %v1186
  %v1827 = vpack.c.b16 %v1197, %v1187
  %v1828 = vpack.c.b16 %v1198, %v1188
  %v1829 = vpack.c.b16 %v1199, %v1189
  %v1830 = vpack.c.b16 %v1200, %v1190
  %v1831 = vpack.c.b16 %v1201, %v1191
  %v1832 = vpack.c.b16 %v1202, %v1192
  %v1833 = vpack.c.b16 %v1203, %v1193
  %v1834 = vpack.c.b16 %v1204, %v1194
  %v1835 = vpack.c.b16 %v1215, %v1205
  %v1836 = vpack.c.b16 %v1216, %v1206
  %v1837 = vpack.c.b16 %v1217, %v1207
  %v1838 = vpack.c.b16 %v1218, %v1208
  %v1839 = vpack.c.b16 %v1219, %v1209
  %v1840 = vpack.c.b16 %v1220, %v1210
  %v1841 = vpack.c.b16 %v1221, %v1211
  %v1842 = vpack.c.b16 %v1222, %v1212
  %v1843 = vpack.c.b16 %v1223, %v1213
  %v1844 = vpack.c.b16 %v1224, %v1214
  %v1845 = vpack.c.b16 %v1235, %v1225
  %v1846 = vpack.c.b16 %v1236, %v1226
  %v1847 = vpack.c.b16 %v1237, %v1227
  %v1848 = vpack.c.b16 %v1238, %v1228
  %v1849 = vpack.c.b16 %v1239, %v1229
  %v1850 = vpack.c.b16 %v1240, %v1230
  %v1851 = vpack.c.b16 %v1241, %v1231
  %v1852 = vpack.c.b16 %v1242, %v1232
  %v1853 = vpack.c.b16 %v1243, %v1233
  %v1854 = vpack.c.b16 %v1244, %v1234
  %v1855 = vpack.c.b16 %v1255, %v1245
  %v1856 = vpack.c.b16 %v1256, %v1246
  %v1857 = vpack.c.b16 %v1257, %v1247
  %v1858 = vpack.c.b16 %v1258, %v1248
  %v1859 = vpack.c.b16 %v1259, %v1249
  %v1860 = vpack.c.b16 %v1260, %v1250
  %v1861 = vpack.c.b16 %v1261, %v1251
  %v1862 = vpack.c.b16 %v1262, %v1252
  %v1863 = vpack.c.b16 %v1263, %v1253
  %v1864 = vpack.c.b16 %v1264, %v1254
  %v1865 = vpack.c.b16 %v1275, %v1265
  %v1866 = vpack.c.b16 %v1276, %v1266
  %v1867 = vpack.c.b16 %v1277, %v1267
  %v1868 = vpack.c.b16 %v1278, %v1268
  %v1869 = vpack.c.b16 %v1279, %v1269
  %v1870 = vpack.c.b16 %v1280, %v1270
  %v1871 = vpack.c.b16 %v1281, %v1271
  %v1872 = vpack.c.b16 %v1282, %v1272
  %v1873 = vpack.c.b16 %v1283, %v1273
  %v1874 = vpack.c.b16 %v1284, %v1274
  %v1875 = vpack.c.b16 %v1295, %v1285
  %v1876 = vpack.c.b16 %v1296, %v1286
  %v1877 = vpack.c.b16 %v1297, %v1287
  %v1878 = vpack.c.b16 %v1298, %v1288
  %v1879 = vpack.c.b16 %v1299, %v1289
  %v1880 = vpack.c.b16 %v1300, %v1290
  %v1881 = vpack.c.b16 %v1301, %v1291
  %v1882 = vpack.c.b16 %v1302, %v1292
  %v1883 = vpack.c.b16 %v1303, %v1293
  %v1884 = vpack.c.b16 %v1304, %v1294
  %v1885 = vpack.c.b16 %v1315, %v1305
  %v1886 = vpack.c.b16 %v1316, %v1306
  %v1887 = vpack.c.b16 %v1317, %v1307
  %v1888 = vpack.c.b16 %v1318, %v1308
  %v1889 = vpack.c.b16 %v1319, %v1309
  %v1890 = vpack.c.b16 %v1320, %v1310
  %v1891 = vpack.c.b16 %v1321, %v1311
  %v1892 = vpack.c.b16 %v1322, %v1312
  %v1893 = vpack.c.b16 %v1323, %v1313
  %v1894 = vpack.c.b16 %v1324, %v1314
  %v1895 = vpack.c.b16 %v1335, %v1325
  %v1896 = vpack.c.b16 %v1336, %v1326
  %v1897 = vpack.c.b16 %v1337, %v1327
  %v1898 = vpack.c.b16 %v1338, %v1328
  %v1899 = vpack.c.b16 %v1339, %v1329
  %v1900 = vpack.c.b16 %v1340, %v1330
  %v1901 = vpack.c.b16 %v1341, %v1331
  %v1902 = vpack.c.b16 %v1342, %v1332
  %v1903 = vpack.c.b16 %v1343, %v1333
  %v1904 = vpack.c.b16 %v1344, %v1334
  %v1905 = vpack.c.b16 %v1355, %v1345
  %v1906 = vpack.c.b16 %v1356, %v1346
  %v1907 = vpack.c.b16 %v1357, %v1347
  %v1908 = vpack.c.b16 %v1358, %v1348
  %v1909 = vpack.c.b16 %v1359, %v1349
  %v1910 = vpack.c.b16 %v1360, %v1350
  %v1911 = vpack.c.b16 %v1361, %v1351
  %v1912 = vpack.c.b16 %v1362, %v1352
  %v1913 = vpack.c.b16 %v1363, %v1353
  %v1914 = vpack.c.b16 %v1364, %v1354
  %v1915 = vpack.c.b16 %v1375, %v1365
  %v1916 = vpack.c.b16 %v1376, %v1366
  %v1917 = vpack.c.b16 %v1377, %v1367
  %v1918 = vpack.c.b16 %v1378, %v1368
  %v1919 = vpack.c.b16 %v1379, %v1369
  %v1920 = vpack.c.b16 %v1380, %v1370
  %v1921 = vpack.c.b16 %v1381, %v1371
  %v1922 = vpack.c.b16 %v1382, %v1372
  %v1923 = vpack.c.b16 %v1383, %v1373
  %v1924 = vpack.c.b16 %v1384, %v1374
  %v1925 = vpack.c.b16 %v1395, %v1385
  %v1926 = vpack.c.b16 %v1396, %v1386
  %v1927 = vpack.c.b16 %v1397, %v1387
  %v1928 = vpack.c.b16 %v1398, %v1388
  %v1929 = vpack.c.b16 %v1399, %v1389
  %v1930 = vpack.c.b16 %v1400, %v1390
  %v1931 = vpack.c.b16 %v1401, %v1391
  %v1932 = vpack.c.b16 %v1402, %v1392
  %v1933 = vpack.c.b16 %v1403, %v1393
  %v1934 = vpack.c.b16 %v1404, %v1394
  %v1935 = vpack.c.b16 %v1415, %v1405
  %v1936 = vpack.c.b16 %v1416, %v1406
  %v1937 = vpack.c.b16 %v1417, %v1407
  %v1938 = vpack.c.b16 %v1418, %v1408
  %v1939 = vpack.c.b16 %v1419, %v1409
  %v1940 = vpack.c.b16 %v1420, %v1410
  %v1941 = vpack.c.b16 %v1421, %v1411
  %v1942 = vpack.c.b16 %v1422, %v1412
  %v1943 = vpack.c.b16 %v1423, %v1413
  %v1944 = vpack.c.b16 %v1424, %v1414
  %v1945 = vpack.c.b16 %v1435, %v1425
  %v1946 = vpack.c.b16 %v1436, %v1426
  %v1947 = vpack.c.b16 %v1437, %v1427
  %v1948 = vpack.c.b16 %v1438, %v1428
  %v1949 = vpack.c.b16 %v1439, %v1429
  %v1950 = vpack.c.b16 %v1440, %v1430
  %v1951 = vpack.c.b16 %v1441, %v1431
  %v1952 = vpack.c.b16 %v1442, %v1432
  %v1953 = vpack.c.b16 %v1443, %v1433
  %v1954 = vpack.c.b16 %v1444, %v1434
  %v1955 = vpack.c.b16 %v1455, %v1445
  %v1956 = vpack.c.b16 %v1456, %v1446
  %v1957 = vpack.c.b16 %v1457, %v1447
  %v1958 = vpack.c.b16 %v1458, %v1448
  %v1959 = vpack.c.b16 %v1459, %v1449
  %v1960 = vpack.c.b16 %v1460, %v1450
  %v1961 = vpack.c.b16 %v1461, %v1451
  %v1962 = vpack.c.b16 %v1462, %v1452
  %v1963 = vpack.c.b16 %v1463, %v1453
  %v1964 = vpack.c.b16 %v1464, %v1454
  %v1965 = vpack.c.b16 %v1475, %v1465
  %v1966 = vpack.c.b16 %v1476, %v1466
  %v1967 = vpack.c.b16 %v1477, %v1467
  %v1968 = vpack.c.b16 %v1478, %v1468
  %v1969 = vpack.c.b16 %v1479, %v1469
  %v1970 = vpack.c.b16 %v1480, %v1470
  %v1971 = vpack.c.b16 %v1481, %v1471
  %v1972 = vpack.c.b16 %v1482, %v1472
  %v1973 = vpack.c.b16 %v1483, %v1473
  %v1974 = vpack.c.b16 %v1484, %v1474
  %v1975 = vpack.c.b16 %v1495, %v1485
  %v1976 = vpack.c.b16 %v1496, %v1486
  %v1977 = vpack.c.b16 %v1497, %v1487
  %v1978 = vpack.c.b16 %v1498, %v1488
  %v1979 = vpack.c.b16 %v1499, %v1489
  %v1980 = vpack.c.b16 %v1500, %v1490
  %v1981 = vpack.c.b16 %v1501, %v1491
  %v1982 = vpack.c.b16 %v1502, %v1492
  %v1983 = vpack.c.b16 %v1503, %v1493
  %v1984 = vpack.c.b16 %v1504, %v1494
  %v1985 = vpack.c.b16 %v1515, %v1505
  %v1986 = vpack.c.b16 %v1516, %v1506
  %v1987 = vpack.c.b16 %v1517, %v1507
  %v1988 = vpack.c.b16 %v1518, %v1508
  %v1989 = vpack.c.b16 %v1519, %v1509
  %v1990 = vpack.c.b16 %v1520, %v1510
  %v1991 = vpack.c.b16 %v1521, %v1511
  %v1992 = vpack.c.b16 %v1522, %v1512
  %v1993 = vpack.c.b16 %v1523, %v1513
  %v1994 = vpack.c.b16 %v1524, %v1514
  %v1995 = vpack.c.b16 %v1535, %v1525
  %v1996 = vpack.c.b16 %v1536, %v1526
  %v1997 = vpack.c.b16 %v1537, %v1527
  %v1998 = vpack.c.b16 %v1538, %v1528
  %v1999 = vpack.c.b16 %v1539, %v1529
  %v2000 = vpack.c.b16 %v1540, %v1530
  %v2001 = vpack.c.b16 %v1541, %v1531
  %v2002 = vpack.c.b16 %v1542, %v1532
  %v2003 = vpack.c.b16 %v1543, %v1533
  %v2004 = vpack.c.b16 %v1544, %v1534
  %v2005 = vpack.c.b16 %v1555, %v1545
  %v2006 = vpack.c.b16 %v1556, %v1546
  %v2007 = vpack.c.b16 %v1557, %v1547
  %v2008 = vpack.c.b16 %v1558, %v1548
  %v2009 = vpack.c.b16 %v1559, %v1549
  %v2010 = vpack.c.b16 %v1560, %v1550
  %v2011 = vpack.c.b16 %v1561, %v1551
  %v2012 = vpack.c.b16 %v1562, %v1552
  %v2013 = vpack.c.b16 %v1563, %v1553
  %v2014 = vpack.c.b16 %v1564, %v1554
  %v2015 = vpack.c.b16 %v1575, %v1565
  %v2016 = vpack.c.b16 %v1576, %v1566
  %v2017 = vpack.c.b16 %v1577, %v1567
  %v2018 = vpack.c.b16 %v1578, %v1568
  %v2019 = vpack.c.b16 %v1579, %v1569
  %v2020 = vpack.c.b16 %v1580, %v1570
  %v2021 = vpack.c.b16 %v1581, %v1571
  %v2022 = vpack.c.b16 %v1582, %v1572
  %v2023 = vpack.c.b16 %v1583, %v1573
  %v2024 = vpack.c.b16 %v1584, %v1574
  %v2025 = vpack.c.b16 %v1595, %v1585
  %v2026 = vpack.c.b16 %v1596, %v1586
  %v2027 = vpack.c.b16 %v1597, %v1587
  %v2028 = vpack.c.b16 %v1598, %v1588
  %v2029 = vpack.c.b16 %v1599, %v1589
  %v2030 = vpack.c.b16 %v1600, %v1590
  %v2031 = vpack.c.b16 %v1601, %v1591
  %v2032 = vpack.c.b16 %v1602, %v1592
  %v2033 = vpack.c.b16 %v1603, %v1593
  %v2034 = vpack.c.b16 %v1604, %v1594
  %v2035 = vpack.c.b16 %v1615, %v1605
  %v2036 = vpack.c.b16 %v1616, %v1606
  %v2037 = vpack.c.b16 %v1617, %v1607
  %v2038 = vpack.c.b16 %v1618, %v1608
  %v2039 = vpack.c.b16 %v1619, %v1609
  %v2040 = vpack.c.b16 %v1620, %v1610
  %v2041 = vpack.c.b16 %v1621, %v1611
  %v2042 = vpack.c.b16 %v1622, %v1612
  %v2043 = vpack.c.b16 %v1623, %v1613
  %v2044 = vpack.c.b16 %v1624, %v1614
  %v2045 = vpack.c.b16 %v1635, %v1625
  %v2046 = vpack.c.b16 %v1636, %v1626
  %v2047 = vpack.c.b16 %v1637, %v1627
  %v2048 = vpack.c.b16 %v1638, %v1628
  %v2049 = vpack.c.b16 %v1639, %v1629
  %v2050 = vpack.c.b16 %v1640, %v1630
  %v2051 = vpack.c.b16 %v1641, %v1631
  %v2052 = vpack.c.b16 %v1642, %v1632
  %v2053 = vpack.c.b16 %v1643, %v1633
  %v2054 = vpack.c.b16 %v1644, %v1634
  %v2055 = vpack.c.b16 %v1655, %v1645
  %v2056 = vpack.c.b16 %v1656, %v1646
  %v2057 = vpack.c.b16 %v1657, %v1647
  %v2058 = vpack.c.b16 %v1658, %v1648
  %v2059 = vpack.c.b16 %v1659, %v1649
  %v2060 = vpack.c.b16 %v1660, %v1650
  %v2061 = vpack.c.b16 %v1661, %v1651
  %v2062 = vpack.c.b16 %v1662, %v1652
  %v2063 = vpack.c.b16 %v1663, %v1653
  %v2064 = vpack.c.b16 %v1664, %v1654
  %v2065 = vpack.c.b16 %v1665, %v1665
  %v2066 = vpack.c.b16 %v1666, %v1666
  %v2067 = vpack.c.b16 %v1667, %v1667
  %v2068 = vpack.c.b16 %v1668, %v1668
  %v2069 = vpack.c.b16 %v1669, %v1669
  %v2070 = vpack.c.b16 %v1670, %v1670
  %v2071 = vpack.c.b16 %v1671, %v1671
  %v2072 = vpack.c.b16 %v1672, %v1672
  %v2073 = vpack.c.b16 %v1673, %v1673
  %v2074 = vpack.c.b16 %v1674, %v1674
  %vm2465 = vcmask 982016
  %v2467 = vsel %vm2465, %v485, 0
  %vm2469 = vcmask 1043456
  %v2471 = vsel %vm2469, %v2065, 0
  %v2474 = vsel %vm2469, %v2066, 0
  %v2477 = vsel %vm2469, %v2067, 0
  %v2480 = vsel %vm2469, %v2068, 0
  %v2483 = vsel %vm2469, %v2069, 0
  %v2486 = vsel %vm2469, %v2070, 0
  %v2489 = vsel %vm2469, %v2071, 0
  %v2492 = vsel %vm2469, %v2072, 0
  %v2495 = vsel %vm2469, %v2073, 0
  %v2498 = vsel %vm2469, %v2074, 0
  %2500 = vmatprep.subr.bf16.mxu0 %v1746
  %2501 = vmatpush1.bf16.msra.mxu0 %v1745
  %2502 = vmatprep.subr.bf16.mxu0 %v1736
  %2503 = vmatpush1.bf16.msra.mxu0 %v1735
  %2504 = vmatprep.subr.bf16.mxu0 %v1726
  %2505 = vmatpush1.bf16.msra.mxu0 %v1725
  %2506 = vmatprep.subr.bf16.mxu0 %v1716
  %2507 = vmatpush1.bf16.msra.mxu0 %v1715
  %2508 = vmatprep.subr.bf16.mxu0 %v1706
  %2509 = vmatpush1.bf16.msra.mxu0 %v1705
  %2510 = vmatprep.subr.bf16.mxu0 %v1696
  %2511 = vmatpush1.bf16.msra.mxu0 %v1695
  %2512 = vmatprep.subr.bf16.mxu0 %v1686
  %2513 = vmatpush1.bf16.msra.mxu0 %v1685
  %2514 = vmatprep.subr.bf16.mxu0 %v1676
  %2515 = vmatpush1.bf16.msra.mxu0 %v1675
  %2516 = vmatprep.subr.bf16.mxu0 %v1826
  %2517 = vmatpush2.bf16.msra.mxu0 %v1825
  %2518 = vmatprep.subr.bf16.mxu0 %v1816
  %2519 = vmatpush2.bf16.msra.mxu0 %v1815
  %2520 = vmatprep.subr.bf16.mxu0 %v1806
  %2521 = vmatpush2.bf16.msra.mxu0 %v1805
  %2522 = vmatprep.subr.bf16.mxu0 %v1796
  %2523 = vmatpush2.bf16.msra.mxu0 %v1795
  %2524 = vmatprep.subr.bf16.mxu0 %v1786
  %2525 = vmatpush2.bf16.msra.mxu0 %v1785
  %2526 = vmatprep.subr.bf16.mxu0 %v1776
  %2527 = vmatpush2.bf16.msra.mxu0 %v1775
  %2528 = vmatprep.subr.bf16.mxu0 %v1766
  %2529 = vmatpush2.bf16.msra.mxu0 %v1765
  %2530 = vmatprep.subr.bf16.mxu0 %v1756
  %2531 = vmatpush2.bf16.msra.mxu0 %v1755
  %2532 = vmatprep.mubr.bf16.mxu0 %v482
  %2533 = vmatmul.mubr.bf16.gmra.mxu0 %v481
  %v2534 = vpop.f32.mrf.mxu0
  %v2535 = vadd.f32 %v426, %v2534
  %v2536 = vpop.f32.mrf.mxu0
  %v2537 = vadd.f32 %v430, %v2536
  %v2538 = vpop.f32.mrf.mxu0
  %v2539 = vpop.f32.mrf.mxu0
  %2540 = vdwg.mxu0
  %2541 = vmatprep.subr.bf16.mxu0 %v1906
  %2542 = vmatpush1.bf16.msra.mxu0 %v1905
  %2543 = vmatprep.subr.bf16.mxu0 %v1896
  %2544 = vmatpush1.bf16.msra.mxu0 %v1895
  %2545 = vmatprep.subr.bf16.mxu0 %v1886
  %2546 = vmatpush1.bf16.msra.mxu0 %v1885
  %2547 = vmatprep.subr.bf16.mxu0 %v1876
  %2548 = vmatpush1.bf16.msra.mxu0 %v1875
  %2549 = vmatprep.subr.bf16.mxu0 %v1866
  %2550 = vmatpush1.bf16.msra.mxu0 %v1865
  %2551 = vmatprep.subr.bf16.mxu0 %v1856
  %2552 = vmatpush1.bf16.msra.mxu0 %v1855
  %2553 = vmatprep.subr.bf16.mxu0 %v1846
  %2554 = vmatpush1.bf16.msra.mxu0 %v1845
  %2555 = vmatprep.subr.bf16.mxu0 %v1836
  %2556 = vmatpush1.bf16.msra.mxu0 %v1835
  %2557 = vmatprep.subr.bf16.mxu0 %v1986
  %2558 = vmatpush2.bf16.msra.mxu0 %v1985
  %2559 = vmatprep.subr.bf16.mxu0 %v1976
  %2560 = vmatpush2.bf16.msra.mxu0 %v1975
  %2561 = vmatprep.subr.bf16.mxu0 %v1966
  %2562 = vmatpush2.bf16.msra.mxu0 %v1965
  %2563 = vmatprep.subr.bf16.mxu0 %v1956
  %2564 = vmatpush2.bf16.msra.mxu0 %v1955
  %2565 = vmatprep.subr.bf16.mxu0 %v1946
  %2566 = vmatpush2.bf16.msra.mxu0 %v1945
  %2567 = vmatprep.subr.bf16.mxu0 %v1936
  %2568 = vmatpush2.bf16.msra.mxu0 %v1935
  %2569 = vmatprep.subr.bf16.mxu0 %v1926
  %2570 = vmatpush2.bf16.msra.mxu0 %v1925
  %2571 = vmatprep.subr.bf16.mxu0 %v1916
  %2572 = vmatpush2.bf16.msra.mxu0 %v1915
  %2573 = vmatprep.mubr.bf16.mxu0 %v484
  %2574 = vmatmul.mubr.bf16.gmra.mxu0 %v483
  %v2575 = vpop.f32.mrf.mxu0
  %v2576 = vadd.f32 %v2535, %v2575
  %v2577 = vpop.f32.mrf.mxu0
  %v2578 = vadd.f32 %v2537, %v2577
  %v2579 = vpop.f32.mrf.mxu0
  %v2580 = vpop.f32.mrf.mxu0
  %2581 = vdwg.mxu0
  %2582 = vmatprep.subr.bf16.mxu0 %v2474
  %2583 = vmatpush1.bf16.msra.mxu0 %v2471
  %2584 = vmatprep.subr.bf16.mxu0 %v2056
  %2585 = vmatpush1.bf16.msra.mxu0 %v2055
  %2586 = vmatprep.subr.bf16.mxu0 %v2046
  %2587 = vmatpush1.bf16.msra.mxu0 %v2045
  %2588 = vmatprep.subr.bf16.mxu0 %v2036
  %2589 = vmatpush1.bf16.msra.mxu0 %v2035
  %2590 = vmatprep.subr.bf16.mxu0 %v2026
  %2591 = vmatpush1.bf16.msra.mxu0 %v2025
  %2592 = vmatprep.subr.bf16.mxu0 %v2016
  %2593 = vmatpush1.bf16.msra.mxu0 %v2015
  %2594 = vmatprep.subr.bf16.mxu0 %v2006
  %2595 = vmatpush1.bf16.msra.mxu0 %v2005
  %2596 = vmatprep.subr.bf16.mxu0 %v1996
  %2597 = vmatpush1.bf16.msra.mxu0 %v1995
  %2598 = vmatprep.subr.bf16.mxu0 0
  %2599 = vmatpush2.bf16.msra.mxu0 0
  %2600 = vmatprep.subr.bf16.mxu0 0
  %2601 = vmatpush2.bf16.msra.mxu0 0
  %2602 = vmatprep.subr.bf16.mxu0 0
  %2603 = vmatpush2.bf16.msra.mxu0 0
  %2604 = vmatprep.subr.bf16.mxu0 0
  %2605 = vmatpush2.bf16.msra.mxu0 0
  %2606 = vmatprep.subr.bf16.mxu0 0
  %2607 = vmatpush2.bf16.msra.mxu0 0
  %2608 = vmatprep.subr.bf16.mxu0 0
  %2609 = vmatpush2.bf16.msra.mxu0 0
  %2610 = vmatprep.subr.bf16.mxu0 0
  %2611 = vmatpush2.bf16.msra.mxu0 0
  %2612 = vmatprep.subr.bf16.mxu0 0
  %2613 = vmatpush2.bf16.msra.mxu0 0
  %2614 = vmatprep.mubr.bf16.mxu0 0
  %2615 = vmatmul.mubr.bf16.gmra.mxu0 %v2467
  %v2616 = vpop.f32.mrf.mxu0
  %v2617 = vadd.f32 %v2576, %v2616
  %v2618 = vpop.f32.mrf.mxu0
  %v2619 = vadd.f32 %v2578, %v2618
  %v2620 = vpop.f32.mrf.mxu0
  %v2621 = vpop.f32.mrf.mxu0
  %2622 = vdwg.mxu0
  %2623 = vmatprep.subr.bf16.mxu0 %v1748
  %2624 = vmatpush1.bf16.msra.mxu0 %v1747
  %2625 = vmatprep.subr.bf16.mxu0 %v1738
  %2626 = vmatpush1.bf16.msra.mxu0 %v1737
  %2627 = vmatprep.subr.bf16.mxu0 %v1728
  %2628 = vmatpush1.bf16.msra.mxu0 %v1727
  %2629 = vmatprep.subr.bf16.mxu0 %v1718
  %2630 = vmatpush1.bf16.msra.mxu0 %v1717
  %2631 = vmatprep.subr.bf16.mxu0 %v1708
  %2632 = vmatpush1.bf16.msra.mxu0 %v1707
  %2633 = vmatprep.subr.bf16.mxu0 %v1698
  %2634 = vmatpush1.bf16.msra.mxu0 %v1697
  %2635 = vmatprep.subr.bf16.mxu0 %v1688
  %2636 = vmatpush1.bf16.msra.mxu0 %v1687
  %2637 = vmatprep.subr.bf16.mxu0 %v1678
  %2638 = vmatpush1.bf16.msra.mxu0 %v1677
  %2639 = vmatprep.subr.bf16.mxu0 %v1828
  %2640 = vmatpush2.bf16.msra.mxu0 %v1827
  %2641 = vmatprep.subr.bf16.mxu0 %v1818
  %2642 = vmatpush2.bf16.msra.mxu0 %v1817
  %2643 = vmatprep.subr.bf16.mxu0 %v1808
  %2644 = vmatpush2.bf16.msra.mxu0 %v1807
  %2645 = vmatprep.subr.bf16.mxu0 %v1798
  %2646 = vmatpush2.bf16.msra.mxu0 %v1797
  %2647 = vmatprep.subr.bf16.mxu0 %v1788
  %2648 = vmatpush2.bf16.msra.mxu0 %v1787
  %2649 = vmatprep.subr.bf16.mxu0 %v1778
  %2650 = vmatpush2.bf16.msra.mxu0 %v1777
  %2651 = vmatprep.subr.bf16.mxu0 %v1768
  %2652 = vmatpush2.bf16.msra.mxu0 %v1767
  %2653 = vmatprep.subr.bf16.mxu0 %v1758
  %2654 = vmatpush2.bf16.msra.mxu0 %v1757
  %2655 = vmatprep.mubr.bf16.mxu0 %v482
  %2656 = vmatmul.mubr.bf16.gmra.mxu0 %v481
  %v2657 = vpop.f32.mrf.mxu0
  %v2658 = vadd.f32 %v434, %v2657
  %v2659 = vpop.f32.mrf.mxu0
  %v2660 = vadd.f32 %v438, %v2659
  %v2661 = vpop.f32.mrf.mxu0
  %v2662 = vpop.f32.mrf.mxu0
  %2663 = vdwg.mxu0
  %2664 = vmatprep.subr.bf16.mxu0 %v1908
  %2665 = vmatpush1.bf16.msra.mxu0 %v1907
  %2666 = vmatprep.subr.bf16.mxu0 %v1898
  %2667 = vmatpush1.bf16.msra.mxu0 %v1897
  %2668 = vmatprep.subr.bf16.mxu0 %v1888
  %2669 = vmatpush1.bf16.msra.mxu0 %v1887
  %2670 = vmatprep.subr.bf16.mxu0 %v1878
  %2671 = vmatpush1.bf16.msra.mxu0 %v1877
  %2672 = vmatprep.subr.bf16.mxu0 %v1868
  %2673 = vmatpush1.bf16.msra.mxu0 %v1867
  %2674 = vmatprep.subr.bf16.mxu0 %v1858
  %2675 = vmatpush1.bf16.msra.mxu0 %v1857
  %2676 = vmatprep.subr.bf16.mxu0 %v1848
  %2677 = vmatpush1.bf16.msra.mxu0 %v1847
  %2678 = vmatprep.subr.bf16.mxu0 %v1838
  %2679 = vmatpush1.bf16.msra.mxu0 %v1837
  %2680 = vmatprep.subr.bf16.mxu0 %v1988
  %2681 = vmatpush2.bf16.msra.mxu0 %v1987
  %2682 = vmatprep.subr.bf16.mxu0 %v1978
  %2683 = vmatpush2.bf16.msra.mxu0 %v1977
  %2684 = vmatprep.subr.bf16.mxu0 %v1968
  %2685 = vmatpush2.bf16.msra.mxu0 %v1967
  %2686 = vmatprep.subr.bf16.mxu0 %v1958
  %2687 = vmatpush2.bf16.msra.mxu0 %v1957
  %2688 = vmatprep.subr.bf16.mxu0 %v1948
  %2689 = vmatpush2.bf16.msra.mxu0 %v1947
  %2690 = vmatprep.subr.bf16.mxu0 %v1938
  %2691 = vmatpush2.bf16.msra.mxu0 %v1937
  %2692 = vmatprep.subr.bf16.mxu0 %v1928
  %2693 = vmatpush2.bf16.msra.mxu0 %v1927
  %2694 = vmatprep.subr.bf16.mxu0 %v1918
  %2695 = vmatpush2.bf16.msra.mxu0 %v1917
  %2696 = vmatprep.mubr.bf16.mxu0 %v484
  %2697 = vmatmul.mubr.bf16.gmra.mxu0 %v483
  %v2698 = vpop.f32.mrf.mxu0
  %v2699 = vadd.f32 %v2658, %v2698
  %v2700 = vpop.f32.mrf.mxu0
  %v2701 = vadd.f32 %v2660, %v2700
  %v2702 = vpop.f32.mrf.mxu0
  %v2703 = vpop.f32.mrf.mxu0
  %2704 = vdwg.mxu0
  %2705 = vmatprep.subr.bf16.mxu0 %v2480
  %2706 = vmatpush1.bf16.msra.mxu0 %v2477
  %2707 = vmatprep.subr.bf16.mxu0 %v2058
  %2708 = vmatpush1.bf16.msra.mxu0 %v2057
  %2709 = vmatprep.subr.bf16.mxu0 %v2048
  %2710 = vmatpush1.bf16.msra.mxu0 %v2047
  %2711 = vmatprep.subr.bf16.mxu0 %v2038
  %2712 = vmatpush1.bf16.msra.mxu0 %v2037
  %2713 = vmatprep.subr.bf16.mxu0 %v2028
  %2714 = vmatpush1.bf16.msra.mxu0 %v2027
  %2715 = vmatprep.subr.bf16.mxu0 %v2018
  %2716 = vmatpush1.bf16.msra.mxu0 %v2017
  %2717 = vmatprep.subr.bf16.mxu0 %v2008
  %2718 = vmatpush1.bf16.msra.mxu0 %v2007
  %2719 = vmatprep.subr.bf16.mxu0 %v1998
  %2720 = vmatpush1.bf16.msra.mxu0 %v1997
  %2721 = vmatprep.subr.bf16.mxu0 0
  %2722 = vmatpush2.bf16.msra.mxu0 0
  %2723 = vmatprep.subr.bf16.mxu0 0
  %2724 = vmatpush2.bf16.msra.mxu0 0
  %2725 = vmatprep.subr.bf16.mxu0 0
  %2726 = vmatpush2.bf16.msra.mxu0 0
  %2727 = vmatprep.subr.bf16.mxu0 0
  %2728 = vmatpush2.bf16.msra.mxu0 0
  %2729 = vmatprep.subr.bf16.mxu0 0
  %2730 = vmatpush2.bf16.msra.mxu0 0
  %2731 = vmatprep.subr.bf16.mxu0 0
  %2732 = vmatpush2.bf16.msra.mxu0 0
  %2733 = vmatprep.subr.bf16.mxu0 0
  %2734 = vmatpush2.bf16.msra.mxu0 0
  %2735 = vmatprep.subr.bf16.mxu0 0
  %2736 = vmatpush2.bf16.msra.mxu0 0
  %2737 = vmatprep.mubr.bf16.mxu0 0
  %2738 = vmatmul.mubr.bf16.gmra.mxu0 %v2467
  %v2739 = vpop.f32.mrf.mxu0
  %v2740 = vadd.f32 %v2699, %v2739
  %v2741 = vpop.f32.mrf.mxu0
  %v2742 = vadd.f32 %v2701, %v2741
  %v2743 = vpop.f32.mrf.mxu0
  %v2744 = vpop.f32.mrf.mxu0
  %2745 = vdwg.mxu0
  %2746 = vmatprep.subr.bf16.mxu0 %v1750
  %2747 = vmatpush1.bf16.msra.mxu0 %v1749
  %2748 = vmatprep.subr.bf16.mxu0 %v1740
  %2749 = vmatpush1.bf16.msra.mxu0 %v1739
  %2750 = vmatprep.subr.bf16.mxu0 %v1730
  %2751 = vmatpush1.bf16.msra.mxu0 %v1729
  %2752 = vmatprep.subr.bf16.mxu0 %v1720
  %2753 = vmatpush1.bf16.msra.mxu0 %v1719
  %2754 = vmatprep.subr.bf16.mxu0 %v1710
  %2755 = vmatpush1.bf16.msra.mxu0 %v1709
  %2756 = vmatprep.subr.bf16.mxu0 %v1700
  %2757 = vmatpush1.bf16.msra.mxu0 %v1699
  %2758 = vmatprep.subr.bf16.mxu0 %v1690
  %2759 = vmatpush1.bf16.msra.mxu0 %v1689
  %2760 = vmatprep.subr.bf16.mxu0 %v1680
  %2761 = vmatpush1.bf16.msra.mxu0 %v1679
  %2762 = vmatprep.subr.bf16.mxu0 %v1830
  %2763 = vmatpush2.bf16.msra.mxu0 %v1829
  %2764 = vmatprep.subr.bf16.mxu0 %v1820
  %2765 = vmatpush2.bf16.msra.mxu0 %v1819
  %2766 = vmatprep.subr.bf16.mxu0 %v1810
  %2767 = vmatpush2.bf16.msra.mxu0 %v1809
  %2768 = vmatprep.subr.bf16.mxu0 %v1800
  %2769 = vmatpush2.bf16.msra.mxu0 %v1799
  %2770 = vmatprep.subr.bf16.mxu0 %v1790
  %2771 = vmatpush2.bf16.msra.mxu0 %v1789
  %2772 = vmatprep.subr.bf16.mxu0 %v1780
  %2773 = vmatpush2.bf16.msra.mxu0 %v1779
  %2774 = vmatprep.subr.bf16.mxu0 %v1770
  %2775 = vmatpush2.bf16.msra.mxu0 %v1769
  %2776 = vmatprep.subr.bf16.mxu0 %v1760
  %2777 = vmatpush2.bf16.msra.mxu0 %v1759
  %2778 = vmatprep.mubr.bf16.mxu0 %v482
  %2779 = vmatmul.mubr.bf16.gmra.mxu0 %v481
  %v2780 = vpop.f32.mrf.mxu0
  %v2781 = vadd.f32 %v442, %v2780
  %v2782 = vpop.f32.mrf.mxu0
  %v2783 = vadd.f32 %v446, %v2782
  %v2784 = vpop.f32.mrf.mxu0
  %v2785 = vpop.f32.mrf.mxu0
  %2786 = vdwg.mxu0
  %2787 = vmatprep.subr.bf16.mxu0 %v1910
  %2788 = vmatpush1.bf16.msra.mxu0 %v1909
  %2789 = vmatprep.subr.bf16.mxu0 %v1900
  %2790 = vmatpush1.bf16.msra.mxu0 %v1899
  %2791 = vmatprep.subr.bf16.mxu0 %v1890
  %2792 = vmatpush1.bf16.msra.mxu0 %v1889
  %2793 = vmatprep.subr.bf16.mxu0 %v1880
  %2794 = vmatpush1.bf16.msra.mxu0 %v1879
  %2795 = vmatprep.subr.bf16.mxu0 %v1870
  %2796 = vmatpush1.bf16.msra.mxu0 %v1869
  %2797 = vmatprep.subr.bf16.mxu0 %v1860
  %2798 = vmatpush1.bf16.msra.mxu0 %v1859
  %2799 = vmatprep.subr.bf16.mxu0 %v1850
  %2800 = vmatpush1.bf16.msra.mxu0 %v1849
  %2801 = vmatprep.subr.bf16.mxu0 %v1840
  %2802 = vmatpush1.bf16.msra.mxu0 %v1839
  %2803 = vmatprep.subr.bf16.mxu0 %v1990
  %2804 = vmatpush2.bf16.msra.mxu0 %v1989
  %2805 = vmatprep.subr.bf16.mxu0 %v1980
  %2806 = vmatpush2.bf16.msra.mxu0 %v1979
  %2807 = vmatprep.subr.bf16.mxu0 %v1970
  %2808 = vmatpush2.bf16.msra.mxu0 %v1969
  %2809 = vmatprep.subr.bf16.mxu0 %v1960
  %2810 = vmatpush2.bf16.msra.mxu0 %v1959
  %2811 = vmatprep.subr.bf16.mxu0 %v1950
  %2812 = vmatpush2.bf16.msra.mxu0 %v1949
  %2813 = vmatprep.subr.bf16.mxu0 %v1940
  %2814 = vmatpush2.bf16.msra.mxu0 %v1939
  %2815 = vmatprep.subr.bf16.mxu0 %v1930
  %2816 = vmatpush2.bf16.msra.mxu0 %v1929
  %2817 = vmatprep.subr.bf16.mxu0 %v1920
  %2818 = vmatpush2.bf16.msra.mxu0 %v1919
  %2819 = vmatprep.mubr.bf16.mxu0 %v484
  %2820 = vmatmul.mubr.bf16.gmra.mxu0 %v483
  %v2821 = vpop.f32.mrf.mxu0
  %v2822 = vadd.f32 %v2781, %v2821
  %v2823 = vpop.f32.mrf.mxu0
  %v2824 = vadd.f32 %v2783, %v2823
  %v2825 = vpop.f32.mrf.mxu0
  %v2826 = vpop.f32.mrf.mxu0
  %2827 = vdwg.mxu0
  %2828 = vmatprep.subr.bf16.mxu0 %v2486
  %2829 = vmatpush1.bf16.msra.mxu0 %v2483
  %2830 = vmatprep.subr.bf16.mxu0 %v2060
  %2831 = vmatpush1.bf16.msra.mxu0 %v2059
  %2832 = vmatprep.subr.bf16.mxu0 %v2050
  %2833 = vmatpush1.bf16.msra.mxu0 %v2049
  %2834 = vmatprep.subr.bf16.mxu0 %v2040
  %2835 = vmatpush1.bf16.msra.mxu0 %v2039
  %2836 = vmatprep.subr.bf16.mxu0 %v2030
  %2837 = vmatpush1.bf16.msra.mxu0 %v2029
  %2838 = vmatprep.subr.bf16.mxu0 %v2020
  %2839 = vmatpush1.bf16.msra.mxu0 %v2019
  %2840 = vmatprep.subr.bf16.mxu0 %v2010
  %2841 = vmatpush1.bf16.msra.mxu0 %v2009
  %2842 = vmatprep.subr.bf16.mxu0 %v2000
  %2843 = vmatpush1.bf16.msra.mxu0 %v1999
  %2844 = vmatprep.subr.bf16.mxu0 0
  %2845 = vmatpush2.bf16.msra.mxu0 0
  %2846 = vmatprep.subr.bf16.mxu0 0
  %2847 = vmatpush2.bf16.msra.mxu0 0
  %2848 = vmatprep.subr.bf16.mxu0 0
  %2849 = vmatpush2.bf16.msra.mxu0 0
  %2850 = vmatprep.subr.bf16.mxu0 0
  %2851 = vmatpush2.bf16.msra.mxu0 0
  %2852 = vmatprep.subr.bf16.mxu0 0
  %2853 = vmatpush2.bf16.msra.mxu0 0
  %2854 = vmatprep.subr.bf16.mxu0 0
  %2855 = vmatpush2.bf16.msra.mxu0 0
  %2856 = vmatprep.subr.bf16.mxu0 0
  %2857 = vmatpush2.bf16.msra.mxu0 0
  %2858 = vmatprep.subr.bf16.mxu0 0
  %2859 = vmatpush2.bf16.msra.mxu0 0
  %2860 = vmatprep.mubr.bf16.mxu0 0
  %2861 = vmatmul.mubr.bf16.gmra.mxu0 %v2467
  %v2862 = vpop.f32.mrf.mxu0
  %v2863 = vadd.f32 %v2822, %v2862
  %v2864 = vpop.f32.mrf.mxu0
  %v2865 = vadd.f32 %v2824, %v2864
  %v2866 = vpop.f32.mrf.mxu0
  %v2867 = vpop.f32.mrf.mxu0
  %2868 = vdwg.mxu0
  %2869 = vmatprep.subr.bf16.mxu0 %v1752
  %2870 = vmatpush1.bf16.msra.mxu0 %v1751
  %2871 = vmatprep.subr.bf16.mxu0 %v1742
  %2872 = vmatpush1.bf16.msra.mxu0 %v1741
  %2873 = vmatprep.subr.bf16.mxu0 %v1732
  %2874 = vmatpush1.bf16.msra.mxu0 %v1731
  %2875 = vmatprep.subr.bf16.mxu0 %v1722
  %2876 = vmatpush1.bf16.msra.mxu0 %v1721
  %2877 = vmatprep.subr.bf16.mxu0 %v1712
  %2878 = vmatpush1.bf16.msra.mxu0 %v1711
  %2879 = vmatprep.subr.bf16.mxu0 %v1702
  %2880 = vmatpush1.bf16.msra.mxu0 %v1701
  %2881 = vmatprep.subr.bf16.mxu0 %v1692
  %2882 = vmatpush1.bf16.msra.mxu0 %v1691
  %2883 = vmatprep.subr.bf16.mxu0 %v1682
  %2884 = vmatpush1.bf16.msra.mxu0 %v1681
  %2885 = vmatprep.subr.bf16.mxu0 %v1832
  %2886 = vmatpush2.bf16.msra.mxu0 %v1831
  %2887 = vmatprep.subr.bf16.mxu0 %v1822
  %2888 = vmatpush2.bf16.msra.mxu0 %v1821
  %2889 = vmatprep.subr.bf16.mxu0 %v1812
  %2890 = vmatpush2.bf16.msra.mxu0 %v1811
  %2891 = vmatprep.subr.bf16.mxu0 %v1802
  %2892 = vmatpush2.bf16.msra.mxu0 %v1801
  %2893 = vmatprep.subr.bf16.mxu0 %v1792
  %2894 = vmatpush2.bf16.msra.mxu0 %v1791
  %2895 = vmatprep.subr.bf16.mxu0 %v1782
  %2896 = vmatpush2.bf16.msra.mxu0 %v1781
  %2897 = vmatprep.subr.bf16.mxu0 %v1772
  %2898 = vmatpush2.bf16.msra.mxu0 %v1771
  %2899 = vmatprep.subr.bf16.mxu0 %v1762
  %2900 = vmatpush2.bf16.msra.mxu0 %v1761
  %2901 = vmatprep.mubr.bf16.mxu0 %v482
  %2902 = vmatmul.mubr.bf16.gmra.mxu0 %v481
  %v2903 = vpop.f32.mrf.mxu0
  %v2904 = vadd.f32 %v450, %v2903
  %v2905 = vpop.f32.mrf.mxu0
  %v2906 = vadd.f32 %v454, %v2905
  %v2907 = vpop.f32.mrf.mxu0
  %v2908 = vpop.f32.mrf.mxu0
  %2909 = vdwg.mxu0
  %2910 = vmatprep.subr.bf16.mxu0 %v1912
  %2911 = vmatpush1.bf16.msra.mxu0 %v1911
  %2912 = vmatprep.subr.bf16.mxu0 %v1902
  %2913 = vmatpush1.bf16.msra.mxu0 %v1901
  %2914 = vmatprep.subr.bf16.mxu0 %v1892
  %2915 = vmatpush1.bf16.msra.mxu0 %v1891
  %2916 = vmatprep.subr.bf16.mxu0 %v1882
  %2917 = vmatpush1.bf16.msra.mxu0 %v1881
  %2918 = vmatprep.subr.bf16.mxu0 %v1872
  %2919 = vmatpush1.bf16.msra.mxu0 %v1871
  %2920 = vmatprep.subr.bf16.mxu0 %v1862
  %2921 = vmatpush1.bf16.msra.mxu0 %v1861
  %2922 = vmatprep.subr.bf16.mxu0 %v1852
  %2923 = vmatpush1.bf16.msra.mxu0 %v1851
  %2924 = vmatprep.subr.bf16.mxu0 %v1842
  %2925 = vmatpush1.bf16.msra.mxu0 %v1841
  %2926 = vmatprep.subr.bf16.mxu0 %v1992
  %2927 = vmatpush2.bf16.msra.mxu0 %v1991
  %2928 = vmatprep.subr.bf16.mxu0 %v1982
  %2929 = vmatpush2.bf16.msra.mxu0 %v1981
  %2930 = vmatprep.subr.bf16.mxu0 %v1972
  %2931 = vmatpush2.bf16.msra.mxu0 %v1971
  %2932 = vmatprep.subr.bf16.mxu0 %v1962
  %2933 = vmatpush2.bf16.msra.mxu0 %v1961
  %2934 = vmatprep.subr.bf16.mxu0 %v1952
  %2935 = vmatpush2.bf16.msra.mxu0 %v1951
  %2936 = vmatprep.subr.bf16.mxu0 %v1942
  %2937 = vmatpush2.bf16.msra.mxu0 %v1941
  %2938 = vmatprep.subr.bf16.mxu0 %v1932
  %2939 = vmatpush2.bf16.msra.mxu0 %v1931
  %2940 = vmatprep.subr.bf16.mxu0 %v1922
  %2941 = vmatpush2.bf16.msra.mxu0 %v1921
  %2942 = vmatprep.mubr.bf16.mxu0 %v484
  %2943 = vmatmul.mubr.bf16.gmra.mxu0 %v483
  %v2944 = vpop.f32.mrf.mxu0
  %v2945 = vadd.f32 %v2904, %v2944
  %v2946 = vpop.f32.mrf.mxu0
  %v2947 = vadd.f32 %v2906, %v2946
  %v2948 = vpop.f32.mrf.mxu0
  %v2949 = vpop.f32.mrf.mxu0
  %2950 = vdwg.mxu0
  %2951 = vmatprep.subr.bf16.mxu0 %v2492
  %2952 = vmatpush1.bf16.msra.mxu0 %v2489
  %2953 = vmatprep.subr.bf16.mxu0 %v2062
  %2954 = vmatpush1.bf16.msra.mxu0 %v2061
  %2955 = vmatprep.subr.bf16.mxu0 %v2052
  %2956 = vmatpush1.bf16.msra.mxu0 %v2051
  %2957 = vmatprep.subr.bf16.mxu0 %v2042
  %2958 = vmatpush1.bf16.msra.mxu0 %v2041
  %2959 = vmatprep.subr.bf16.mxu0 %v2032
  %2960 = vmatpush1.bf16.msra.mxu0 %v2031
  %2961 = vmatprep.subr.bf16.mxu0 %v2022
  %2962 = vmatpush1.bf16.msra.mxu0 %v2021
  %2963 = vmatprep.subr.bf16.mxu0 %v2012
  %2964 = vmatpush1.bf16.msra.mxu0 %v2011
  %2965 = vmatprep.subr.bf16.mxu0 %v2002
  %2966 = vmatpush1.bf16.msra.mxu0 %v2001
  %2967 = vmatprep.subr.bf16.mxu0 0
  %2968 = vmatpush2.bf16.msra.mxu0 0
  %2969 = vmatprep.subr.bf16.mxu0 0
  %2970 = vmatpush2.bf16.msra.mxu0 0
  %2971 = vmatprep.subr.bf16.mxu0 0
  %2972 = vmatpush2.bf16.msra.mxu0 0
  %2973 = vmatprep.subr.bf16.mxu0 0
  %2974 = vmatpush2.bf16.msra.mxu0 0
  %2975 = vmatprep.subr.bf16.mxu0 0
  %2976 = vmatpush2.bf16.msra.mxu0 0
  %2977 = vmatprep.subr.bf16.mxu0 0
  %2978 = vmatpush2.bf16.msra.mxu0 0
  %2979 = vmatprep.subr.bf16.mxu0 0
  %2980 = vmatpush2.bf16.msra.mxu0 0
  %2981 = vmatprep.subr.bf16.mxu0 0
  %2982 = vmatpush2.bf16.msra.mxu0 0
  %2983 = vmatprep.mubr.bf16.mxu0 0
  %2984 = vmatmul.mubr.bf16.gmra.mxu0 %v2467
  %v2985 = vpop.f32.mrf.mxu0
  %v2986 = vadd.f32 %v2945, %v2985
  %v2987 = vpop.f32.mrf.mxu0
  %v2988 = vadd.f32 %v2947, %v2987
  %v2989 = vpop.f32.mrf.mxu0
  %v2990 = vpop.f32.mrf.mxu0
  %2991 = vdwg.mxu0
  %2992 = vmatprep.subr.bf16.mxu0 %v1754
  %2993 = vmatpush1.bf16.msra.mxu0 %v1753
  %2994 = vmatprep.subr.bf16.mxu0 %v1744
  %2995 = vmatpush1.bf16.msra.mxu0 %v1743
  %2996 = vmatprep.subr.bf16.mxu0 %v1734
  %2997 = vmatpush1.bf16.msra.mxu0 %v1733
  %2998 = vmatprep.subr.bf16.mxu0 %v1724
  %2999 = vmatpush1.bf16.msra.mxu0 %v1723
  %3000 = vmatprep.subr.bf16.mxu0 %v1714
  %3001 = vmatpush1.bf16.msra.mxu0 %v1713
  %3002 = vmatprep.subr.bf16.mxu0 %v1704
  %3003 = vmatpush1.bf16.msra.mxu0 %v1703
  %3004 = vmatprep.subr.bf16.mxu0 %v1694
  %3005 = vmatpush1.bf16.msra.mxu0 %v1693
  %3006 = vmatprep.subr.bf16.mxu0 %v1684
  %3007 = vmatpush1.bf16.msra.mxu0 %v1683
  %3008 = vmatprep.subr.bf16.mxu0 %v1834
  %3009 = vmatpush2.bf16.msra.mxu0 %v1833
  %3010 = vmatprep.subr.bf16.mxu0 %v1824
  %3011 = vmatpush2.bf16.msra.mxu0 %v1823
  %3012 = vmatprep.subr.bf16.mxu0 %v1814
  %3013 = vmatpush2.bf16.msra.mxu0 %v1813
  %3014 = vmatprep.subr.bf16.mxu0 %v1804
  %3015 = vmatpush2.bf16.msra.mxu0 %v1803
  %3016 = vmatprep.subr.bf16.mxu0 %v1794
  %3017 = vmatpush2.bf16.msra.mxu0 %v1793
  %3018 = vmatprep.subr.bf16.mxu0 %v1784
  %3019 = vmatpush2.bf16.msra.mxu0 %v1783
  %3020 = vmatprep.subr.bf16.mxu0 %v1774
  %3021 = vmatpush2.bf16.msra.mxu0 %v1773
  %3022 = vmatprep.subr.bf16.mxu0 %v1764
  %3023 = vmatpush2.bf16.msra.mxu0 %v1763
  %3024 = vmatprep.mubr.bf16.mxu0 %v482
  %3025 = vmatmul.mubr.bf16.gmra.mxu0 %v481
  %v3026 = vpop.f32.mrf.mxu0
  %v3027 = vadd.f32 %v458, %v3026
  %v3028 = vpop.f32.mrf.mxu0
  %v3029 = vadd.f32 %v462, %v3028
  %v3030 = vpop.f32.mrf.mxu0
  %v3031 = vpop.f32.mrf.mxu0
  %3032 = vdwg.mxu0
  %3033 = vmatprep.subr.bf16.mxu0 %v1914
  %3034 = vmatpush1.bf16.msra.mxu0 %v1913
  %3035 = vmatprep.subr.bf16.mxu0 %v1904
  %3036 = vmatpush1.bf16.msra.mxu0 %v1903
  %3037 = vmatprep.subr.bf16.mxu0 %v1894
  %3038 = vmatpush1.bf16.msra.mxu0 %v1893
  %3039 = vmatprep.subr.bf16.mxu0 %v1884
  %3040 = vmatpush1.bf16.msra.mxu0 %v1883
  %3041 = vmatprep.subr.bf16.mxu0 %v1874
  %3042 = vmatpush1.bf16.msra.mxu0 %v1873
  %3043 = vmatprep.subr.bf16.mxu0 %v1864
  %3044 = vmatpush1.bf16.msra.mxu0 %v1863
  %3045 = vmatprep.subr.bf16.mxu0 %v1854
  %3046 = vmatpush1.bf16.msra.mxu0 %v1853
  %3047 = vmatprep.subr.bf16.mxu0 %v1844
  %3048 = vmatpush1.bf16.msra.mxu0 %v1843
  %3049 = vmatprep.subr.bf16.mxu0 %v1994
  %3050 = vmatpush2.bf16.msra.mxu0 %v1993
  %3051 = vmatprep.subr.bf16.mxu0 %v1984
  %3052 = vmatpush2.bf16.msra.mxu0 %v1983
  %3053 = vmatprep.subr.bf16.mxu0 %v1974
  %3054 = vmatpush2.bf16.msra.mxu0 %v1973
  %3055 = vmatprep.subr.bf16.mxu0 %v1964
  %3056 = vmatpush2.bf16.msra.mxu0 %v1963
  %3057 = vmatprep.subr.bf16.mxu0 %v1954
  %3058 = vmatpush2.bf16.msra.mxu0 %v1953
  %3059 = vmatprep.subr.bf16.mxu0 %v1944
  %3060 = vmatpush2.bf16.msra.mxu0 %v1943
  %3061 = vmatprep.subr.bf16.mxu0 %v1934
  %3062 = vmatpush2.bf16.msra.mxu0 %v1933
  %3063 = vmatprep.subr.bf16.mxu0 %v1924
  %3064 = vmatpush2.bf16.msra.mxu0 %v1923
  %3065 = vmatprep.mubr.bf16.mxu0 %v484
  %3066 = vmatmul.mubr.bf16.gmra.mxu0 %v483
  %v3067 = vpop.f32.mrf.mxu0
  %v3068 = vadd.f32 %v3027, %v3067
  %v3069 = vpop.f32.mrf.mxu0
  %v3070 = vadd.f32 %v3029, %v3069
  %v3071 = vpop.f32.mrf.mxu0
  %v3072 = vpop.f32.mrf.mxu0
  %3073 = vdwg.mxu0
  %3074 = vmatprep.subr.bf16.mxu0 %v2498
  %3075 = vmatpush1.bf16.msra.mxu0 %v2495
  %3076 = vmatprep.subr.bf16.mxu0 %v2064
  %3077 = vmatpush1.bf16.msra.mxu0 %v2063
  %3078 = vmatprep.subr.bf16.mxu0 %v2054
  %3079 = vmatpush1.bf16.msra.mxu0 %v2053
  %3080 = vmatprep.subr.bf16.mxu0 %v2044
  %3081 = vmatpush1.bf16.msra.mxu0 %v2043
  %3082 = vmatprep.subr.bf16.mxu0 %v2034
  %3083 = vmatpush1.bf16.msra.mxu0 %v2033
  %3084 = vmatprep.subr.bf16.mxu0 %v2024
  %3085 = vmatpush1.bf16.msra.mxu0 %v2023
  %3086 = vmatprep.subr.bf16.mxu0 %v2014
  %3087 = vmatpush1.bf16.msra.mxu0 %v2013
  %3088 = vmatprep.subr.bf16.mxu0 %v2004
  %3089 = vmatpush1.bf16.msra.mxu0 %v2003
  %3090 = vmatprep.subr.bf16.mxu0 0
  %3091 = vmatpush2.bf16.msra.mxu0 0
  %3092 = vmatprep.subr.bf16.mxu0 0
  %3093 = vmatpush2.bf16.msra.mxu0 0
  %3094 = vmatprep.subr.bf16.mxu0 0
  %3095 = vmatpush2.bf16.msra.mxu0 0
  %3096 = vmatprep.subr.bf16.mxu0 0
  %3097 = vmatpush2.bf16.msra.mxu0 0
  %3098 = vmatprep.subr.bf16.mxu0 0
  %3099 = vmatpush2.bf16.msra.mxu0 0
  %3100 = vmatprep.subr.bf16.mxu0 0
  %3101 = vmatpush2.bf16.msra.mxu0 0
  %3102 = vmatprep.subr.bf16.mxu0 0
  %3103 = vmatpush2.bf16.msra.mxu0 0
  %3104 = vmatprep.subr.bf16.mxu0 0
  %3105 = vmatpush2.bf16.msra.mxu0 0
  %3106 = vmatprep.mubr.bf16.mxu0 0
  %3107 = vmatmul.mubr.bf16.gmra.mxu0 %v2467
  %v3108 = vpop.f32.mrf.mxu0
  %v3109 = vadd.f32 %v3068, %v3108
  %v3110 = vpop.f32.mrf.mxu0
  %v3111 = vadd.f32 %v3070, %v3110
  %v3112 = vpop.f32.mrf.mxu0
  %v3113 = vpop.f32.mrf.mxu0
  %3114 = vdwg.mxu0
  %v3115 = vtanh.pop %v2617
  %v3116 = vtanh.pop %v2619
  %v3117 = vtanh.pop %v2740
  %v3118 = vtanh.pop %v2742
  %v3119 = vtanh.pop %v2863
  %v3120 = vtanh.pop %v2865
  %v3121 = vtanh.pop %v2986
  %v3122 = vtanh.pop %v2988
  %v3123 = vtanh.pop %v3109
  %v3124 = vtanh.pop %v3111
  %v3125 = vpack.c.bf16 %v3115, %v3115
  %v3126 = vpack.c.bf16 %v3116, %v3116
  %v3127 = vpack.c.bf16 %v3117, %v3117
  %v3128 = vpack.c.bf16 %v3118, %v3118
  %v3129 = vpack.c.bf16 %v3119, %v3119
  %v3130 = vpack.c.bf16 %v3120, %v3120
  %v3131 = vpack.c.bf16 %v3121, %v3121
  %v3132 = vpack.c.bf16 %v3122, %v3122
  %v3133 = vpack.c.bf16 %v3123, %v3123
  %v3134 = vpack.c.bf16 %v3124, %v3124
  %v3135 = vld [vmem:[%s3] sm:$0xf]
  %v3136 = vld [vmem:[%s3 + $0x4] sm:$0xf]
  %v3137 = vld [vmem:[%s3 + $0x8] sm:$0xf]
  %v3138 = vld [vmem:[%s3 + $0xc] sm:$0xf]
  %v3139 = vld [vmem:[%s3 + $0x10] sm:$0xf]
  %v3140 = vld [vmem:[%s3 + $0x14] sm:$0xf]
  %v3141 = vld [vmem:[%s3 + $0x18] sm:$0xf]
  %v3142 = vld [vmem:[%s3 + $0x1c] sm:$0xf]
  %v3143 = vld [vmem:[%s3 + $0x20] sm:$0xf]
  %v3144 = vld [vmem:[%s3 + $0x24] sm:$0xf]
  %v3145 = vld [vmem:[%s3 + $0x28] sm:$0xf]
  %v3146 = vld [vmem:[%s3 + $0x2c] sm:$0xf]
  %v3147 = vld [vmem:[%s3 + $0x30] sm:$0xf]
  %v3148 = vld [vmem:[%s3 + $0x34] sm:$0xf]
  %v3149 = vld [vmem:[%s3 + $0x38] sm:$0xf]
  %v3150 = vld [vmem:[%s3 + $0x3c] sm:$0xf]
  %v3151 = vld [vmem:[%s3 + $0x40] sm:$0xf]
  %v3152 = vld [vmem:[%s3 + $0x44] sm:$0xf]
  %v3153 = vld [vmem:[%s3 + $0x48] sm:$0xf]
  %v3154 = vld [vmem:[%s3 + $0x4c] sm:$0xf]
  %v3155 = vld [vmem:[%s3 + $0x50] sm:$0xf]
  %v3156 = vld [vmem:[%s3 + $0x54] sm:$0xf]
  %v3157 = vld [vmem:[%s3 + $0x58] sm:$0xf]
  %v3158 = vld [vmem:[%s3 + $0x5c] sm:$0xf]
  %v3159 = vld [vmem:[%s3 + $0x60] sm:$0xf]
  %v3160 = vld [vmem:[%s3 + $0x64] sm:$0xf]
  %v3161 = vld [vmem:[%s3 + $0x68] sm:$0xf]
  %v3162 = vld [vmem:[%s3 + $0x6c] sm:$0xf]
  %v3163 = vld [vmem:[%s3 + $0x70] sm:$0xf]
  %v3164 = vld [vmem:[%s3 + $0x74] sm:$0xf]
  %v3165 = vld [vmem:[%s3 + $0x78] sm:$0xf]
  %v3166 = vld [vmem:[%s3 + $0x7c] sm:$0xf]
  %v3167 = vld [vmem:[%s3 + $0x80] sm:$0xf]
  %v3168 = vld [vmem:[%s3 + $0x84] sm:$0xf]
  %v3169 = vld [vmem:[%s3 + $0x88] sm:$0xf]
  %v3170 = vld [vmem:[%s3 + $0x8c] sm:$0xf]
  %v3171 = vld [vmem:[%s3 + $0x90] sm:$0xf]
  %v3172 = vld [vmem:[%s3 + $0x94] sm:$0xf]
  %v3173 = vld [vmem:[%s3 + $0x98] sm:$0xf]
  %v3174 = vld [vmem:[%s3 + $0x9c] sm:$0xf]
  %v3175 = vld [vmem:[%s3 + $0xa0] sm:$0xf]
  %v3176 = vld [vmem:[%s3 + $0xa4] sm:$0xf]
  %v3177 = vld [vmem:[%s3 + $0xa8] sm:$0xf]
  %v3178 = vld [vmem:[%s3 + $0xac] sm:$0xf]
  %v3179 = vld [vmem:[%s3 + $0xb0] sm:$0xf]
  %v3180 = vld [vmem:[%s3 + $0xb4] sm:$0xf]
  %v3181 = vld [vmem:[%s3 + $0xb8] sm:$0xf]
  %v3182 = vld [vmem:[%s3 + $0xbc] sm:$0xf]
  %v3183 = vld [vmem:[%s3 + $0xc0] sm:$0xf]
  %v3184 = vld [vmem:[%s3 + $0xc4] sm:$0xf]
  %v3185 = vld [vmem:[%s3 + $0xc8] sm:$0xf]
  %v3186 = vld [vmem:[%s3 + $0xcc] sm:$0xf]
  %v3187 = vld [vmem:[%s3 + $0xd0] sm:$0xf]
  %v3188 = vld [vmem:[%s3 + $0xd4] sm:$0xf]
  %v3189 = vld [vmem:[%s3 + $0xd8] sm:$0xf]
  %v3190 = vld [vmem:[%s3 + $0xdc] sm:$0xf]
  %v3191 = vld [vmem:[%s3 + $0xe0] sm:$0xf]
  %v3192 = vld [vmem:[%s3 + $0xe4] sm:$0xf]
  %v3193 = vld [vmem:[%s3 + $0xe8] sm:$0xf]
  %v3194 = vld [vmem:[%s3 + $0xec] sm:$0xf]
  %v3195 = vld [vmem:[%s3 + $0xf0] sm:$0xf]
  %v3196 = vld [vmem:[%s3 + $0xf4] sm:$0xf]
  %v3197 = vld [vmem:[%s3 + $0xf8] sm:$0xf]
  %v3198 = vld [vmem:[%s3 + $0xfc] sm:$0xf]
  %v3199 = vld [vmem:[%s3 + $0x100] sm:$0xf]
  %v3200 = vld [vmem:[%s3 + $0x104] sm:$0xf]
  %v3201 = vld [vmem:[%s3 + $0x108] sm:$0xf]
  %v3202 = vld [vmem:[%s3 + $0x10c] sm:$0xf]
  %v3203 = vld [vmem:[%s3 + $0x110] sm:$0xf]
  %v3204 = vld [vmem:[%s3 + $0x114] sm:$0xf]
  %v3205 = vld [vmem:[%s3 + $0x118] sm:$0xf]
  %v3206 = vld [vmem:[%s3 + $0x11c] sm:$0xf]
  %v3207 = vld [vmem:[%s3 + $0x120] sm:$0xf]
  %v3208 = vld [vmem:[%s3 + $0x124] sm:$0xf]
  %v3209 = vld [vmem:[%s3 + $0x128] sm:$0xf]
  %v3210 = vld [vmem:[%s3 + $0x12c] sm:$0xf]
  %v3211 = vld [vmem:[%s3 + $0x130] sm:$0xf]
  %v3212 = vld [vmem:[%s3 + $0x134] sm:$0xf]
  %v3213 = vld [vmem:[%s3 + $0x138] sm:$0xf]
  %v3214 = vld [vmem:[%s3 + $0x13c] sm:$0xf]
  %v3215 = vld [vmem:[%s3 + $0x140] sm:$0xf]
  %v3216 = vld [vmem:[%s3 + $0x144] sm:$0xf]
  %v3217 = vld [vmem:[%s3 + $0x148] sm:$0xf]
  %v3218 = vld [vmem:[%s3 + $0x14c] sm:$0xf]
  %v3219 = vld [vmem:[%s3 + $0x150] sm:$0xf]
  %v3220 = vld [vmem:[%s3 + $0x154] sm:$0xf]
  %v3221 = vld [vmem:[%s3 + $0x158] sm:$0xf]
  %v3222 = vld [vmem:[%s3 + $0x15c] sm:$0xf]
  %v3223 = vld [vmem:[%s3 + $0x160] sm:$0xf]
  %v3224 = vld [vmem:[%s3 + $0x164] sm:$0xf]
  %v3225 = vld [vmem:[%s3 + $0x168] sm:$0xf]
  %v3226 = vld [vmem:[%s3 + $0x16c] sm:$0xf]
  %v3227 = vld [vmem:[%s3 + $0x170] sm:$0xf]
  %v3228 = vld [vmem:[%s3 + $0x174] sm:$0xf]
  %v3229 = vld [vmem:[%s3 + $0x178] sm:$0xf]
  %v3230 = vld [vmem:[%s3 + $0x17c] sm:$0xf]
  %v3231 = vld [vmem:[%s3 + $0x180] sm:$0xf]
  %v3232 = vld [vmem:[%s3 + $0x184] sm:$0xf]
  %v3233 = vld [vmem:[%s3 + $0x188] sm:$0xf]
  %v3234 = vld [vmem:[%s3 + $0x18c] sm:$0xf]
  %v3235 = vld [vmem:[%s3 + $0x190] sm:$0xf]
  %v3236 = vld [vmem:[%s3 + $0x194] sm:$0xf]
  %v3237 = vld [vmem:[%s3 + $0x198] sm:$0xf]
  %v3238 = vld [vmem:[%s3 + $0x19c] sm:$0xf]
  %v3239 = vld [vmem:[%s3 + $0x1a0] sm:$0xf]
  %v3240 = vld [vmem:[%s3 + $0x1a4] sm:$0xf]
  %v3241 = vld [vmem:[%s3 + $0x1a8] sm:$0xf]
  %v3242 = vld [vmem:[%s3 + $0x1ac] sm:$0xf]
  %v3243 = vld [vmem:[%s3 + $0x1b0] sm:$0xf]
  %v3244 = vld [vmem:[%s3 + $0x1b4] sm:$0xf]
  %v3245 = vld [vmem:[%s3 + $0x1b8] sm:$0xf]
  %v3246 = vld [vmem:[%s3 + $0x1bc] sm:$0xf]
  %v3247 = vld [vmem:[%s3 + $0x1c0] sm:$0xf]
  %v3248 = vld [vmem:[%s3 + $0x1c4] sm:$0xf]
  %v3249 = vld [vmem:[%s3 + $0x1c8] sm:$0xf]
  %v3250 = vld [vmem:[%s3 + $0x1cc] sm:$0xf]
  %v3251 = vld [vmem:[%s3 + $0x1d0] sm:$0xf]
  %v3252 = vld [vmem:[%s3 + $0x1d4] sm:$0xf]
  %v3253 = vld [vmem:[%s3 + $0x1d8] sm:$0xf]
  %v3254 = vld [vmem:[%s3 + $0x1dc] sm:$0xf]
  %v3255 = vld [vmem:[%s3 + $0x1e0] sm:$0xf]
  %v3256 = vld [vmem:[%s3 + $0x1e4] sm:$0xf]
  %v3257 = vld [vmem:[%s3 + $0x1e8] sm:$0xf]
  %v3258 = vld [vmem:[%s3 + $0x1ec] sm:$0xf]
  %v3259 = vld [vmem:[%s3 + $0x1f0] sm:$0xf]
  %v3260 = vld [vmem:[%s3 + $0x1f4] sm:$0xf]
  %v3261 = vld [vmem:[%s3 + $0x1f8] sm:$0xf]
  %v3262 = vld [vmem:[%s3 + $0x1fc] sm:$0xf]
  %v3263 = vld [vmem:[%s3 + $0x200] sm:$0xf]
  %v3264 = vld [vmem:[%s3 + $0x204] sm:$0xf]
  %v3265 = vld [vmem:[%s3 + $0x208] sm:$0xf]
  %v3266 = vld [vmem:[%s3 + $0x20c] sm:$0xf]
  %v3267 = vld [vmem:[%s3 + $0x210] sm:$0xf]
  %v3268 = vld [vmem:[%s3 + $0x214] sm:$0xf]
  %v3269 = vld [vmem:[%s3 + $0x218] sm:$0xf]
  %v3270 = vld [vmem:[%s3 + $0x21c] sm:$0xf]
  %v3271 = vld [vmem:[%s3 + $0x220] sm:$0xf]
  %v3272 = vld [vmem:[%s3 + $0x224] sm:$0xf]
  %v3273 = vld [vmem:[%s3 + $0x228] sm:$0xf]
  %v3274 = vld [vmem:[%s3 + $0x22c] sm:$0xf]
  %v3275 = vld [vmem:[%s3 + $0x230] sm:$0xf]
  %v3276 = vld [vmem:[%s3 + $0x234] sm:$0xf]
  %v3277 = vld [vmem:[%s3 + $0x238] sm:$0xf]
  %v3278 = vld [vmem:[%s3 + $0x23c] sm:$0xf]
  %v3279 = vld [vmem:[%s3 + $0x240] sm:$0xf]
  %v3280 = vld [vmem:[%s3 + $0x244] sm:$0xf]
  %v3281 = vld [vmem:[%s3 + $0x248] sm:$0xf]
  %v3282 = vld [vmem:[%s3 + $0x24c] sm:$0xf]
  %v3283 = vld [vmem:[%s3 + $0x250] sm:$0xf]
  %v3284 = vld [vmem:[%s3 + $0x254] sm:$0xf]
  %v3285 = vld [vmem:[%s4] sm:$0x1]
  %v3287 = vlaneseq
  %v3288 = vshrl.u32 %v3287, 7
  %v3289 = vsub.s32 0, %v3288
  %v3290 = vrot.slane %v3285, %v3289
  %v3442 = vunpack.c.l.b16 %v3135
  %v3443 = vunpack.c.l.b16 %v3136
  %v3444 = vunpack.c.l.b16 %v3137
  %v3445 = vunpack.c.l.b16 %v3138
  %v3446 = vunpack.c.l.b16 %v3139
  %v3447 = vunpack.c.l.b16 %v3140
  %v3448 = vunpack.c.l.b16 %v3141
  %v3449 = vunpack.c.l.b16 %v3142
  %v3450 = vunpack.c.l.b16 %v3143
  %v3451 = vunpack.c.l.b16 %v3144
  %v3452 = vunpack.c.l.b16 %v3145
  %v3453 = vunpack.c.l.b16 %v3146
  %v3454 = vunpack.c.l.b16 %v3147
  %v3455 = vunpack.c.l.b16 %v3148
  %v3456 = vunpack.c.l.b16 %v3149
  %v3457 = vunpack.c.l.b16 %v3150
  %v3458 = vunpack.c.l.b16 %v3151
  %v3459 = vunpack.c.l.b16 %v3152
  %v3460 = vunpack.c.l.b16 %v3153
  %v3461 = vunpack.c.l.b16 %v3154
  %v3462 = vunpack.c.l.b16 %v3155
  %v3463 = vunpack.c.l.b16 %v3156
  %v3464 = vunpack.c.l.b16 %v3157
  %v3465 = vunpack.c.l.b16 %v3158
  %v3466 = vunpack.c.l.b16 %v3159
  %v3467 = vunpack.c.l.b16 %v3160
  %v3468 = vunpack.c.l.b16 %v3161
  %v3469 = vunpack.c.l.b16 %v3162
  %v3470 = vunpack.c.l.b16 %v3163
  %v3471 = vunpack.c.l.b16 %v3164
  %v3472 = vunpack.c.l.b16 %v3165
  %v3473 = vunpack.c.l.b16 %v3166
  %v3474 = vunpack.c.l.b16 %v3167
  %v3475 = vunpack.c.l.b16 %v3168
  %v3476 = vunpack.c.l.b16 %v3169
  %v3477 = vunpack.c.l.b16 %v3170
  %v3478 = vunpack.c.l.b16 %v3171
  %v3479 = vunpack.c.l.b16 %v3172
  %v3480 = vunpack.c.l.b16 %v3173
  %v3481 = vunpack.c.l.b16 %v3174
  %v3482 = vunpack.c.l.b16 %v3175
  %v3483 = vunpack.c.l.b16 %v3176
  %v3484 = vunpack.c.l.b16 %v3177
  %v3485 = vunpack.c.l.b16 %v3178
  %v3486 = vunpack.c.l.b16 %v3179
  %v3487 = vunpack.c.l.b16 %v3180
  %v3488 = vunpack.c.l.b16 %v3181
  %v3489 = vunpack.c.l.b16 %v3182
  %v3490 = vunpack.c.l.b16 %v3183
  %v3491 = vunpack.c.l.b16 %v3184
  %v3492 = vunpack.c.l.b16 %v3185
  %v3493 = vunpack.c.l.b16 %v3186
  %v3494 = vunpack.c.l.b16 %v3187
  %v3495 = vunpack.c.l.b16 %v3188
  %v3496 = vunpack.c.l.b16 %v3189
  %v3497 = vunpack.c.l.b16 %v3190
  %v3498 = vunpack.c.l.b16 %v3191
  %v3499 = vunpack.c.l.b16 %v3192
  %v3500 = vunpack.c.l.b16 %v3193
  %v3501 = vunpack.c.l.b16 %v3194
  %v3502 = vunpack.c.l.b16 %v3195
  %v3503 = vunpack.c.l.b16 %v3196
  %v3504 = vunpack.c.l.b16 %v3197
  %v3505 = vunpack.c.l.b16 %v3198
  %v3506 = vunpack.c.l.b16 %v3199
  %v3507 = vunpack.c.l.b16 %v3200
  %v3508 = vunpack.c.l.b16 %v3201
  %v3509 = vunpack.c.l.b16 %v3202
  %v3510 = vunpack.c.l.b16 %v3203
  %v3511 = vunpack.c.l.b16 %v3204
  %v3512 = vunpack.c.l.b16 %v3205
  %v3513 = vunpack.c.l.b16 %v3206
  %v3514 = vunpack.c.l.b16 %v3207
  %v3515 = vunpack.c.l.b16 %v3208
  %v3516 = vunpack.c.l.b16 %v3209
  %v3517 = vunpack.c.l.b16 %v3210
  %v3518 = vunpack.c.l.b16 %v3211
  %v3519 = vunpack.c.l.b16 %v3212
  %v3520 = vunpack.c.l.b16 %v3213
  %v3521 = vunpack.c.l.b16 %v3214
  %v3522 = vunpack.c.l.b16 %v3215
  %v3523 = vunpack.c.l.b16 %v3216
  %v3524 = vunpack.c.l.b16 %v3217
  %v3525 = vunpack.c.l.b16 %v3218
  %v3526 = vunpack.c.l.b16 %v3219
  %v3527 = vunpack.c.l.b16 %v3220
  %v3528 = vunpack.c.l.b16 %v3221
  %v3529 = vunpack.c.l.b16 %v3222
  %v3530 = vunpack.c.l.b16 %v3223
  %v3531 = vunpack.c.l.b16 %v3224
  %v3532 = vunpack.c.l.b16 %v3225
  %v3533 = vunpack.c.l.b16 %v3226
  %v3534 = vunpack.c.l.b16 %v3227
  %v3535 = vunpack.c.l.b16 %v3228
  %v3536 = vunpack.c.l.b16 %v3229
  %v3537 = vunpack.c.l.b16 %v3230
  %v3538 = vunpack.c.l.b16 %v3231
  %v3539 = vunpack.c.l.b16 %v3232
  %v3540 = vunpack.c.l.b16 %v3233
  %v3541 = vunpack.c.l.b16 %v3234
  %v3542 = vunpack.c.l.b16 %v3235
  %v3543 = vunpack.c.l.b16 %v3236
  %v3544 = vunpack.c.l.b16 %v3237
  %v3545 = vunpack.c.l.b16 %v3238
  %v3546 = vunpack.c.l.b16 %v3239
  %v3547 = vunpack.c.l.b16 %v3240
  %v3548 = vunpack.c.l.b16 %v3241
  %v3549 = vunpack.c.l.b16 %v3242
  %v3550 = vunpack.c.l.b16 %v3243
  %v3551 = vunpack.c.l.b16 %v3244
  %v3552 = vunpack.c.l.b16 %v3245
  %v3553 = vunpack.c.l.b16 %v3246
  %v3554 = vunpack.c.l.b16 %v3247
  %v3555 = vunpack.c.l.b16 %v3248
  %v3556 = vunpack.c.l.b16 %v3249
  %v3557 = vunpack.c.l.b16 %v3250
  %v3558 = vunpack.c.l.b16 %v3251
  %v3559 = vunpack.c.l.b16 %v3252
  %v3560 = vunpack.c.l.b16 %v3253
  %v3561 = vunpack.c.l.b16 %v3254
  %v3562 = vunpack.c.l.b16 %v3255
  %v3563 = vunpack.c.l.b16 %v3256
  %v3564 = vunpack.c.l.b16 %v3257
  %v3565 = vunpack.c.l.b16 %v3258
  %v3566 = vunpack.c.l.b16 %v3259
  %v3567 = vunpack.c.l.b16 %v3260
  %v3568 = vunpack.c.l.b16 %v3261
  %v3569 = vunpack.c.l.b16 %v3262
  %v3570 = vunpack.c.l.b16 %v3263
  %v3571 = vunpack.c.l.b16 %v3264
  %v3572 = vunpack.c.l.b16 %v3265
  %v3573 = vunpack.c.l.b16 %v3266
  %v3574 = vunpack.c.l.b16 %v3267
  %v3575 = vunpack.c.l.b16 %v3268
  %v3576 = vunpack.c.l.b16 %v3269
  %v3577 = vunpack.c.l.b16 %v3270
  %v3578 = vunpack.c.l.b16 %v3271
  %v3579 = vunpack.c.l.b16 %v3272
  %v3580 = vunpack.c.l.b16 %v3273
  %v3581 = vunpack.c.l.b16 %v3274
  %v3582 = vunpack.c.l.b16 %v3275
  %v3583 = vunpack.c.l.b16 %v3276
  %v3584 = vunpack.c.l.b16 %v3277
  %v3585 = vunpack.c.l.b16 %v3278
  %v3586 = vunpack.c.l.b16 %v3279
  %v3587 = vunpack.c.l.b16 %v3280
  %v3588 = vunpack.c.l.b16 %v3281
  %v3589 = vunpack.c.l.b16 %v3282
  %v3590 = vunpack.c.l.b16 %v3283
  %v3591 = vunpack.c.l.b16 %v3284
  %v3592 = vpack.c.b16 %v3443, %v3442
  %v3593 = vpack.c.b16 %v3445, %v3444
  %v3594 = vpack.c.b16 %v3447, %v3446
  %v3595 = vpack.c.b16 %v3449, %v3448
  %v3596 = vpack.c.b16 %v3451, %v3450
  %v3597 = vpack.c.b16 %v3453, %v3452
  %v3598 = vpack.c.b16 %v3455, %v3454
  %v3599 = vpack.c.b16 %v3457, %v3456
  %v3600 = vpack.c.b16 %v3459, %v3458
  %v3601 = vpack.c.b16 %v3461, %v3460
  %v3602 = vpack.c.b16 %v3463, %v3462
  %v3603 = vpack.c.b16 %v3465, %v3464
  %v3604 = vpack.c.b16 %v3467, %v3466
  %v3605 = vpack.c.b16 %v3469, %v3468
  %v3606 = vpack.c.b16 %v3471, %v3470
  %v3607 = vpack.c.b16 %v3473, %v3472
  %v3608 = vpack.c.b16 %v3475, %v3474
  %v3609 = vpack.c.b16 %v3477, %v3476
  %v3610 = vpack.c.b16 %v3479, %v3478
  %v3611 = vpack.c.b16 %v3481, %v3480
  %v3612 = vpack.c.b16 %v3483, %v3482
  %v3613 = vpack.c.b16 %v3485, %v3484
  %v3614 = vpack.c.b16 %v3487, %v3486
  %v3615 = vpack.c.b16 %v3489, %v3488
  %v3616 = vpack.c.b16 %v3491, %v3490
  %v3617 = vpack.c.b16 %v3493, %v3492
  %v3618 = vpack.c.b16 %v3495, %v3494
  %v3619 = vpack.c.b16 %v3497, %v3496
  %v3620 = vpack.c.b16 %v3499, %v3498
  %v3621 = vpack.c.b16 %v3501, %v3500
  %v3622 = vpack.c.b16 %v3503, %v3502
  %v3623 = vpack.c.b16 %v3505, %v3504
  %v3624 = vpack.c.b16 %v3507, %v3506
  %v3625 = vpack.c.b16 %v3509, %v3508
  %v3626 = vpack.c.b16 %v3511, %v3510
  %v3627 = vpack.c.b16 %v3513, %v3512
  %v3628 = vpack.c.b16 %v3515, %v3514
  %v3629 = vpack.c.b16 %v3517, %v3516
  %v3630 = vpack.c.b16 %v3519, %v3518
  %v3631 = vpack.c.b16 %v3521, %v3520
  %v3632 = vpack.c.b16 %v3523, %v3522
  %v3633 = vpack.c.b16 %v3525, %v3524
  %v3634 = vpack.c.b16 %v3527, %v3526
  %v3635 = vpack.c.b16 %v3529, %v3528
  %v3636 = vpack.c.b16 %v3531, %v3530
  %v3637 = vpack.c.b16 %v3533, %v3532
  %v3638 = vpack.c.b16 %v3535, %v3534
  %v3639 = vpack.c.b16 %v3537, %v3536
  %v3640 = vpack.c.b16 %v3539, %v3538
  %v3641 = vpack.c.b16 %v3541, %v3540
  %v3642 = vpack.c.b16 %v3543, %v3542
  %v3643 = vpack.c.b16 %v3545, %v3544
  %v3644 = vpack.c.b16 %v3547, %v3546
  %v3645 = vpack.c.b16 %v3549, %v3548
  %v3646 = vpack.c.b16 %v3551, %v3550
  %v3647 = vpack.c.b16 %v3553, %v3552
  %v3648 = vpack.c.b16 %v3555, %v3554
  %v3649 = vpack.c.b16 %v3557, %v3556
  %v3650 = vpack.c.b16 %v3559, %v3558
  %v3651 = vpack.c.b16 %v3561, %v3560
  %v3652 = vpack.c.b16 %v3563, %v3562
  %v3653 = vpack.c.b16 %v3565, %v3564
  %v3654 = vpack.c.b16 %v3567, %v3566
  %v3655 = vpack.c.b16 %v3569, %v3568
  %v3656 = vpack.c.b16 %v3571, %v3570
  %v3657 = vpack.c.b16 %v3573, %v3572
  %v3658 = vpack.c.b16 %v3575, %v3574
  %v3659 = vpack.c.b16 %v3577, %v3576
  %v3660 = vpack.c.b16 %v3579, %v3578
  %v3661 = vpack.c.b16 %v3581, %v3580
  %v3662 = vpack.c.b16 %v3583, %v3582
  %v3663 = vpack.c.b16 %v3585, %v3584
  %v3664 = vpack.c.b16 %v3587, %v3586
  %v3665 = vpack.c.b16 %v3589, %v3588
  %v3666 = vpack.c.b16 %v3591, %v3590
  %vm3742 = vcmask 392192
  %v3744 = vsel %vm3742, %v3134, 0
  %3746 = vmatprep.subr.bf16.mxu0 0
  %3747 = vmatpush1.bf16.msra.mxu0 %v3599
  %3748 = vmatprep.subr.bf16.mxu0 0
  %3749 = vmatpush1.bf16.msra.mxu0 %v3598
  %3750 = vmatprep.subr.bf16.mxu0 0
  %3751 = vmatpush1.bf16.msra.mxu0 %v3597
  %3752 = vmatprep.subr.bf16.mxu0 0
  %3753 = vmatpush1.bf16.msra.mxu0 %v3596
  %3754 = vmatprep.subr.bf16.mxu0 0
  %3755 = vmatpush1.bf16.msra.mxu0 %v3595
  %3756 = vmatprep.subr.bf16.mxu0 0
  %3757 = vmatpush1.bf16.msra.mxu0 %v3594
  %3758 = vmatprep.subr.bf16.mxu0 0
  %3759 = vmatpush1.bf16.msra.mxu0 %v3593
  %3760 = vmatprep.subr.bf16.mxu0 0
  %3761 = vmatpush1.bf16.msra.mxu0 %v3592
  %3762 = vmatprep.subr.bf16.mxu0 0
  %3763 = vmatpush2.bf16.msra.mxu0 %v3607
  %3764 = vmatprep.subr.bf16.mxu0 0
  %3765 = vmatpush2.bf16.msra.mxu0 %v3606
  %3766 = vmatprep.subr.bf16.mxu0 0
  %3767 = vmatpush2.bf16.msra.mxu0 %v3605
  %3768 = vmatprep.subr.bf16.mxu0 0
  %3769 = vmatpush2.bf16.msra.mxu0 %v3604
  %3770 = vmatprep.subr.bf16.mxu0 0
  %3771 = vmatpush2.bf16.msra.mxu0 %v3603
  %3772 = vmatprep.subr.bf16.mxu0 0
  %3773 = vmatpush2.bf16.msra.mxu0 %v3602
  %3774 = vmatprep.subr.bf16.mxu0 0
  %3775 = vmatpush2.bf16.msra.mxu0 %v3601
  %3776 = vmatprep.subr.bf16.mxu0 0
  %3777 = vmatpush2.bf16.msra.mxu0 %v3600
  %3778 = vmatprep.mubr.bf16.mxu0 %v3126
  %3779 = vmatmul.mubr.bf16.gmra.mxu0 %v3125
  %v3780 = vpop.f32.mrf.mxu0
  %v3781 = vadd.f32 %v3290, %v3780
  %v3782 = vpop.f32.mrf.mxu0
  %v3783 = vpop.f32.mrf.mxu0
  %v3784 = vpop.f32.mrf.mxu0
  %3785 = vdwg.mxu0
  %3786 = vmatprep.subr.bf16.mxu0 0
  %3787 = vmatpush1.bf16.msra.mxu0 %v3615
  %3788 = vmatprep.subr.bf16.mxu0 0
  %3789 = vmatpush1.bf16.msra.mxu0 %v3614
  %3790 = vmatprep.subr.bf16.mxu0 0
  %3791 = vmatpush1.bf16.msra.mxu0 %v3613
  %3792 = vmatprep.subr.bf16.mxu0 0
  %3793 = vmatpush1.bf16.msra.mxu0 %v3612
  %3794 = vmatprep.subr.bf16.mxu0 0
  %3795 = vmatpush1.bf16.msra.mxu0 %v3611
  %3796 = vmatprep.subr.bf16.mxu0 0
  %3797 = vmatpush1.bf16.msra.mxu0 %v3610
  %3798 = vmatprep.subr.bf16.mxu0 0
  %3799 = vmatpush1.bf16.msra.mxu0 %v3609
  %3800 = vmatprep.subr.bf16.mxu0 0
  %3801 = vmatpush1.bf16.msra.mxu0 %v3608
  %3802 = vmatprep.subr.bf16.mxu0 0
  %3803 = vmatpush2.bf16.msra.mxu0 %v3623
  %3804 = vmatprep.subr.bf16.mxu0 0
  %3805 = vmatpush2.bf16.msra.mxu0 %v3622
  %3806 = vmatprep.subr.bf16.mxu0 0
  %3807 = vmatpush2.bf16.msra.mxu0 %v3621
  %3808 = vmatprep.subr.bf16.mxu0 0
  %3809 = vmatpush2.bf16.msra.mxu0 %v3620
  %3810 = vmatprep.subr.bf16.mxu0 0
  %3811 = vmatpush2.bf16.msra.mxu0 %v3619
  %3812 = vmatprep.subr.bf16.mxu0 0
  %3813 = vmatpush2.bf16.msra.mxu0 %v3618
  %3814 = vmatprep.subr.bf16.mxu0 0
  %3815 = vmatpush2.bf16.msra.mxu0 %v3617
  %3816 = vmatprep.subr.bf16.mxu0 0
  %3817 = vmatpush2.bf16.msra.mxu0 %v3616
  %3818 = vmatprep.mubr.bf16.mxu0 %v3128
  %3819 = vmatmul.mubr.bf16.gmra.mxu0 %v3127
  %v3820 = vpop.f32.mrf.mxu0
  %v3821 = vadd.f32 %v3781, %v3820
  %v3822 = vpop.f32.mrf.mxu0
  %v3823 = vpop.f32.mrf.mxu0
  %v3824 = vpop.f32.mrf.mxu0
  %3825 = vdwg.mxu0
  %3826 = vmatprep.subr.bf16.mxu0 0
  %3827 = vmatpush1.bf16.msra.mxu0 %v3631
  %3828 = vmatprep.subr.bf16.mxu0 0
  %3829 = vmatpush1.bf16.msra.mxu0 %v3630
  %3830 = vmatprep.subr.bf16.mxu0 0
  %3831 = vmatpush1.bf16.msra.mxu0 %v3629
  %3832 = vmatprep.subr.bf16.mxu0 0
  %3833 = vmatpush1.bf16.msra.mxu0 %v3628
  %3834 = vmatprep.subr.bf16.mxu0 0
  %3835 = vmatpush1.bf16.msra.mxu0 %v3627
  %3836 = vmatprep.subr.bf16.mxu0 0
  %3837 = vmatpush1.bf16.msra.mxu0 %v3626
  %3838 = vmatprep.subr.bf16.mxu0 0
  %3839 = vmatpush1.bf16.msra.mxu0 %v3625
  %3840 = vmatprep.subr.bf16.mxu0 0
  %3841 = vmatpush1.bf16.msra.mxu0 %v3624
  %3842 = vmatprep.subr.bf16.mxu0 0
  %3843 = vmatpush2.bf16.msra.mxu0 %v3639
  %3844 = vmatprep.subr.bf16.mxu0 0
  %3845 = vmatpush2.bf16.msra.mxu0 %v3638
  %3846 = vmatprep.subr.bf16.mxu0 0
  %3847 = vmatpush2.bf16.msra.mxu0 %v3637
  %3848 = vmatprep.subr.bf16.mxu0 0
  %3849 = vmatpush2.bf16.msra.mxu0 %v3636
  %3850 = vmatprep.subr.bf16.mxu0 0
  %3851 = vmatpush2.bf16.msra.mxu0 %v3635
  %3852 = vmatprep.subr.bf16.mxu0 0
  %3853 = vmatpush2.bf16.msra.mxu0 %v3634
  %3854 = vmatprep.subr.bf16.mxu0 0
  %3855 = vmatpush2.bf16.msra.mxu0 %v3633
  %3856 = vmatprep.subr.bf16.mxu0 0
  %3857 = vmatpush2.bf16.msra.mxu0 %v3632
  %3858 = vmatprep.mubr.bf16.mxu0 %v3130
  %3859 = vmatmul.mubr.bf16.gmra.mxu0 %v3129
  %v3860 = vpop.f32.mrf.mxu0
  %v3861 = vadd.f32 %v3821, %v3860
  %v3862 = vpop.f32.mrf.mxu0
  %v3863 = vpop.f32.mrf.mxu0
  %v3864 = vpop.f32.mrf.mxu0
  %3865 = vdwg.mxu0
  %3866 = vmatprep.subr.bf16.mxu0 0
  %3867 = vmatpush1.bf16.msra.mxu0 %v3647
  %3868 = vmatprep.subr.bf16.mxu0 0
  %3869 = vmatpush1.bf16.msra.mxu0 %v3646
  %3870 = vmatprep.subr.bf16.mxu0 0
  %3871 = vmatpush1.bf16.msra.mxu0 %v3645
  %3872 = vmatprep.subr.bf16.mxu0 0
  %3873 = vmatpush1.bf16.msra.mxu0 %v3644
  %3874 = vmatprep.subr.bf16.mxu0 0
  %3875 = vmatpush1.bf16.msra.mxu0 %v3643
  %3876 = vmatprep.subr.bf16.mxu0 0
  %3877 = vmatpush1.bf16.msra.mxu0 %v3642
  %3878 = vmatprep.subr.bf16.mxu0 0
  %3879 = vmatpush1.bf16.msra.mxu0 %v3641
  %3880 = vmatprep.subr.bf16.mxu0 0
  %3881 = vmatpush1.bf16.msra.mxu0 %v3640
  %3882 = vmatprep.subr.bf16.mxu0 0
  %3883 = vmatpush2.bf16.msra.mxu0 %v3655
  %3884 = vmatprep.subr.bf16.mxu0 0
  %3885 = vmatpush2.bf16.msra.mxu0 %v3654
  %3886 = vmatprep.subr.bf16.mxu0 0
  %3887 = vmatpush2.bf16.msra.mxu0 %v3653
  %3888 = vmatprep.subr.bf16.mxu0 0
  %3889 = vmatpush2.bf16.msra.mxu0 %v3652
  %3890 = vmatprep.subr.bf16.mxu0 0
  %3891 = vmatpush2.bf16.msra.mxu0 %v3651
  %3892 = vmatprep.subr.bf16.mxu0 0
  %3893 = vmatpush2.bf16.msra.mxu0 %v3650
  %3894 = vmatprep.subr.bf16.mxu0 0
  %3895 = vmatpush2.bf16.msra.mxu0 %v3649
  %3896 = vmatprep.subr.bf16.mxu0 0
  %3897 = vmatpush2.bf16.msra.mxu0 %v3648
  %3898 = vmatprep.mubr.bf16.mxu0 %v3132
  %3899 = vmatmul.mubr.bf16.gmra.mxu0 %v3131
  %v3900 = vpop.f32.mrf.mxu0
  %v3901 = vadd.f32 %v3861, %v3900
  %v3902 = vpop.f32.mrf.mxu0
  %v3903 = vpop.f32.mrf.mxu0
  %v3904 = vpop.f32.mrf.mxu0
  %3905 = vdwg.mxu0
  %3906 = vmatprep.subr.bf16.mxu0 0
  %3907 = vmatpush1.bf16.msra.mxu0 %v3663
  %3908 = vmatprep.subr.bf16.mxu0 0
  %3909 = vmatpush1.bf16.msra.mxu0 %v3662
  %3910 = vmatprep.subr.bf16.mxu0 0
  %3911 = vmatpush1.bf16.msra.mxu0 %v3661
  %3912 = vmatprep.subr.bf16.mxu0 0
  %3913 = vmatpush1.bf16.msra.mxu0 %v3660
  %3914 = vmatprep.subr.bf16.mxu0 0
  %3915 = vmatpush1.bf16.msra.mxu0 %v3659
  %3916 = vmatprep.subr.bf16.mxu0 0
  %3917 = vmatpush1.bf16.msra.mxu0 %v3658
  %3918 = vmatprep.subr.bf16.mxu0 0
  %3919 = vmatpush1.bf16.msra.mxu0 %v3657
  %3920 = vmatprep.subr.bf16.mxu0 0
  %3921 = vmatpush1.bf16.msra.mxu0 %v3656
  %3922 = vmatprep.subr.bf16.mxu0 0
  %3923 = vmatpush2.bf16.msra.mxu0 0
  %3924 = vmatprep.subr.bf16.mxu0 0
  %3925 = vmatpush2.bf16.msra.mxu0 0
  %3926 = vmatprep.subr.bf16.mxu0 0
  %3927 = vmatpush2.bf16.msra.mxu0 0
  %3928 = vmatprep.subr.bf16.mxu0 0
  %3929 = vmatpush2.bf16.msra.mxu0 0
  %3930 = vmatprep.subr.bf16.mxu0 0
  %3931 = vmatpush2.bf16.msra.mxu0 0
  %3932 = vmatprep.subr.bf16.mxu0 0
  %3933 = vmatpush2.bf16.msra.mxu0 %v3666
  %3934 = vmatprep.subr.bf16.mxu0 0
  %3935 = vmatpush2.bf16.msra.mxu0 %v3665
  %3936 = vmatprep.subr.bf16.mxu0 0
  %3937 = vmatpush2.bf16.msra.mxu0 %v3664
  %3938 = vmatprep.mubr.bf16.mxu0 %v3744
  %3939 = vmatmul.mubr.bf16.gmra.mxu0 %v3133
  %v3940 = vpop.f32.mrf.mxu0
  %v3941 = vadd.f32 %v3901, %v3940
  %v3942 = vpop.f32.mrf.mxu0
  %v3943 = vpop.f32.mrf.mxu0
  %v3944 = vpop.f32.mrf.mxu0
  %3945 = vdwg.mxu0
  %3946 = vst [vmem:[%s5] sm:$0xff] %v3941
  // Predicated region
  $region22: #{decoder_forward.1} parent=0 // pred_check
    _
  $region23: #{decoder_forward.1} parent=0 // pred_check_branch
    %3948 = sbr.rel (0) target = $region25
  $region24: #{decoder_forward.1} parent=0 // pred_region
    _
  $region25: #{decoder_forward.1} parent=0 // pred_fallthru
    _
  // Predicated region
  $region26: #{decoder_forward.1} parent=0 // pred_check
    _
  $region27: #{decoder_forward.1} parent=0 // pred_check_branch
    %3950 = sbr.rel (0) target = $region29
  $region28: #{decoder_forward.1} parent=0 // pred_region
    _
  $region29: #{decoder_forward.1} parent=0 // pred_fallthru
    _

</llo_original>
